<compile_context>
chip_gen: v5e
topology: v5e:2x2
jax: 0.10.0
libtpu: 0.0.40
codegen_flags: <defaults>
</compile_context>

<pallas_src>
import functools

import jax
import jax.numpy as jnp
from jax import lax
from jax.experimental import pallas as pl
from jax.experimental.pallas import tpu as pltpu

BN_EPS = 1e-5
_VMEM_LIMIT = 32 * 1024 * 1024  # safe on v5e/v6e (128 MiB) and v7x (64 MiB)


def _round_up(a, b):
    return ((a + b - 1) // b) * b


# ----------------------------------------------------------------------------
# Phase 1: per-channel sum / sum-of-squares of h1 = x @ W1, finalized into
#          BN scale/shift (row 0 = 1/sigma, row 1 = -mu/sigma).
# ----------------------------------------------------------------------------
def _stats_kernel(x_ref, w1_ref, ss_ref, *, inv_count):
    m = pl.program_id(0)

    @pl.when(m == 0)
    def _():
        ss_ref[...] = jnp.zeros_like(ss_ref)

    # bf16 x bf16 -> f32 accumulate on the MXU
    h1 = jnp.dot(x_ref[...], w1_ref[...], preferred_element_type=jnp.float32)
    s = jnp.sum(h1, axis=0, keepdims=True)          # (1, C)
    sq = jnp.sum(h1 * h1, axis=0, keepdims=True)    # (1, C)
    ss_ref[...] += jnp.concatenate([s, sq], axis=0)

    @pl.when(m == pl.num_programs(0) - 1)
    def _():
        mu = ss_ref[0:1, :] * inv_count
        var = jnp.maximum(ss_ref[1:2, :] * inv_count - mu * mu, 0.0)
        scale = lax.rsqrt(var + BN_EPS)              # EUP
        shift = -mu * scale
        ss_ref[...] = jnp.concatenate([scale, shift], axis=0)


# ----------------------------------------------------------------------------
# Phase 2: recompute h1 per tile, apply BN scale/shift + ReLU, fused head matmul.
# ----------------------------------------------------------------------------
def _heads_kernel(ss_ref, x_ref, w1_ref, wh_ref, bh_ref, o_ref):
    h1 = jnp.dot(x_ref[...], w1_ref[...], preferred_element_type=jnp.float32)
    scale = ss_ref[0:1, :]
    shift = ss_ref[1:2, :]
    feat = jnp.maximum(h1 * scale + shift, 0.0)      # f32 VPU math
    o_ref[...] = (
        jnp.dot(feat.astype(jnp.bfloat16), wh_ref[...],
                preferred_element_type=jnp.float32)
        + bh_ref[...]
    )


def prepare_params(params):
    """One-time weight prep: transpose to (Cin, Cout), fuse heads, cast to bf16."""
    w1 = jnp.transpose(params["w_common"][:, :, 0, 0]).astype(jnp.bfloat16)
    wh = jnp.concatenate(
        [jnp.transpose(params["w_x"][:, :, 0, 0]),
         jnp.transpose(params["w_y"][:, :, 0, 0]),
         jnp.transpose(params["w_z"][:, :, 0, 0])],
        axis=1,
    ).astype(jnp.bfloat16)
    bh = jnp.concatenate(
        [params["b_x"], params["b_y"], params["b_z"]]).reshape(1, -1).astype(jnp.float32)
    head_dims = (params["w_x"].shape[0], params["w_y"].shape[0], params["w_z"].shape[0])
    return {"w1": w1, "wh": wh, "bh": bh}, head_dims


def pose_classifier_forward(x_nchw, w1, wh, bh, *, head_dims, tm=1024):
    """Full PoseClassifier forward through two pipelined Pallas kernels."""
    B, C, H, W = x_nchw.shape
    M = B * H * W
    c_in = w1.shape[0]
    c_mid = w1.shape[1]
    c_heads = wh.shape[1]

    # NCHW -> (B*H*W, C); metadata-only when H = W = 1 (the module's default h=1).
    # TODO(synk): for large H, W feed NHWC upstream to avoid this transpose.
    x2d = jnp.transpose(x_nchw, (0, 2, 3, 1)).reshape(M, C).astype(jnp.bfloat16)

    # M tiling (zero padding keeps the BN sums exact; divide by the true M).
    tm_eff = _round_up(min(tm, _round_up(M, 8)), 8)
    m_pad = _round_up(M, tm_eff)
    n_tiles = m_pad // tm_eff
    x2d = jnp.pad(x2d, ((0, m_pad - M), (0, 0)))

    cparams_seq = pltpu.CompilerParams(
        dimension_semantics=("arbitrary",), vmem_limit_bytes=_VMEM_LIMIT)
    cparams_par = pltpu.CompilerParams(
        dimension_semantics=("parallel",), vmem_limit_bytes=_VMEM_LIMIT)

    # ---- phase 1: BN statistics -> (2, C) scale/shift ----
    ss = pl.pallas_call(
        functools.partial(_stats_kernel, inv_count=1.0 / float(M)),
        grid=(n_tiles,),
        in_specs=[
            pl.BlockSpec((tm_eff, c_in), lambda i: (i, 0)),
            pl.BlockSpec((c_in, c_mid), lambda i: (0, 0)),   # resident weight
        ],
        out_specs=pl.BlockSpec((2, c_mid), lambda i: (0, 0)),
        out_shape=jax.ShapeDtypeStruct((2, c_mid), jnp.float32),
        compiler_params=cparams_seq,
    )(x2d, w1)

    # ---- phase 2: normalize + ReLU + fused heads ----
    out2d = pl.pallas_call(
        _heads_kernel,
        grid=(n_tiles,),
        in_specs=[
            pl.BlockSpec((2, c_mid), lambda i: (0, 0)),
            pl.BlockSpec((tm_eff, c_in), lambda i: (i, 0)),
            pl.BlockSpec((c_in, c_mid), lambda i: (0, 0)),
            pl.BlockSpec((c_mid, c_heads), lambda i: (0, 0)),
            pl.BlockSpec((1, c_heads), lambda i: (0, 0)),
        ],
        out_specs=pl.BlockSpec((tm_eff, c_heads), lambda i: (i, 0)),
        out_shape=jax.ShapeDtypeStruct((m_pad, c_heads), jnp.float32),
        compiler_params=cparams_par,
    )(ss, x2d, w1, wh, bh)

    out2d = out2d[:M]
    cx, cy, cz = head_dims
    ox = out2d[:, :cx]
    oy = out2d[:, cx:cx + cy]
    oz = out2d[:, cx + cy:cx + cy + cz]

    def to_nchw(o):
        return jnp.transpose(o.reshape(B, H, W, -1), (0, 3, 1, 2))

    return to_nchw(ox), to_nchw(oy), to_nchw(oz)


def reference_forward(x_nchw, params):
    """Pure-JAX f32 reference of the PyTorch module semantics (for validation)."""
    B, C, H, W = x_nchw.shape
    x2d = jnp.transpose(x_nchw, (0, 2, 3, 1)).reshape(B * H * W, C)
    h1 = x2d @ jnp.transpose(params["w_common"][:, :, 0, 0])
    mu = jnp.mean(h1, axis=0, keepdims=True)
    var = jnp.mean(jnp.square(h1 - mu), axis=0, keepdims=True)
    feat = jnp.maximum((h1 - mu) / jnp.sqrt(var + BN_EPS), 0.0)
    outs = []
    for wk, bk in (("w_x", "b_x"), ("w_y", "b_y"), ("w_z", "b_z")):
        o = feat @ jnp.transpose(params[wk][:, :, 0, 0]) + params[bk][None, :]
        outs.append(jnp.transpose(o.reshape(B, H, W, -1), (0, 3, 1, 2)))
    return tuple(outs)


if __name__ == "__main__":
    # Module hyper-params: in_feat / out_feat fixed at 512 by the module.
    in_feat = 512
    out_feat = 512
    n_joints = 8
    n_bins_x = n_bins_y = n_bins_z = 16
    cx = n_joints * n_bins_x     # 128
    cy = n_joints * n_bins_y     # 128
    cz = n_joints * n_bins_z     # 128

    # 1x1 convs accept any spatial size; pick small B,H,W so M=72 exercises
    # multi-tile accumulation + zero-padding (tm=32 -> 3 tiles, 24 padded rows).
    B, H, W = 2, 6, 6

    key = jax.random.PRNGKey(0)
    k_in, k1, kx, kbx, ky, kby, kz, kbz = jax.random.split(key, 8)

    x = jax.random.normal(k_in, (B, in_feat, H, W), dtype=jnp.float32)

    params = {
        # Conv2d weights are (Cout, Cin, 1, 1).
        "w_common": 0.02 * jax.random.normal(k1, (out_feat, in_feat, 1, 1), jnp.float32),
        "w_x": 0.02 * jax.random.normal(kx, (cx, out_feat, 1, 1), jnp.float32),
        "b_x": 0.1 * jax.random.normal(kbx, (cx,), jnp.float32),
        "w_y": 0.02 * jax.random.normal(ky, (cy, out_feat, 1, 1), jnp.float32),
        "b_y": 0.1 * jax.random.normal(kby, (cy,), jnp.float32),
        "w_z": 0.02 * jax.random.normal(kz, (cz, out_feat, 1, 1), jnp.float32),
        "b_z": 0.1 * jax.random.normal(kbz, (cz,), jnp.float32),
    }

    prep, head_dims = prepare_params(params)

    fwd = jax.jit(pose_classifier_forward, static_argnames=("head_dims", "tm"))
    x_out, y_out, z_out = jax.block_until_ready(
        fwd(x, prep["w1"], prep["wh"], prep["bh"], head_dims=head_dims, tm=32))

    assert x_out.shape == (B, cx, H, W)
    assert y_out.shape == (B, cy, H, W)
    assert z_out.shape == (B, cz, H, W)

    # Validate against f32 reference; tolerance accounts for bf16 matmul inputs
    # (f32 accumulation keeps the error ~1e-3 at these magnitudes).
    rx, ry, rz = reference_forward(x, params)
    for got, ref in ((x_out, rx), (y_out, ry), (z_out, rz)):
        assert jnp.allclose(got, ref, atol=2e-2, rtol=2e-2)

    print("KERNEL_OK")
</pallas_src>

<mosaic_0001>
module attributes {stable_mosaic.version = 11 : i64} {
  func.func @_stats_kernel(%arg0: i32, %arg1: memref<32x512xbf16, #tpu.memory_space<vmem>>, %arg2: memref<512x512xbf16, #tpu.memory_space<vmem>>, %arg3: memref<2x512xf32, #tpu.memory_space<vmem>>) attributes {dimension_semantics = [#tpu.dimension_semantics<arbitrary>], iteration_bounds = array<i64: 3>, scalar_prefetch = 0 : i64, scratch_operands = 0 : i64, tpu.core_type = #tpu.core_type<tc>, window_params = [{transform_indices = @transform_0, window_bounds = array<i64: 32, 512>}, {pipeline_mode = #tpu.pipeline_mode<synchronous>, transform_indices = @transform_1, window_bounds = array<i64: 512, 512>}, {pipeline_mode = #tpu.pipeline_mode<synchronous>, transform_indices = @transform_2, window_bounds = array<i64: 2, 512>}]} {
    %c0_i32 = arith.constant 0 : i32
    %0 = arith.cmpi eq, %arg0, %c0_i32 : i32
    %1 = arith.extui %0 : i1 to i32
    %c0_i32_0 = arith.constant 0 : i32
    %2 = arith.cmpi ne, %1, %c0_i32_0 : i32
    scf.if %2 {
      %cst_11 = arith.constant 0.000000e+00 : f32
      %18 = vector.broadcast %cst_11 : f32 to vector<2x512xf32>
      %c0_12 = arith.constant 0 : index
      %c0_13 = arith.constant 0 : index
      %19 = vector.load %arg3[%c0_12, %c0_13] : memref<2x512xf32, #tpu.memory_space<vmem>>, vector<2x512xf32>
      tpu.vector_store %arg3[%c0_12, %c0_13], %18 {strides = array<i32>} : memref<2x512xf32, #tpu.memory_space<vmem>>, vector<2x512xf32>,
    } else {
    }
    %c0 = arith.constant 0 : index
    %c0_1 = arith.constant 0 : index
    %3 = vector.load %arg1[%c0, %c0_1] : memref<32x512xbf16, #tpu.memory_space<vmem>>, vector<32x512xbf16>
    %c0_2 = arith.constant 0 : index
    %c0_3 = arith.constant 0 : index
    %4 = vector.load %arg2[%c0_2, %c0_3] : memref<512x512xbf16, #tpu.memory_space<vmem>>, vector<512x512xbf16>
    %cst = arith.constant dense<0.000000e+00> : vector<32x512xf32>
    %5 = tpu.matmul %3, %4, %cst {dimension_numbers = #tpu.dot_dimension_numbers<[1], [0], [0], [1], [0, 0, 1, 1], [], []>} : vector<32x512xbf16>, vector<512x512xbf16>, vector<32x512xf32> -> vector<32x512xf32>
    %cst_4 = arith.constant dense<0.000000e+00> : vector<512xf32>
    %6 = vector.multi_reduction <add>, %5, %cst_4 [0] : vector<32x512xf32> to vector<512xf32>
    %7 = vector.shape_cast %6 : vector<512xf32> to vector<1x512xf32>
    %8 = arith.mulf %5, %5 : vector<32x512xf32>
    %cst_5 = arith.constant dense<0.000000e+00> : vector<512xf32>
    %9 = vector.multi_reduction <add>, %8, %cst_5 [0] : vector<32x512xf32> to vector<512xf32>
    %10 = vector.shape_cast %9 : vector<512xf32> to vector<1x512xf32>
    %c0_6 = arith.constant 0 : index
    %c0_7 = arith.constant 0 : index
    %11 = vector.load %arg3[%c0_6, %c0_7] : memref<2x512xf32, #tpu.memory_space<vmem>>, vector<2x512xf32>
    %12 = tpu.concatenate %7, %10 in 0 : vector<1x512xf32>, vector<1x512xf32> -> vector<2x512xf32>
    %13 = arith.addf %11, %12 : vector<2x512xf32>
    %c0_8 = arith.constant 0 : index
    %c0_9 = arith.constant 0 : index
    %14 = vector.load %arg3[%c0_8, %c0_9] : memref<2x512xf32, #tpu.memory_space<vmem>>, vector<2x512xf32>
    tpu.vector_store %arg3[%c0_8, %c0_9], %13 {strides = array<i32>} : memref<2x512xf32, #tpu.memory_space<vmem>>, vector<2x512xf32>,
    %c2_i32 = arith.constant 2 : i32
    %15 = arith.cmpi eq, %arg0, %c2_i32 : i32
    %16 = arith.extui %15 : i1 to i32
    %c0_i32_10 = arith.constant 0 : i32
    %17 = arith.cmpi ne, %16, %c0_i32_10 : i32
    scf.if %17 {
      %c0_11 = arith.constant 0 : index
      %c0_12 = arith.constant 0 : index
      %18 = vector.load %arg3[%c0_11, %c0_12] : memref<2x512xf32, #tpu.memory_space<vmem>>, vector<1x512xf32>
      %cst_13 = arith.constant 0.013888889 : f32
      %19 = vector.broadcast %cst_13 : f32 to vector<1x512xf32>
      %20 = arith.mulf %18, %19 : vector<1x512xf32>
      %c1 = arith.constant 1 : index
      %c0_14 = arith.constant 0 : index
      %21 = vector.load %arg3[%c1, %c0_14] : memref<2x512xf32, #tpu.memory_space<vmem>>, vector<1x512xf32>
      %cst_15 = arith.constant 0.013888889 : f32
      %22 = vector.broadcast %cst_15 : f32 to vector<1x512xf32>
      %23 = arith.mulf %21, %22 : vector<1x512xf32>
      %24 = arith.mulf %20, %20 : vector<1x512xf32>
      %25 = arith.subf %23, %24 : vector<1x512xf32>
      %cst_16 = arith.constant 0.000000e+00 : f32
      %26 = vector.broadcast %cst_16 : f32 to vector<1x512xf32>
      %27 = arith.maximumf %25, %26 : vector<1x512xf32>
      %cst_17 = arith.constant 9.99999974E-6 : f32
      %28 = vector.broadcast %cst_17 : f32 to vector<1x512xf32>
      %29 = arith.addf %27, %28 : vector<1x512xf32>
      %30 = math.rsqrt %29 : vector<1x512xf32>
      %cst_18 = arith.constant 0.000000e+00 : f32
      %31 = vector.broadcast %cst_18 : f32 to vector<1x512xf32>
      %32 = arith.subf %31, %20 : vector<1x512xf32>
      %33 = arith.mulf %32, %30 : vector<1x512xf32>
      %34 = tpu.concatenate %30, %33 in 0 : vector<1x512xf32>, vector<1x512xf32> -> vector<2x512xf32>
      %c0_19 = arith.constant 0 : index
      %c0_20 = arith.constant 0 : index
      %35 = vector.load %arg3[%c0_19, %c0_20] : memref<2x512xf32, #tpu.memory_space<vmem>>, vector<2x512xf32>
      tpu.vector_store %arg3[%c0_19, %c0_20], %34 {strides = array<i32>} : memref<2x512xf32, #tpu.memory_space<vmem>>, vector<2x512xf32>,
    } else {
    }
    return
  }
  func.func @transform_0(%arg0: i32) -> (i32, i32) {
    %c0_i32 = arith.constant 0 : i32
    %c0_i32_0 = arith.constant 0 : i32
    return %arg0, %c0_i32 : i32, i32
  }
  func.func @transform_1(%arg0: i32) -> (i32, i32) {
    %c0_i32 = arith.constant 0 : i32
    %c0_i32_0 = arith.constant 0 : i32
    %c0_i32_1 = arith.constant 0 : i32
    return %c0_i32, %c0_i32_0 : i32, i32
  }
  func.func @transform_2(%arg0: i32) -> (i32, i32) {
    %c0_i32 = arith.constant 0 : i32
    %c0_i32_0 = arith.constant 0 : i32
    %c0_i32_1 = arith.constant 0 : i32
    return %c0_i32, %c0_i32_0 : i32, i32
  }
}

module attributes {stable_mosaic.version = 11 : i64} {
  func.func @_heads_kernel(%arg0: i32, %arg1: memref<2x512xf32, #tpu.memory_space<vmem>>, %arg2: memref<32x512xbf16, #tpu.memory_space<vmem>>, %arg3: memref<512x512xbf16, #tpu.memory_space<vmem>>, %arg4: memref<512x384xbf16, #tpu.memory_space<vmem>>, %arg5: memref<1x384xf32, #tpu.memory_space<vmem>>, %arg6: memref<32x384xf32, #tpu.memory_space<vmem>>) attributes {dimension_semantics = [#tpu.dimension_semantics<parallel>], iteration_bounds = array<i64: 3>, scalar_prefetch = 0 : i64, scratch_operands = 0 : i64, tpu.core_type = #tpu.core_type<tc>, window_params = [{pipeline_mode = #tpu.pipeline_mode<synchronous>, transform_indices = @transform_0, window_bounds = array<i64: 2, 512>}, {transform_indices = @transform_1, window_bounds = array<i64: 32, 512>}, {pipeline_mode = #tpu.pipeline_mode<synchronous>, transform_indices = @transform_2, window_bounds = array<i64: 512, 512>}, {pipeline_mode = #tpu.pipeline_mode<synchronous>, transform_indices = @transform_3, window_bounds = array<i64: 512, 384>}, {pipeline_mode = #tpu.pipeline_mode<synchronous>, transform_indices = @transform_4, window_bounds = array<i64: 1, 384>}, {transform_indices = @transform_5, window_bounds = array<i64: 32, 384>}]} {
    %c0 = arith.constant 0 : index
    %c0_0 = arith.constant 0 : index
    %0 = vector.load %arg2[%c0, %c0_0] : memref<32x512xbf16, #tpu.memory_space<vmem>>, vector<32x512xbf16>
    %c0_1 = arith.constant 0 : index
    %c0_2 = arith.constant 0 : index
    %1 = vector.load %arg3[%c0_1, %c0_2] : memref<512x512xbf16, #tpu.memory_space<vmem>>, vector<512x512xbf16>
    %cst = arith.constant dense<0.000000e+00> : vector<32x512xf32>
    %2 = tpu.matmul %0, %1, %cst {dimension_numbers = #tpu.dot_dimension_numbers<[1], [0], [0], [1], [0, 0, 1, 1], [], []>} : vector<32x512xbf16>, vector<512x512xbf16>, vector<32x512xf32> -> vector<32x512xf32>
    %c0_3 = arith.constant 0 : index
    %c0_4 = arith.constant 0 : index
    %3 = vector.load %arg1[%c0_3, %c0_4] : memref<2x512xf32, #tpu.memory_space<vmem>>, vector<1x512xf32>
    %c1 = arith.constant 1 : index
    %c0_5 = arith.constant 0 : index
    %4 = vector.load %arg1[%c1, %c0_5] : memref<2x512xf32, #tpu.memory_space<vmem>>, vector<1x512xf32>
    %5 = vector.broadcast %3 : vector<1x512xf32> to vector<32x512xf32>
    %6 = arith.mulf %2, %5 : vector<32x512xf32>
    %7 = vector.broadcast %4 : vector<1x512xf32> to vector<32x512xf32>
    %8 = arith.addf %6, %7 : vector<32x512xf32>
    %cst_6 = arith.constant 0.000000e+00 : f32
    %9 = vector.broadcast %cst_6 : f32 to vector<32x512xf32>
    %10 = arith.maximumf %8, %9 : vector<32x512xf32>
    %11 = arith.truncf %10 : vector<32x512xf32> to vector<32x512xbf16>
    %c0_7 = arith.constant 0 : index
    %c0_8 = arith.constant 0 : index
    %12 = vector.load %arg4[%c0_7, %c0_8] : memref<512x384xbf16, #tpu.memory_space<vmem>>, vector<512x384xbf16>
    %cst_9 = arith.constant dense<0.000000e+00> : vector<32x384xf32>
    %13 = tpu.matmul %11, %12, %cst_9 {dimension_numbers = #tpu.dot_dimension_numbers<[1], [0], [0], [1], [0, 0, 1, 1], [], []>} : vector<32x512xbf16>, vector<512x384xbf16>, vector<32x384xf32> -> vector<32x384xf32>
    %c0_10 = arith.constant 0 : index
    %c0_11 = arith.constant 0 : index
    %14 = vector.load %arg5[%c0_10, %c0_11] : memref<1x384xf32, #tpu.memory_space<vmem>>, vector<1x384xf32>
    %15 = vector.broadcast %14 : vector<1x384xf32> to vector<32x384xf32>
    %16 = arith.addf %13, %15 : vector<32x384xf32>
    %c0_12 = arith.constant 0 : index
    %c0_13 = arith.constant 0 : index
    %17 = vector.load %arg6[%c0_12, %c0_13] : memref<32x384xf32, #tpu.memory_space<vmem>>, vector<32x384xf32>
    tpu.vector_store %arg6[%c0_12, %c0_13], %16 {strides = array<i32>} : memref<32x384xf32, #tpu.memory_space<vmem>>, vector<32x384xf32>,
    return
  }
  func.func @transform_0(%arg0: i32) -> (i32, i32) {
    %c0_i32 = arith.constant 0 : i32
    %c0_i32_0 = arith.constant 0 : i32
    %c0_i32_1 = arith.constant 0 : i32
    return %c0_i32, %c0_i32_0 : i32, i32
  }
  func.func @transform_1(%arg0: i32) -> (i32, i32) {
    %c0_i32 = arith.constant 0 : i32
    %c0_i32_0 = arith.constant 0 : i32
    return %arg0, %c0_i32 : i32, i32
  }
  func.func @transform_2(%arg0: i32) -> (i32, i32) {
    %c0_i32 = arith.constant 0 : i32
    %c0_i32_0 = arith.constant 0 : i32
    %c0_i32_1 = arith.constant 0 : i32
    return %c0_i32, %c0_i32_0 : i32, i32
  }
  func.func @transform_3(%arg0: i32) -> (i32, i32) {
    %c0_i32 = arith.constant 0 : i32
    %c0_i32_0 = arith.constant 0 : i32
    %c0_i32_1 = arith.constant 0 : i32
    return %c0_i32, %c0_i32_0 : i32, i32
  }
  func.func @transform_4(%arg0: i32) -> (i32, i32) {
    %c0_i32 = arith.constant 0 : i32
    %c0_i32_0 = arith.constant 0 : i32
    %c0_i32_1 = arith.constant 0 : i32
    return %c0_i32, %c0_i32_0 : i32, i32
  }
  func.func @transform_5(%arg0: i32) -> (i32, i32) {
    %c0_i32 = arith.constant 0 : i32
    %c0_i32_0 = arith.constant 0 : i32
    return %arg0, %c0_i32 : i32, i32
  }
}

</mosaic_0001>

<llo_original>
// kernel: pose_classifier_forward.2
$region0: #{pose_classifier_forward.2}
  #allocation0 [shape = 'u32[]', space=smem, size = 0x4, offset = 0x4, fixed_abs, tag = 'smem constant byte address 0x4 - core index']
  #allocation1 [shape = 'u32[72,128]{1,0:T(1,128)}', space=vmem, size = 0x9000, scoped, tag = 'internal scratch']
  %s0 = inlined_call_operand.vmem [shape: bf16[96,512], index: 0, kind: input, shape index: {}]
  %s1 = inlined_call_operand.vmem [shape: bf16[512,512], index: 1, kind: input, shape index: {}]
  %s2 = inlined_call_operand.vmem [shape: f32[2,512], index: 2, kind: output, shape index: {}]
  %s3 = sld [smem:[#allocation0]]
  $region49: #{pose_classifier_forward.2} parent=0
    _
  %s5 = ssub.s32 1, %s3
  %s6 = scalar_select 0, %s5, %s3
  loop: start=0, step=1, limit=5
  $region2: #{pose_classifier_forward.2} parent=0 // loop_pre_header
    _
  $region3: #{pose_classifier_forward.2} parent=0 // loop_header
    %s8 = sphi 0, %s12
    %p9 = scmp.ge.s32.totalorder %s8, 5
    %s18 = sphi 0, %s20
    %s21 = sphi 0, %s18
    %s22 = sphi 0, %s21
    %s38 = sphi 0, %s22
    %s42 = sphi 0, %s42
    %s44 = sphi 0, %s42
    %s45 = sphi 0, %s44
    %s59 = sphi 0, %s45
    %s63 = sphi 0, %s63
    %s65 = sphi 0, %s63
    %s66 = sphi 0, %s65
    %s80 = sphi 0, %s66
  $region4: #{pose_classifier_forward.2} parent=0 // loop_header_branch
    %11 = sbr.rel (%p9) target = $region8
  $region5: #{pose_classifier_forward.2} parent=0 // loop_body
    %s13 = ssub.s32 %s8, 1
    %s14 = ssub.s32 %s8, 2
    %s15 = sadd.s32 %s8, 1
    %s16 = ssub.s32 %s8, %s15
    %p17 = scmp.eq.s32.totalorder %s16, 0
    %s19 = sadd.s32 %s18, 1
    %s20 = scalar_select %p17, %s18, %s19
    %p23 = pneg %p17
    %p24 = scmp.eq.s32.totalorder %s8, 2
    %p25 = por %p23, %p24
    %p26 = scmp.ne.s32.totalorder %s18, %s21
    %p27 = scmp.eq.s32.totalorder %s8, 0
    %p28 = por %p26, %p27
    %p29 = scmp.ne.s32.totalorder %s18, %s21
    %p30 = scmp.eq.s32.totalorder %s13, 2
    %p31 = por %p29, %p30
    %p32 = scmp.ne.s32.totalorder %s21, %s22
    %p33 = scmp.eq.s32.totalorder %s13, 0
    %p34 = por %p32, %p33
    %p35 = scmp.ne.s32.totalorder %s21, %s22
    %p36 = scmp.eq.s32.totalorder %s14, 2
    %p37 = por %p35, %p36
    %p39 = scmp.ne.s32.totalorder %s22, %s38
    %p40 = scmp.eq.s32.totalorder %s14, 0
    %p41 = por %p39, %p40
    %s43 = sadd.s32 %s42, 1
    %p46 = scmp.eq.s32.totalorder %s8, 2
    %p47 = scmp.ne.s32.totalorder %s42, %s44
    %p48 = scmp.eq.s32.totalorder %s8, 0
    %p49 = por %p47, %p48
    %p50 = scmp.ne.s32.totalorder %s42, %s44
    %p51 = scmp.eq.s32.totalorder %s13, 2
    %p52 = por %p50, %p51
    %p53 = scmp.ne.s32.totalorder %s44, %s45
    %p54 = scmp.eq.s32.totalorder %s13, 0
    %p55 = por %p53, %p54
    %p56 = scmp.ne.s32.totalorder %s44, %s45
    %p57 = scmp.eq.s32.totalorder %s14, 2
    %p58 = por %p56, %p57
    %p60 = scmp.ne.s32.totalorder %s45, %s59
    %p61 = scmp.eq.s32.totalorder %s14, 0
    %p62 = por %p60, %p61
    %s64 = sadd.s32 %s63, 1
    %p67 = scmp.eq.s32.totalorder %s8, 2
    %p68 = scmp.ne.s32.totalorder %s63, %s65
    %p69 = scmp.eq.s32.totalorder %s8, 0
    %p70 = por %p68, %p69
    %p71 = scmp.ne.s32.totalorder %s63, %s65
    %p72 = scmp.eq.s32.totalorder %s13, 2
    %p73 = por %p71, %p72
    %p74 = scmp.ne.s32.totalorder %s65, %s66
    %p75 = scmp.eq.s32.totalorder %s13, 0
    %p76 = por %p74, %p75
    %p77 = scmp.ne.s32.totalorder %s65, %s66
    %p78 = scmp.eq.s32.totalorder %s14, 2
    %p79 = por %p77, %p78
    %p81 = scmp.ne.s32.totalorder %s66, %s80
    %p82 = scmp.eq.s32.totalorder %s14, 0
    %p83 = por %p81, %p82
    %p84 = scmp.le.s32.totalorder 1, %s8
    %p85 = scmp.lt.s32.totalorder %s8, 4
    %p86 = pnand %p84, %p85
    %p87 = pneg %p86
    // Predicated region
    $region9: #{pose_classifier_forward.2} parent=5 // pred_check
      _
    $region10: #{pose_classifier_forward.2} parent=5 // pred_check_branch
      %89 = sbr.rel (%p86) target = $region12
    $region11: #{pose_classifier_forward.2} parent=5 // pred_region
      %s90 = ssub.s32 %s8, 1
      // Predicated region
      $region13: #{pose_classifier_forward.2} parent=11 // pred_check
        %p91 = pneg %p55
      $region14: #{pose_classifier_forward.2} parent=11 // pred_check_branch
        %93 = sbr.rel (%p91) target = $region16
      $region15: #{pose_classifier_forward.2} parent=11 // pred_region
        _
      $region16: #{pose_classifier_forward.2} parent=11 // pred_fallthru
        _
    $region12: #{pose_classifier_forward.2} parent=5 // pred_fallthru
      _
    %p94 = scmp.lt.s32.totalorder %s8, 3
    // Predicated region
    $region17: #{pose_classifier_forward.2} parent=5 // pred_check
      %p95 = pneg %p94
    $region18: #{pose_classifier_forward.2} parent=5 // pred_check_branch
      %97 = sbr.rel (%p95) target = $region20
    $region19: #{pose_classifier_forward.2} parent=5 // pred_region
      // Predicated region
      $region21: #{pose_classifier_forward.2} parent=19 // pred_check
        %p98 = pneg %p28
      $region22: #{pose_classifier_forward.2} parent=19 // pred_check_branch
        %100 = sbr.rel (%p98) target = $region24
      $region23: #{pose_classifier_forward.2} parent=19 // pred_region
        %s101 = smul.u32 4, %s8
        %p102 = scmp.lt.s32.totalorder %s101, 11
        %s103 = scalar_select %p102, %s101, 11
        %s104 = smul.addr %s103, 4
        %s105 = smul.addr %s104, 4
        %s106 = scalar_lea.vmem %s0, %s105
        %s107 = smul.u32 4, %s8
      $region24: #{pose_classifier_forward.2} parent=19 // pred_fallthru
        _
    $region20: #{pose_classifier_forward.2} parent=5 // pred_fallthru
      _
    %p108 = scmp.le.s32.totalorder 1, %s8
    %p109 = scmp.lt.s32.totalorder %s8, 4
    %p110 = pnand %p108, %p109
    %p111 = pneg %p110
    // Predicated region
    $region25: #{pose_classifier_forward.2} parent=5 // pred_check
      _
    $region26: #{pose_classifier_forward.2} parent=5 // pred_check_branch
      %113 = sbr.rel (%p110) target = $region28
    $region27: #{pose_classifier_forward.2} parent=5 // pred_region
      %s114 = ssub.s32 %s8, 1
      %s115 = smul.u32 4, %s13
      %p116 = scmp.lt.s32.totalorder %s115, 11
      %s117 = scalar_select %p116, %s115, 11
      %s118 = smul.addr %s117, 4
      %s119 = smul.addr %s118, 4
      %s120 = scalar_lea.vmem %s0, %s119
      %p121 = pneg %p34
      %p122 = pneg %p31
      %p123 = pneg %p55
      %p124 = pneg %p52
      %p125 = pneg %p76
      %p126 = pneg %p73
      %s127 = smul.u32 4, %s13
      %p128 = scmp.lt.s32.totalorder %s127, 11
      %s129 = scalar_select %p128, %s127, 11
      %s130 = smul.addr %s129, 4
      %s131 = smul.addr %s130, 4
      %s132 = scalar_lea.vmem %s0, %s131
      %s133 = smul.u32 4, %s13
      %p134 = scmp.eq.s32.totalorder %s13, 0
      // Predicated region
      $region29: #{pose_classifier_forward.2} parent=27 // pred_check
        %p135 = pneg %p134
      $region30: #{pose_classifier_forward.2} parent=27 // pred_check_branch
        %137 = sbr.rel (%p135) target = $region32
      $region31: #{pose_classifier_forward.2} parent=27 // pred_region
        %138 = vst [vmem:[%s2] sm:$0xff] 0.0
      $region32: #{pose_classifier_forward.2} parent=27 // pred_fallthru
        _
      %v139 = vld [vmem:[%s132] sm:$0xff]
      %v140 = vld [vmem:[%s132 + $0x8] sm:$0xff]
      %v141 = vld [vmem:[%s132 + $0x10] sm:$0xff]
      %v142 = vld [vmem:[%s132 + $0x18] sm:$0xff]
      %v143 = vld [vmem:[%s132 + $0x20] sm:$0xff]
      %v144 = vld [vmem:[%s132 + $0x28] sm:$0xff]
      %v145 = vld [vmem:[%s132 + $0x30] sm:$0xff]
      %v146 = vld [vmem:[%s132 + $0x38] sm:$0xff]
      %v147 = vld [vmem:[%s1] sm:$0xff]
      %v148 = vld [vmem:[%s1 + $0x8] sm:$0xff]
      %v149 = vld [vmem:[%s1 + $0x10] sm:$0xff]
      %v150 = vld [vmem:[%s1 + $0x18] sm:$0xff]
      %v151 = vld [vmem:[%s1 + $0x20] sm:$0xff]
      %v152 = vld [vmem:[%s1 + $0x28] sm:$0xff]
      %v153 = vld [vmem:[%s1 + $0x30] sm:$0xff]
      %v154 = vld [vmem:[%s1 + $0x38] sm:$0xff]
      %v155 = vld [vmem:[%s1 + $0x40] sm:$0xff]
      %v156 = vld [vmem:[%s1 + $0x48] sm:$0xff]
      %v157 = vld [vmem:[%s1 + $0x50] sm:$0xff]
      %v158 = vld [vmem:[%s1 + $0x58] sm:$0xff]
      %v159 = vld [vmem:[%s1 + $0x60] sm:$0xff]
      %v160 = vld [vmem:[%s1 + $0x68] sm:$0xff]
      %v161 = vld [vmem:[%s1 + $0x70] sm:$0xff]
      %v162 = vld [vmem:[%s1 + $0x78] sm:$0xff]
      %v163 = vld [vmem:[%s1 + $0x80] sm:$0xff]
      %v164 = vld [vmem:[%s1 + $0x88] sm:$0xff]
      %v165 = vld [vmem:[%s1 + $0x90] sm:$0xff]
      %v166 = vld [vmem:[%s1 + $0x98] sm:$0xff]
      %v167 = vld [vmem:[%s1 + $0xa0] sm:$0xff]
      %v168 = vld [vmem:[%s1 + $0xa8] sm:$0xff]
      %v169 = vld [vmem:[%s1 + $0xb0] sm:$0xff]
      %v170 = vld [vmem:[%s1 + $0xb8] sm:$0xff]
      %v171 = vld [vmem:[%s1 + $0xc0] sm:$0xff]
      %v172 = vld [vmem:[%s1 + $0xc8] sm:$0xff]
      %v173 = vld [vmem:[%s1 + $0xd0] sm:$0xff]
      %v174 = vld [vmem:[%s1 + $0xd8] sm:$0xff]
      %v175 = vld [vmem:[%s1 + $0xe0] sm:$0xff]
      %v176 = vld [vmem:[%s1 + $0xe8] sm:$0xff]
      %v177 = vld [vmem:[%s1 + $0xf0] sm:$0xff]
      %v178 = vld [vmem:[%s1 + $0xf8] sm:$0xff]
      %v179 = vld [vmem:[%s1 + $0x100] sm:$0xff]
      %v180 = vld [vmem:[%s1 + $0x108] sm:$0xff]
      %v181 = vld [vmem:[%s1 + $0x110] sm:$0xff]
      %v182 = vld [vmem:[%s1 + $0x118] sm:$0xff]
      %v183 = vld [vmem:[%s1 + $0x120] sm:$0xff]
      %v184 = vld [vmem:[%s1 + $0x128] sm:$0xff]
      %v185 = vld [vmem:[%s1 + $0x130] sm:$0xff]
      %v186 = vld [vmem:[%s1 + $0x138] sm:$0xff]
      %v187 = vld [vmem:[%s1 + $0x140] sm:$0xff]
      %v188 = vld [vmem:[%s1 + $0x148] sm:$0xff]
      %v189 = vld [vmem:[%s1 + $0x150] sm:$0xff]
      %v190 = vld [vmem:[%s1 + $0x158] sm:$0xff]
      %v191 = vld [vmem:[%s1 + $0x160] sm:$0xff]
      %v192 = vld [vmem:[%s1 + $0x168] sm:$0xff]
      %v193 = vld [vmem:[%s1 + $0x170] sm:$0xff]
      %v194 = vld [vmem:[%s1 + $0x178] sm:$0xff]
      %v195 = vld [vmem:[%s1 + $0x180] sm:$0xff]
      %v196 = vld [vmem:[%s1 + $0x188] sm:$0xff]
      %v197 = vld [vmem:[%s1 + $0x190] sm:$0xff]
      %v198 = vld [vmem:[%s1 + $0x198] sm:$0xff]
      %v199 = vld [vmem:[%s1 + $0x1a0] sm:$0xff]
      %v200 = vld [vmem:[%s1 + $0x1a8] sm:$0xff]
      %v201 = vld [vmem:[%s1 + $0x1b0] sm:$0xff]
      %v202 = vld [vmem:[%s1 + $0x1b8] sm:$0xff]
      %v203 = vld [vmem:[%s1 + $0x1c0] sm:$0xff]
      %v204 = vld [vmem:[%s1 + $0x1c8] sm:$0xff]
      %v205 = vld [vmem:[%s1 + $0x1d0] sm:$0xff]
      %v206 = vld [vmem:[%s1 + $0x1d8] sm:$0xff]
      %v207 = vld [vmem:[%s1 + $0x1e0] sm:$0xff]
      %v208 = vld [vmem:[%s1 + $0x1e8] sm:$0xff]
      %v209 = vld [vmem:[%s1 + $0x1f0] sm:$0xff]
      %v210 = vld [vmem:[%s1 + $0x1f8] sm:$0xff]
      %v211 = vld [vmem:[%s1 + $0x200] sm:$0xff]
      %v212 = vld [vmem:[%s1 + $0x208] sm:$0xff]
      %v213 = vld [vmem:[%s1 + $0x210] sm:$0xff]
      %v214 = vld [vmem:[%s1 + $0x218] sm:$0xff]
      %v215 = vld [vmem:[%s1 + $0x220] sm:$0xff]
      %v216 = vld [vmem:[%s1 + $0x228] sm:$0xff]
      %v217 = vld [vmem:[%s1 + $0x230] sm:$0xff]
      %v218 = vld [vmem:[%s1 + $0x238] sm:$0xff]
      %v219 = vld [vmem:[%s1 + $0x240] sm:$0xff]
      %v220 = vld [vmem:[%s1 + $0x248] sm:$0xff]
      %v221 = vld [vmem:[%s1 + $0x250] sm:$0xff]
      %v222 = vld [vmem:[%s1 + $0x258] sm:$0xff]
      %v223 = vld [vmem:[%s1 + $0x260] sm:$0xff]
      %v224 = vld [vmem:[%s1 + $0x268] sm:$0xff]
      %v225 = vld [vmem:[%s1 + $0x270] sm:$0xff]
      %v226 = vld [vmem:[%s1 + $0x278] sm:$0xff]
      %v227 = vld [vmem:[%s1 + $0x280] sm:$0xff]
      %v228 = vld [vmem:[%s1 + $0x288] sm:$0xff]
      %v229 = vld [vmem:[%s1 + $0x290] sm:$0xff]
      %v230 = vld [vmem:[%s1 + $0x298] sm:$0xff]
      %v231 = vld [vmem:[%s1 + $0x2a0] sm:$0xff]
      %v232 = vld [vmem:[%s1 + $0x2a8] sm:$0xff]
      %v233 = vld [vmem:[%s1 + $0x2b0] sm:$0xff]
      %v234 = vld [vmem:[%s1 + $0x2b8] sm:$0xff]
      %v235 = vld [vmem:[%s1 + $0x2c0] sm:$0xff]
      %v236 = vld [vmem:[%s1 + $0x2c8] sm:$0xff]
      %v237 = vld [vmem:[%s1 + $0x2d0] sm:$0xff]
      %v238 = vld [vmem:[%s1 + $0x2d8] sm:$0xff]
      %v239 = vld [vmem:[%s1 + $0x2e0] sm:$0xff]
      %v240 = vld [vmem:[%s1 + $0x2e8] sm:$0xff]
      %v241 = vld [vmem:[%s1 + $0x2f0] sm:$0xff]
      %v242 = vld [vmem:[%s1 + $0x2f8] sm:$0xff]
      %v243 = vld [vmem:[%s1 + $0x300] sm:$0xff]
      %v244 = vld [vmem:[%s1 + $0x308] sm:$0xff]
      %v245 = vld [vmem:[%s1 + $0x310] sm:$0xff]
      %v246 = vld [vmem:[%s1 + $0x318] sm:$0xff]
      %v247 = vld [vmem:[%s1 + $0x320] sm:$0xff]
      %v248 = vld [vmem:[%s1 + $0x328] sm:$0xff]
      %v249 = vld [vmem:[%s1 + $0x330] sm:$0xff]
      %v250 = vld [vmem:[%s1 + $0x338] sm:$0xff]
      %v251 = vld [vmem:[%s1 + $0x340] sm:$0xff]
      %v252 = vld [vmem:[%s1 + $0x348] sm:$0xff]
      %v253 = vld [vmem:[%s1 + $0x350] sm:$0xff]
      %v254 = vld [vmem:[%s1 + $0x358] sm:$0xff]
      %v255 = vld [vmem:[%s1 + $0x360] sm:$0xff]
      %v256 = vld [vmem:[%s1 + $0x368] sm:$0xff]
      %v257 = vld [vmem:[%s1 + $0x370] sm:$0xff]
      %v258 = vld [vmem:[%s1 + $0x378] sm:$0xff]
      %v259 = vld [vmem:[%s1 + $0x380] sm:$0xff]
      %v260 = vld [vmem:[%s1 + $0x388] sm:$0xff]
      %v261 = vld [vmem:[%s1 + $0x390] sm:$0xff]
      %v262 = vld [vmem:[%s1 + $0x398] sm:$0xff]
      %v263 = vld [vmem:[%s1 + $0x3a0] sm:$0xff]
      %v264 = vld [vmem:[%s1 + $0x3a8] sm:$0xff]
      %v265 = vld [vmem:[%s1 + $0x3b0] sm:$0xff]
      %v266 = vld [vmem:[%s1 + $0x3b8] sm:$0xff]
      %v267 = vld [vmem:[%s1 + $0x3c0] sm:$0xff]
      %v268 = vld [vmem:[%s1 + $0x3c8] sm:$0xff]
      %v269 = vld [vmem:[%s1 + $0x3d0] sm:$0xff]
      %v270 = vld [vmem:[%s1 + $0x3d8] sm:$0xff]
      %v271 = vld [vmem:[%s1 + $0x3e0] sm:$0xff]
      %v272 = vld [vmem:[%s1 + $0x3e8] sm:$0xff]
      %v273 = vld [vmem:[%s1 + $0x3f0] sm:$0xff]
      %v274 = vld [vmem:[%s1 + $0x3f8] sm:$0xff]
      %v283 = vunpack.c.l.b16 %v139
      %v284 = vunpack.c.h.b16 %v139
      %v285 = vunpack.c.l.b16 %v140
      %v286 = vunpack.c.h.b16 %v140
      %v287 = vunpack.c.l.b16 %v141
      %v288 = vunpack.c.h.b16 %v141
      %v289 = vunpack.c.l.b16 %v142
      %v290 = vunpack.c.h.b16 %v142
      %v291 = vunpack.c.l.b16 %v143
      %v292 = vunpack.c.h.b16 %v143
      %v293 = vunpack.c.l.b16 %v144
      %v294 = vunpack.c.h.b16 %v144
      %v295 = vunpack.c.l.b16 %v145
      %v296 = vunpack.c.h.b16 %v145
      %v297 = vunpack.c.l.b16 %v146
      %v298 = vunpack.c.h.b16 %v146
      %v299 = vpack.c.b16 %v287, %v283
      %v300 = vpack.c.b16 %v288, %v284
      %v301 = vpack.c.b16 %v289, %v285
      %v302 = vpack.c.b16 %v290, %v286
      %v303 = vpack.c.b16 %v295, %v291
      %v304 = vpack.c.b16 %v296, %v292
      %v305 = vpack.c.b16 %v297, %v293
      %v306 = vpack.c.b16 %v298, %v294
      %v443 = vunpack.c.l.b16 %v147
      %v444 = vunpack.c.h.b16 %v147
      %v445 = vunpack.c.l.b16 %v148
      %v446 = vunpack.c.h.b16 %v148
      %v447 = vunpack.c.l.b16 %v149
      %v448 = vunpack.c.h.b16 %v149
      %v449 = vunpack.c.l.b16 %v150
      %v450 = vunpack.c.h.b16 %v150
      %v451 = vunpack.c.l.b16 %v151
      %v452 = vunpack.c.h.b16 %v151
      %v453 = vunpack.c.l.b16 %v152
      %v454 = vunpack.c.h.b16 %v152
      %v455 = vunpack.c.l.b16 %v153
      %v456 = vunpack.c.h.b16 %v153
      %v457 = vunpack.c.l.b16 %v154
      %v458 = vunpack.c.h.b16 %v154
      %v459 = vunpack.c.l.b16 %v155
      %v460 = vunpack.c.h.b16 %v155
      %v461 = vunpack.c.l.b16 %v156
      %v462 = vunpack.c.h.b16 %v156
      %v463 = vunpack.c.l.b16 %v157
      %v464 = vunpack.c.h.b16 %v157
      %v465 = vunpack.c.l.b16 %v158
      %v466 = vunpack.c.h.b16 %v158
      %v467 = vunpack.c.l.b16 %v159
      %v468 = vunpack.c.h.b16 %v159
      %v469 = vunpack.c.l.b16 %v160
      %v470 = vunpack.c.h.b16 %v160
      %v471 = vunpack.c.l.b16 %v161
      %v472 = vunpack.c.h.b16 %v161
      %v473 = vunpack.c.l.b16 %v162
      %v474 = vunpack.c.h.b16 %v162
      %v475 = vunpack.c.l.b16 %v163
      %v476 = vunpack.c.h.b16 %v163
      %v477 = vunpack.c.l.b16 %v164
      %v478 = vunpack.c.h.b16 %v164
      %v479 = vunpack.c.l.b16 %v165
      %v480 = vunpack.c.h.b16 %v165
      %v481 = vunpack.c.l.b16 %v166
      %v482 = vunpack.c.h.b16 %v166
      %v483 = vunpack.c.l.b16 %v167
      %v484 = vunpack.c.h.b16 %v167
      %v485 = vunpack.c.l.b16 %v168
      %v486 = vunpack.c.h.b16 %v168
      %v487 = vunpack.c.l.b16 %v169
      %v488 = vunpack.c.h.b16 %v169
      %v489 = vunpack.c.l.b16 %v170
      %v490 = vunpack.c.h.b16 %v170
      %v491 = vunpack.c.l.b16 %v171
      %v492 = vunpack.c.h.b16 %v171
      %v493 = vunpack.c.l.b16 %v172
      %v494 = vunpack.c.h.b16 %v172
      %v495 = vunpack.c.l.b16 %v173
      %v496 = vunpack.c.h.b16 %v173
      %v497 = vunpack.c.l.b16 %v174
      %v498 = vunpack.c.h.b16 %v174
      %v499 = vunpack.c.l.b16 %v175
      %v500 = vunpack.c.h.b16 %v175
      %v501 = vunpack.c.l.b16 %v176
      %v502 = vunpack.c.h.b16 %v176
      %v503 = vunpack.c.l.b16 %v177
      %v504 = vunpack.c.h.b16 %v177
      %v505 = vunpack.c.l.b16 %v178
      %v506 = vunpack.c.h.b16 %v178
      %v507 = vunpack.c.l.b16 %v179
      %v508 = vunpack.c.h.b16 %v179
      %v509 = vunpack.c.l.b16 %v180
      %v510 = vunpack.c.h.b16 %v180
      %v511 = vunpack.c.l.b16 %v181
      %v512 = vunpack.c.h.b16 %v181
      %v513 = vunpack.c.l.b16 %v182
      %v514 = vunpack.c.h.b16 %v182
      %v515 = vunpack.c.l.b16 %v183
      %v516 = vunpack.c.h.b16 %v183
      %v517 = vunpack.c.l.b16 %v184
      %v518 = vunpack.c.h.b16 %v184
      %v519 = vunpack.c.l.b16 %v185
      %v520 = vunpack.c.h.b16 %v185
      %v521 = vunpack.c.l.b16 %v186
      %v522 = vunpack.c.h.b16 %v186
      %v523 = vunpack.c.l.b16 %v187
      %v524 = vunpack.c.h.b16 %v187
      %v525 = vunpack.c.l.b16 %v188
      %v526 = vunpack.c.h.b16 %v188
      %v527 = vunpack.c.l.b16 %v189
      %v528 = vunpack.c.h.b16 %v189
      %v529 = vunpack.c.l.b16 %v190
      %v530 = vunpack.c.h.b16 %v190
      %v531 = vunpack.c.l.b16 %v191
      %v532 = vunpack.c.h.b16 %v191
      %v533 = vunpack.c.l.b16 %v192
      %v534 = vunpack.c.h.b16 %v192
      %v535 = vunpack.c.l.b16 %v193
      %v536 = vunpack.c.h.b16 %v193
      %v537 = vunpack.c.l.b16 %v194
      %v538 = vunpack.c.h.b16 %v194
      %v539 = vunpack.c.l.b16 %v195
      %v540 = vunpack.c.h.b16 %v195
      %v541 = vunpack.c.l.b16 %v196
      %v542 = vunpack.c.h.b16 %v196
      %v543 = vunpack.c.l.b16 %v197
      %v544 = vunpack.c.h.b16 %v197
      %v545 = vunpack.c.l.b16 %v198
      %v546 = vunpack.c.h.b16 %v198
      %v547 = vunpack.c.l.b16 %v199
      %v548 = vunpack.c.h.b16 %v199
      %v549 = vunpack.c.l.b16 %v200
      %v550 = vunpack.c.h.b16 %v200
      %v551 = vunpack.c.l.b16 %v201
      %v552 = vunpack.c.h.b16 %v201
      %v553 = vunpack.c.l.b16 %v202
      %v554 = vunpack.c.h.b16 %v202
      %v555 = vunpack.c.l.b16 %v203
      %v556 = vunpack.c.h.b16 %v203
      %v557 = vunpack.c.l.b16 %v204
      %v558 = vunpack.c.h.b16 %v204
      %v559 = vunpack.c.l.b16 %v205
      %v560 = vunpack.c.h.b16 %v205
      %v561 = vunpack.c.l.b16 %v206
      %v562 = vunpack.c.h.b16 %v206
      %v563 = vunpack.c.l.b16 %v207
      %v564 = vunpack.c.h.b16 %v207
      %v565 = vunpack.c.l.b16 %v208
      %v566 = vunpack.c.h.b16 %v208
      %v567 = vunpack.c.l.b16 %v209
      %v568 = vunpack.c.h.b16 %v209
      %v569 = vunpack.c.l.b16 %v210
      %v570 = vunpack.c.h.b16 %v210
      %v571 = vunpack.c.l.b16 %v211
      %v572 = vunpack.c.h.b16 %v211
      %v573 = vunpack.c.l.b16 %v212
      %v574 = vunpack.c.h.b16 %v212
      %v575 = vunpack.c.l.b16 %v213
      %v576 = vunpack.c.h.b16 %v213
      %v577 = vunpack.c.l.b16 %v214
      %v578 = vunpack.c.h.b16 %v214
      %v579 = vunpack.c.l.b16 %v215
      %v580 = vunpack.c.h.b16 %v215
      %v581 = vunpack.c.l.b16 %v216
      %v582 = vunpack.c.h.b16 %v216
      %v583 = vunpack.c.l.b16 %v217
      %v584 = vunpack.c.h.b16 %v217
      %v585 = vunpack.c.l.b16 %v218
      %v586 = vunpack.c.h.b16 %v218
      %v587 = vunpack.c.l.b16 %v219
      %v588 = vunpack.c.h.b16 %v219
      %v589 = vunpack.c.l.b16 %v220
      %v590 = vunpack.c.h.b16 %v220
      %v591 = vunpack.c.l.b16 %v221
      %v592 = vunpack.c.h.b16 %v221
      %v593 = vunpack.c.l.b16 %v222
      %v594 = vunpack.c.h.b16 %v222
      %v595 = vunpack.c.l.b16 %v223
      %v596 = vunpack.c.h.b16 %v223
      %v597 = vunpack.c.l.b16 %v224
      %v598 = vunpack.c.h.b16 %v224
      %v599 = vunpack.c.l.b16 %v225
      %v600 = vunpack.c.h.b16 %v225
      %v601 = vunpack.c.l.b16 %v226
      %v602 = vunpack.c.h.b16 %v226
      %v603 = vunpack.c.l.b16 %v227
      %v604 = vunpack.c.h.b16 %v227
      %v605 = vunpack.c.l.b16 %v228
      %v606 = vunpack.c.h.b16 %v228
      %v607 = vunpack.c.l.b16 %v229
      %v608 = vunpack.c.h.b16 %v229
      %v609 = vunpack.c.l.b16 %v230
      %v610 = vunpack.c.h.b16 %v230
      %v611 = vunpack.c.l.b16 %v231
      %v612 = vunpack.c.h.b16 %v231
      %v613 = vunpack.c.l.b16 %v232
      %v614 = vunpack.c.h.b16 %v232
      %v615 = vunpack.c.l.b16 %v233
      %v616 = vunpack.c.h.b16 %v233
      %v617 = vunpack.c.l.b16 %v234
      %v618 = vunpack.c.h.b16 %v234
      %v619 = vunpack.c.l.b16 %v235
      %v620 = vunpack.c.h.b16 %v235
      %v621 = vunpack.c.l.b16 %v236
      %v622 = vunpack.c.h.b16 %v236
      %v623 = vunpack.c.l.b16 %v237
      %v624 = vunpack.c.h.b16 %v237
      %v625 = vunpack.c.l.b16 %v238
      %v626 = vunpack.c.h.b16 %v238
      %v627 = vunpack.c.l.b16 %v239
      %v628 = vunpack.c.h.b16 %v239
      %v629 = vunpack.c.l.b16 %v240
      %v630 = vunpack.c.h.b16 %v240
      %v631 = vunpack.c.l.b16 %v241
      %v632 = vunpack.c.h.b16 %v241
      %v633 = vunpack.c.l.b16 %v242
      %v634 = vunpack.c.h.b16 %v242
      %v635 = vunpack.c.l.b16 %v243
      %v636 = vunpack.c.h.b16 %v243
      %v637 = vunpack.c.l.b16 %v244
      %v638 = vunpack.c.h.b16 %v244
      %v639 = vunpack.c.l.b16 %v245
      %v640 = vunpack.c.h.b16 %v245
      %v641 = vunpack.c.l.b16 %v246
      %v642 = vunpack.c.h.b16 %v246
      %v643 = vunpack.c.l.b16 %v247
      %v644 = vunpack.c.h.b16 %v247
      %v645 = vunpack.c.l.b16 %v248
      %v646 = vunpack.c.h.b16 %v248
      %v647 = vunpack.c.l.b16 %v249
      %v648 = vunpack.c.h.b16 %v249
      %v649 = vunpack.c.l.b16 %v250
      %v650 = vunpack.c.h.b16 %v250
      %v651 = vunpack.c.l.b16 %v251
      %v652 = vunpack.c.h.b16 %v251
      %v653 = vunpack.c.l.b16 %v252
      %v654 = vunpack.c.h.b16 %v252
      %v655 = vunpack.c.l.b16 %v253
      %v656 = vunpack.c.h.b16 %v253
      %v657 = vunpack.c.l.b16 %v254
      %v658 = vunpack.c.h.b16 %v254
      %v659 = vunpack.c.l.b16 %v255
      %v660 = vunpack.c.h.b16 %v255
      %v661 = vunpack.c.l.b16 %v256
      %v662 = vunpack.c.h.b16 %v256
      %v663 = vunpack.c.l.b16 %v257
      %v664 = vunpack.c.h.b16 %v257
      %v665 = vunpack.c.l.b16 %v258
      %v666 = vunpack.c.h.b16 %v258
      %v667 = vunpack.c.l.b16 %v259
      %v668 = vunpack.c.h.b16 %v259
      %v669 = vunpack.c.l.b16 %v260
      %v670 = vunpack.c.h.b16 %v260
      %v671 = vunpack.c.l.b16 %v261
      %v672 = vunpack.c.h.b16 %v261
      %v673 = vunpack.c.l.b16 %v262
      %v674 = vunpack.c.h.b16 %v262
      %v675 = vunpack.c.l.b16 %v263
      %v676 = vunpack.c.h.b16 %v263
      %v677 = vunpack.c.l.b16 %v264
      %v678 = vunpack.c.h.b16 %v264
      %v679 = vunpack.c.l.b16 %v265
      %v680 = vunpack.c.h.b16 %v265
      %v681 = vunpack.c.l.b16 %v266
      %v682 = vunpack.c.h.b16 %v266
      %v683 = vunpack.c.l.b16 %v267
      %v684 = vunpack.c.h.b16 %v267
      %v685 = vunpack.c.l.b16 %v268
      %v686 = vunpack.c.h.b16 %v268
      %v687 = vunpack.c.l.b16 %v269
      %v688 = vunpack.c.h.b16 %v269
      %v689 = vunpack.c.l.b16 %v270
      %v690 = vunpack.c.h.b16 %v270
      %v691 = vunpack.c.l.b16 %v271
      %v692 = vunpack.c.h.b16 %v271
      %v693 = vunpack.c.l.b16 %v272
      %v694 = vunpack.c.h.b16 %v272
      %v695 = vunpack.c.l.b16 %v273
      %v696 = vunpack.c.h.b16 %v273
      %v697 = vunpack.c.l.b16 %v274
      %v698 = vunpack.c.h.b16 %v274
      %v699 = vpack.c.b16 %v447, %v443
      %v700 = vpack.c.b16 %v448, %v444
      %v701 = vpack.c.b16 %v449, %v445
      %v702 = vpack.c.b16 %v450, %v446
      %v703 = vpack.c.b16 %v455, %v451
      %v704 = vpack.c.b16 %v456, %v452
      %v705 = vpack.c.b16 %v457, %v453
      %v706 = vpack.c.b16 %v458, %v454
      %v707 = vpack.c.b16 %v463, %v459
      %v708 = vpack.c.b16 %v464, %v460
      %v709 = vpack.c.b16 %v465, %v461
      %v710 = vpack.c.b16 %v466, %v462
      %v711 = vpack.c.b16 %v471, %v467
      %v712 = vpack.c.b16 %v472, %v468
      %v713 = vpack.c.b16 %v473, %v469
      %v714 = vpack.c.b16 %v474, %v470
      %v715 = vpack.c.b16 %v479, %v475
      %v716 = vpack.c.b16 %v480, %v476
      %v717 = vpack.c.b16 %v481, %v477
      %v718 = vpack.c.b16 %v482, %v478
      %v719 = vpack.c.b16 %v487, %v483
      %v720 = vpack.c.b16 %v488, %v484
      %v721 = vpack.c.b16 %v489, %v485
      %v722 = vpack.c.b16 %v490, %v486
      %v723 = vpack.c.b16 %v495, %v491
      %v724 = vpack.c.b16 %v496, %v492
      %v725 = vpack.c.b16 %v497, %v493
      %v726 = vpack.c.b16 %v498, %v494
      %v727 = vpack.c.b16 %v503, %v499
      %v728 = vpack.c.b16 %v504, %v500
      %v729 = vpack.c.b16 %v505, %v501
      %v730 = vpack.c.b16 %v506, %v502
      %v731 = vpack.c.b16 %v511, %v507
      %v732 = vpack.c.b16 %v512, %v508
      %v733 = vpack.c.b16 %v513, %v509
      %v734 = vpack.c.b16 %v514, %v510
      %v735 = vpack.c.b16 %v519, %v515
      %v736 = vpack.c.b16 %v520, %v516
      %v737 = vpack.c.b16 %v521, %v517
      %v738 = vpack.c.b16 %v522, %v518
      %v739 = vpack.c.b16 %v527, %v523
      %v740 = vpack.c.b16 %v528, %v524
      %v741 = vpack.c.b16 %v529, %v525
      %v742 = vpack.c.b16 %v530, %v526
      %v743 = vpack.c.b16 %v535, %v531
      %v744 = vpack.c.b16 %v536, %v532
      %v745 = vpack.c.b16 %v537, %v533
      %v746 = vpack.c.b16 %v538, %v534
      %v747 = vpack.c.b16 %v543, %v539
      %v748 = vpack.c.b16 %v544, %v540
      %v749 = vpack.c.b16 %v545, %v541
      %v750 = vpack.c.b16 %v546, %v542
      %v751 = vpack.c.b16 %v551, %v547
      %v752 = vpack.c.b16 %v552, %v548
      %v753 = vpack.c.b16 %v553, %v549
      %v754 = vpack.c.b16 %v554, %v550
      %v755 = vpack.c.b16 %v559, %v555
      %v756 = vpack.c.b16 %v560, %v556
      %v757 = vpack.c.b16 %v561, %v557
      %v758 = vpack.c.b16 %v562, %v558
      %v759 = vpack.c.b16 %v567, %v563
      %v760 = vpack.c.b16 %v568, %v564
      %v761 = vpack.c.b16 %v569, %v565
      %v762 = vpack.c.b16 %v570, %v566
      %v763 = vpack.c.b16 %v575, %v571
      %v764 = vpack.c.b16 %v576, %v572
      %v765 = vpack.c.b16 %v577, %v573
      %v766 = vpack.c.b16 %v578, %v574
      %v767 = vpack.c.b16 %v583, %v579
      %v768 = vpack.c.b16 %v584, %v580
      %v769 = vpack.c.b16 %v585, %v581
      %v770 = vpack.c.b16 %v586, %v582
      %v771 = vpack.c.b16 %v591, %v587
      %v772 = vpack.c.b16 %v592, %v588
      %v773 = vpack.c.b16 %v593, %v589
      %v774 = vpack.c.b16 %v594, %v590
      %v775 = vpack.c.b16 %v599, %v595
      %v776 = vpack.c.b16 %v600, %v596
      %v777 = vpack.c.b16 %v601, %v597
      %v778 = vpack.c.b16 %v602, %v598
      %v779 = vpack.c.b16 %v607, %v603
      %v780 = vpack.c.b16 %v608, %v604
      %v781 = vpack.c.b16 %v609, %v605
      %v782 = vpack.c.b16 %v610, %v606
      %v783 = vpack.c.b16 %v615, %v611
      %v784 = vpack.c.b16 %v616, %v612
      %v785 = vpack.c.b16 %v617, %v613
      %v786 = vpack.c.b16 %v618, %v614
      %v787 = vpack.c.b16 %v623, %v619
      %v788 = vpack.c.b16 %v624, %v620
      %v789 = vpack.c.b16 %v625, %v621
      %v790 = vpack.c.b16 %v626, %v622
      %v791 = vpack.c.b16 %v631, %v627
      %v792 = vpack.c.b16 %v632, %v628
      %v793 = vpack.c.b16 %v633, %v629
      %v794 = vpack.c.b16 %v634, %v630
      %v795 = vpack.c.b16 %v639, %v635
      %v796 = vpack.c.b16 %v640, %v636
      %v797 = vpack.c.b16 %v641, %v637
      %v798 = vpack.c.b16 %v642, %v638
      %v799 = vpack.c.b16 %v647, %v643
      %v800 = vpack.c.b16 %v648, %v644
      %v801 = vpack.c.b16 %v649, %v645
      %v802 = vpack.c.b16 %v650, %v646
      %v803 = vpack.c.b16 %v655, %v651
      %v804 = vpack.c.b16 %v656, %v652
      %v805 = vpack.c.b16 %v657, %v653
      %v806 = vpack.c.b16 %v658, %v654
      %v807 = vpack.c.b16 %v663, %v659
      %v808 = vpack.c.b16 %v664, %v660
      %v809 = vpack.c.b16 %v665, %v661
      %v810 = vpack.c.b16 %v666, %v662
      %v811 = vpack.c.b16 %v671, %v667
      %v812 = vpack.c.b16 %v672, %v668
      %v813 = vpack.c.b16 %v673, %v669
      %v814 = vpack.c.b16 %v674, %v670
      %v815 = vpack.c.b16 %v679, %v675
      %v816 = vpack.c.b16 %v680, %v676
      %v817 = vpack.c.b16 %v681, %v677
      %v818 = vpack.c.b16 %v682, %v678
      %v819 = vpack.c.b16 %v687, %v683
      %v820 = vpack.c.b16 %v688, %v684
      %v821 = vpack.c.b16 %v689, %v685
      %v822 = vpack.c.b16 %v690, %v686
      %v823 = vpack.c.b16 %v695, %v691
      %v824 = vpack.c.b16 %v696, %v692
      %v825 = vpack.c.b16 %v697, %v693
      %v826 = vpack.c.b16 %v698, %v694
      %955 = vmatpush.bf16.msra.mxu0 %v727
      %956 = vmatpush.bf16.msra.mxu0 %v723
      %957 = vmatpush.bf16.msra.mxu0 %v719
      %958 = vmatpush.bf16.msra.mxu0 %v715
      %959 = vmatpush.bf16.msra.mxu0 %v711
      %960 = vmatpush.bf16.msra.mxu0 %v707
      %961 = vmatpush.bf16.msra.mxu0 %v703
      %962 = vmatpush.bf16.msra.mxu0 %v699
      %963 = vmatmul.bf16.gmra.mxu0 %v299
      %v964 = vpop.f32.mrf.mxu0
      %v965 = vadd.f32 0.0, %v964
      %v966 = vpop.f32.mrf.mxu0
      %v967 = vadd.f32 0.0, %v966
      %968 = vmatmul.bf16.gmra.mxu0 %v303
      %v969 = vpop.f32.mrf.mxu0
      %v970 = vadd.f32 0.0, %v969
      %v971 = vpop.f32.mrf.mxu0
      %v972 = vadd.f32 0.0, %v971
      %973 = vdwg.mxu0
      %974 = vmatpush.bf16.msra.mxu0 %v759
      %975 = vmatpush.bf16.msra.mxu0 %v755
      %976 = vmatpush.bf16.msra.mxu0 %v751
      %977 = vmatpush.bf16.msra.mxu0 %v747
      %978 = vmatpush.bf16.msra.mxu0 %v743
      %979 = vmatpush.bf16.msra.mxu0 %v739
      %980 = vmatpush.bf16.msra.mxu0 %v735
      %981 = vmatpush.bf16.msra.mxu0 %v731
      %982 = vmatmul.bf16.gmra.mxu0 %v300
      %v983 = vpop.f32.mrf.mxu0
      %v984 = vadd.f32 %v965, %v983
      %v985 = vpop.f32.mrf.mxu0
      %v986 = vadd.f32 %v967, %v985
      %987 = vmatmul.bf16.gmra.mxu0 %v304
      %v988 = vpop.f32.mrf.mxu0
      %v989 = vadd.f32 %v970, %v988
      %v990 = vpop.f32.mrf.mxu0
      %v991 = vadd.f32 %v972, %v990
      %992 = vdwg.mxu0
      %993 = vmatpush.bf16.msra.mxu0 %v791
      %994 = vmatpush.bf16.msra.mxu0 %v787
      %995 = vmatpush.bf16.msra.mxu0 %v783
      %996 = vmatpush.bf16.msra.mxu0 %v779
      %997 = vmatpush.bf16.msra.mxu0 %v775
      %998 = vmatpush.bf16.msra.mxu0 %v771
      %999 = vmatpush.bf16.msra.mxu0 %v767
      %1000 = vmatpush.bf16.msra.mxu0 %v763
      %1001 = vmatmul.bf16.gmra.mxu0 %v301
      %v1002 = vpop.f32.mrf.mxu0
      %v1003 = vadd.f32 %v984, %v1002
      %v1004 = vpop.f32.mrf.mxu0
      %v1005 = vadd.f32 %v986, %v1004
      %1006 = vmatmul.bf16.gmra.mxu0 %v305
      %v1007 = vpop.f32.mrf.mxu0
      %v1008 = vadd.f32 %v989, %v1007
      %v1009 = vpop.f32.mrf.mxu0
      %v1010 = vadd.f32 %v991, %v1009
      %1011 = vdwg.mxu0
      %1012 = vmatpush.bf16.msra.mxu0 %v823
      %1013 = vmatpush.bf16.msra.mxu0 %v819
      %1014 = vmatpush.bf16.msra.mxu0 %v815
      %1015 = vmatpush.bf16.msra.mxu0 %v811
      %1016 = vmatpush.bf16.msra.mxu0 %v807
      %1017 = vmatpush.bf16.msra.mxu0 %v803
      %1018 = vmatpush.bf16.msra.mxu0 %v799
      %1019 = vmatpush.bf16.msra.mxu0 %v795
      %1020 = vmatmul.bf16.gmra.mxu0 %v302
      %v1021 = vpop.f32.mrf.mxu0
      %v1022 = vadd.f32 %v1003, %v1021
      %v1023 = vpop.f32.mrf.mxu0
      %v1024 = vadd.f32 %v1005, %v1023
      %1025 = vmatmul.bf16.gmra.mxu0 %v306
      %v1026 = vpop.f32.mrf.mxu0
      %v1027 = vadd.f32 %v1008, %v1026
      %v1028 = vpop.f32.mrf.mxu0
      %v1029 = vadd.f32 %v1010, %v1028
      %1030 = vdwg.mxu0
      %1031 = vmatpush.bf16.msra.mxu0 %v728
      %1032 = vmatpush.bf16.msra.mxu0 %v724
      %1033 = vmatpush.bf16.msra.mxu0 %v720
      %1034 = vmatpush.bf16.msra.mxu0 %v716
      %1035 = vmatpush.bf16.msra.mxu0 %v712
      %1036 = vmatpush.bf16.msra.mxu0 %v708
      %1037 = vmatpush.bf16.msra.mxu0 %v704
      %1038 = vmatpush.bf16.msra.mxu0 %v700
      %1039 = vmatmul.bf16.gmra.mxu0 %v299
      %v1040 = vpop.f32.mrf.mxu0
      %v1041 = vadd.f32 0.0, %v1040
      %v1042 = vpop.f32.mrf.mxu0
      %v1043 = vadd.f32 0.0, %v1042
      %1044 = vmatmul.bf16.gmra.mxu0 %v303
      %v1045 = vpop.f32.mrf.mxu0
      %v1046 = vadd.f32 0.0, %v1045
      %v1047 = vpop.f32.mrf.mxu0
      %v1048 = vadd.f32 0.0, %v1047
      %1049 = vdwg.mxu0
      %1050 = vmatpush.bf16.msra.mxu0 %v760
      %1051 = vmatpush.bf16.msra.mxu0 %v756
      %1052 = vmatpush.bf16.msra.mxu0 %v752
      %1053 = vmatpush.bf16.msra.mxu0 %v748
      %1054 = vmatpush.bf16.msra.mxu0 %v744
      %1055 = vmatpush.bf16.msra.mxu0 %v740
      %1056 = vmatpush.bf16.msra.mxu0 %v736
      %1057 = vmatpush.bf16.msra.mxu0 %v732
      %1058 = vmatmul.bf16.gmra.mxu0 %v300
      %v1059 = vpop.f32.mrf.mxu0
      %v1060 = vadd.f32 %v1041, %v1059
      %v1061 = vpop.f32.mrf.mxu0
      %v1062 = vadd.f32 %v1043, %v1061
      %1063 = vmatmul.bf16.gmra.mxu0 %v304
      %v1064 = vpop.f32.mrf.mxu0
      %v1065 = vadd.f32 %v1046, %v1064
      %v1066 = vpop.f32.mrf.mxu0
      %v1067 = vadd.f32 %v1048, %v1066
      %1068 = vdwg.mxu0
      %1069 = vmatpush.bf16.msra.mxu0 %v792
      %1070 = vmatpush.bf16.msra.mxu0 %v788
      %1071 = vmatpush.bf16.msra.mxu0 %v784
      %1072 = vmatpush.bf16.msra.mxu0 %v780
      %1073 = vmatpush.bf16.msra.mxu0 %v776
      %1074 = vmatpush.bf16.msra.mxu0 %v772
      %1075 = vmatpush.bf16.msra.mxu0 %v768
      %1076 = vmatpush.bf16.msra.mxu0 %v764
      %1077 = vmatmul.bf16.gmra.mxu0 %v301
      %v1078 = vpop.f32.mrf.mxu0
      %v1079 = vadd.f32 %v1060, %v1078
      %v1080 = vpop.f32.mrf.mxu0
      %v1081 = vadd.f32 %v1062, %v1080
      %1082 = vmatmul.bf16.gmra.mxu0 %v305
      %v1083 = vpop.f32.mrf.mxu0
      %v1084 = vadd.f32 %v1065, %v1083
      %v1085 = vpop.f32.mrf.mxu0
      %v1086 = vadd.f32 %v1067, %v1085
      %1087 = vdwg.mxu0
      %1088 = vmatpush.bf16.msra.mxu0 %v824
      %1089 = vmatpush.bf16.msra.mxu0 %v820
      %1090 = vmatpush.bf16.msra.mxu0 %v816
      %1091 = vmatpush.bf16.msra.mxu0 %v812
      %1092 = vmatpush.bf16.msra.mxu0 %v808
      %1093 = vmatpush.bf16.msra.mxu0 %v804
      %1094 = vmatpush.bf16.msra.mxu0 %v800
      %1095 = vmatpush.bf16.msra.mxu0 %v796
      %1096 = vmatmul.bf16.gmra.mxu0 %v302
      %v1097 = vpop.f32.mrf.mxu0
      %v1098 = vadd.f32 %v1079, %v1097
      %v1099 = vpop.f32.mrf.mxu0
      %v1100 = vadd.f32 %v1081, %v1099
      %1101 = vmatmul.bf16.gmra.mxu0 %v306
      %v1102 = vpop.f32.mrf.mxu0
      %v1103 = vadd.f32 %v1084, %v1102
      %v1104 = vpop.f32.mrf.mxu0
      %v1105 = vadd.f32 %v1086, %v1104
      %1106 = vdwg.mxu0
      %1107 = vmatpush.bf16.msra.mxu0 %v729
      %1108 = vmatpush.bf16.msra.mxu0 %v725
      %1109 = vmatpush.bf16.msra.mxu0 %v721
      %1110 = vmatpush.bf16.msra.mxu0 %v717
      %1111 = vmatpush.bf16.msra.mxu0 %v713
      %1112 = vmatpush.bf16.msra.mxu0 %v709
      %1113 = vmatpush.bf16.msra.mxu0 %v705
      %1114 = vmatpush.bf16.msra.mxu0 %v701
      %1115 = vmatmul.bf16.gmra.mxu0 %v299
      %v1116 = vpop.f32.mrf.mxu0
      %v1117 = vadd.f32 0.0, %v1116
      %v1118 = vpop.f32.mrf.mxu0
      %v1119 = vadd.f32 0.0, %v1118
      %1120 = vmatmul.bf16.gmra.mxu0 %v303
      %v1121 = vpop.f32.mrf.mxu0
      %v1122 = vadd.f32 0.0, %v1121
      %v1123 = vpop.f32.mrf.mxu0
      %v1124 = vadd.f32 0.0, %v1123
      %1125 = vdwg.mxu0
      %1126 = vmatpush.bf16.msra.mxu0 %v761
      %1127 = vmatpush.bf16.msra.mxu0 %v757
      %1128 = vmatpush.bf16.msra.mxu0 %v753
      %1129 = vmatpush.bf16.msra.mxu0 %v749
      %1130 = vmatpush.bf16.msra.mxu0 %v745
      %1131 = vmatpush.bf16.msra.mxu0 %v741
      %1132 = vmatpush.bf16.msra.mxu0 %v737
      %1133 = vmatpush.bf16.msra.mxu0 %v733
      %1134 = vmatmul.bf16.gmra.mxu0 %v300
      %v1135 = vpop.f32.mrf.mxu0
      %v1136 = vadd.f32 %v1117, %v1135
      %v1137 = vpop.f32.mrf.mxu0
      %v1138 = vadd.f32 %v1119, %v1137
      %1139 = vmatmul.bf16.gmra.mxu0 %v304
      %v1140 = vpop.f32.mrf.mxu0
      %v1141 = vadd.f32 %v1122, %v1140
      %v1142 = vpop.f32.mrf.mxu0
      %v1143 = vadd.f32 %v1124, %v1142
      %1144 = vdwg.mxu0
      %1145 = vmatpush.bf16.msra.mxu0 %v793
      %1146 = vmatpush.bf16.msra.mxu0 %v789
      %1147 = vmatpush.bf16.msra.mxu0 %v785
      %1148 = vmatpush.bf16.msra.mxu0 %v781
      %1149 = vmatpush.bf16.msra.mxu0 %v777
      %1150 = vmatpush.bf16.msra.mxu0 %v773
      %1151 = vmatpush.bf16.msra.mxu0 %v769
      %1152 = vmatpush.bf16.msra.mxu0 %v765
      %1153 = vmatmul.bf16.gmra.mxu0 %v301
      %v1154 = vpop.f32.mrf.mxu0
      %v1155 = vadd.f32 %v1136, %v1154
      %v1156 = vpop.f32.mrf.mxu0
      %v1157 = vadd.f32 %v1138, %v1156
      %1158 = vmatmul.bf16.gmra.mxu0 %v305
      %v1159 = vpop.f32.mrf.mxu0
      %v1160 = vadd.f32 %v1141, %v1159
      %v1161 = vpop.f32.mrf.mxu0
      %v1162 = vadd.f32 %v1143, %v1161
      %1163 = vdwg.mxu0
      %1164 = vmatpush.bf16.msra.mxu0 %v825
      %1165 = vmatpush.bf16.msra.mxu0 %v821
      %1166 = vmatpush.bf16.msra.mxu0 %v817
      %1167 = vmatpush.bf16.msra.mxu0 %v813
      %1168 = vmatpush.bf16.msra.mxu0 %v809
      %1169 = vmatpush.bf16.msra.mxu0 %v805
      %1170 = vmatpush.bf16.msra.mxu0 %v801
      %1171 = vmatpush.bf16.msra.mxu0 %v797
      %1172 = vmatmul.bf16.gmra.mxu0 %v302
      %v1173 = vpop.f32.mrf.mxu0
      %v1174 = vadd.f32 %v1155, %v1173
      %v1175 = vpop.f32.mrf.mxu0
      %v1176 = vadd.f32 %v1157, %v1175
      %1177 = vmatmul.bf16.gmra.mxu0 %v306
      %v1178 = vpop.f32.mrf.mxu0
      %v1179 = vadd.f32 %v1160, %v1178
      %v1180 = vpop.f32.mrf.mxu0
      %v1181 = vadd.f32 %v1162, %v1180
      %1182 = vdwg.mxu0
      %1183 = vmatpush.bf16.msra.mxu0 %v730
      %1184 = vmatpush.bf16.msra.mxu0 %v726
      %1185 = vmatpush.bf16.msra.mxu0 %v722
      %1186 = vmatpush.bf16.msra.mxu0 %v718
      %1187 = vmatpush.bf16.msra.mxu0 %v714
      %1188 = vmatpush.bf16.msra.mxu0 %v710
      %1189 = vmatpush.bf16.msra.mxu0 %v706
      %1190 = vmatpush.bf16.msra.mxu0 %v702
      %1191 = vmatmul.bf16.gmra.mxu0 %v299
      %v1192 = vpop.f32.mrf.mxu0
      %v1193 = vadd.f32 0.0, %v1192
      %v1194 = vpop.f32.mrf.mxu0
      %v1195 = vadd.f32 0.0, %v1194
      %1196 = vmatmul.bf16.gmra.mxu0 %v303
      %v1197 = vpop.f32.mrf.mxu0
      %v1198 = vadd.f32 0.0, %v1197
      %v1199 = vpop.f32.mrf.mxu0
      %v1200 = vadd.f32 0.0, %v1199
      %1201 = vdwg.mxu0
      %1202 = vmatpush.bf16.msra.mxu0 %v762
      %1203 = vmatpush.bf16.msra.mxu0 %v758
      %1204 = vmatpush.bf16.msra.mxu0 %v754
      %1205 = vmatpush.bf16.msra.mxu0 %v750
      %1206 = vmatpush.bf16.msra.mxu0 %v746
      %1207 = vmatpush.bf16.msra.mxu0 %v742
      %1208 = vmatpush.bf16.msra.mxu0 %v738
      %1209 = vmatpush.bf16.msra.mxu0 %v734
      %1210 = vmatmul.bf16.gmra.mxu0 %v300
      %v1211 = vpop.f32.mrf.mxu0
      %v1212 = vadd.f32 %v1193, %v1211
      %v1213 = vpop.f32.mrf.mxu0
      %v1214 = vadd.f32 %v1195, %v1213
      %1215 = vmatmul.bf16.gmra.mxu0 %v304
      %v1216 = vpop.f32.mrf.mxu0
      %v1217 = vadd.f32 %v1198, %v1216
      %v1218 = vpop.f32.mrf.mxu0
      %v1219 = vadd.f32 %v1200, %v1218
      %1220 = vdwg.mxu0
      %1221 = vmatpush.bf16.msra.mxu0 %v794
      %1222 = vmatpush.bf16.msra.mxu0 %v790
      %1223 = vmatpush.bf16.msra.mxu0 %v786
      %1224 = vmatpush.bf16.msra.mxu0 %v782
      %1225 = vmatpush.bf16.msra.mxu0 %v778
      %1226 = vmatpush.bf16.msra.mxu0 %v774
      %1227 = vmatpush.bf16.msra.mxu0 %v770
      %1228 = vmatpush.bf16.msra.mxu0 %v766
      %1229 = vmatmul.bf16.gmra.mxu0 %v301
      %v1230 = vpop.f32.mrf.mxu0
      %v1231 = vadd.f32 %v1212, %v1230
      %v1232 = vpop.f32.mrf.mxu0
      %v1233 = vadd.f32 %v1214, %v1232
      %1234 = vmatmul.bf16.gmra.mxu0 %v305
      %v1235 = vpop.f32.mrf.mxu0
      %v1236 = vadd.f32 %v1217, %v1235
      %v1237 = vpop.f32.mrf.mxu0
      %v1238 = vadd.f32 %v1219, %v1237
      %1239 = vdwg.mxu0
      %1240 = vmatpush.bf16.msra.mxu0 %v826
      %1241 = vmatpush.bf16.msra.mxu0 %v822
      %1242 = vmatpush.bf16.msra.mxu0 %v818
      %1243 = vmatpush.bf16.msra.mxu0 %v814
      %1244 = vmatpush.bf16.msra.mxu0 %v810
      %1245 = vmatpush.bf16.msra.mxu0 %v806
      %1246 = vmatpush.bf16.msra.mxu0 %v802
      %1247 = vmatpush.bf16.msra.mxu0 %v798
      %1248 = vmatmul.bf16.gmra.mxu0 %v302
      %v1249 = vpop.f32.mrf.mxu0
      %v1250 = vadd.f32 %v1231, %v1249
      %v1251 = vpop.f32.mrf.mxu0
      %v1252 = vadd.f32 %v1233, %v1251
      %1253 = vmatmul.bf16.gmra.mxu0 %v306
      %v1254 = vpop.f32.mrf.mxu0
      %v1255 = vadd.f32 %v1236, %v1254
      %v1256 = vpop.f32.mrf.mxu0
      %v1257 = vadd.f32 %v1238, %v1256
      %1258 = vdwg.mxu0
      %v1259 = vadd.f32 %v1022, %v1024
      %v1260 = vadd.f32 %v1259, %v1027
      %v1261 = vadd.f32 %v1260, %v1029
      %v1262 = vrot.slane %v1261, 4
      %v1263 = vadd.f32 %v1261, %v1262
      %v1264 = vrot.slane %v1263, 2
      %v1265 = vadd.f32 %v1263, %v1264
      %v1266 = vrot.slane %v1265, 1
      %v1267 = vadd.f32 %v1265, %v1266
      %v1268 = vadd.f32 %v1098, %v1100
      %v1269 = vadd.f32 %v1268, %v1103
      %v1270 = vadd.f32 %v1269, %v1105
      %v1271 = vrot.slane %v1270, 4
      %v1272 = vadd.f32 %v1270, %v1271
      %v1273 = vrot.slane %v1272, 2
      %v1274 = vadd.f32 %v1272, %v1273
      %v1275 = vrot.slane %v1274, 1
      %v1276 = vadd.f32 %v1274, %v1275
      %v1277 = vadd.f32 %v1174, %v1176
      %v1278 = vadd.f32 %v1277, %v1179
      %v1279 = vadd.f32 %v1278, %v1181
      %v1280 = vrot.slane %v1279, 4
      %v1281 = vadd.f32 %v1279, %v1280
      %v1282 = vrot.slane %v1281, 2
      %v1283 = vadd.f32 %v1281, %v1282
      %v1284 = vrot.slane %v1283, 1
      %v1285 = vadd.f32 %v1283, %v1284
      %v1286 = vadd.f32 %v1250, %v1252
      %v1287 = vadd.f32 %v1286, %v1255
      %v1288 = vadd.f32 %v1287, %v1257
      %v1289 = vrot.slane %v1288, 4
      %v1290 = vadd.f32 %v1288, %v1289
      %v1291 = vrot.slane %v1290, 2
      %v1292 = vadd.f32 %v1290, %v1291
      %v1293 = vrot.slane %v1292, 1
      %v1294 = vadd.f32 %v1292, %v1293
      %v1295 = vmul.f32 %v1022, %v1022
      %v1296 = vmul.f32 %v1098, %v1098
      %v1297 = vmul.f32 %v1174, %v1174
      %v1298 = vmul.f32 %v1250, %v1250
      %v1299 = vmul.f32 %v1024, %v1024
      %v1300 = vmul.f32 %v1100, %v1100
      %v1301 = vmul.f32 %v1176, %v1176
      %v1302 = vmul.f32 %v1252, %v1252
      %v1303 = vmul.f32 %v1027, %v1027
      %v1304 = vmul.f32 %v1103, %v1103
      %v1305 = vmul.f32 %v1179, %v1179
      %v1306 = vmul.f32 %v1255, %v1255
      %v1307 = vmul.f32 %v1029, %v1029
      %v1308 = vmul.f32 %v1105, %v1105
      %v1309 = vmul.f32 %v1181, %v1181
      %v1310 = vmul.f32 %v1257, %v1257
      %v1311 = vadd.f32 %v1295, %v1299
      %v1312 = vadd.f32 %v1311, %v1303
      %v1313 = vadd.f32 %v1312, %v1307
      %v1314 = vrot.slane %v1313, 4
      %v1315 = vadd.f32 %v1313, %v1314
      %v1316 = vrot.slane %v1315, 2
      %v1317 = vadd.f32 %v1315, %v1316
      %v1318 = vrot.slane %v1317, 1
      %v1319 = vadd.f32 %v1317, %v1318
      %v1320 = vadd.f32 %v1296, %v1300
      %v1321 = vadd.f32 %v1320, %v1304
      %v1322 = vadd.f32 %v1321, %v1308
      %v1323 = vrot.slane %v1322, 4
      %v1324 = vadd.f32 %v1322, %v1323
      %v1325 = vrot.slane %v1324, 2
      %v1326 = vadd.f32 %v1324, %v1325
      %v1327 = vrot.slane %v1326, 1
      %v1328 = vadd.f32 %v1326, %v1327
      %v1329 = vadd.f32 %v1297, %v1301
      %v1330 = vadd.f32 %v1329, %v1305
      %v1331 = vadd.f32 %v1330, %v1309
      %v1332 = vrot.slane %v1331, 4
      %v1333 = vadd.f32 %v1331, %v1332
      %v1334 = vrot.slane %v1333, 2
      %v1335 = vadd.f32 %v1333, %v1334
      %v1336 = vrot.slane %v1335, 1
      %v1337 = vadd.f32 %v1335, %v1336
      %v1338 = vadd.f32 %v1298, %v1302
      %v1339 = vadd.f32 %v1338, %v1306
      %v1340 = vadd.f32 %v1339, %v1310
      %v1341 = vrot.slane %v1340, 4
      %v1342 = vadd.f32 %v1340, %v1341
      %v1343 = vrot.slane %v1342, 2
      %v1344 = vadd.f32 %v1342, %v1343
      %v1345 = vrot.slane %v1344, 1
      %v1346 = vadd.f32 %v1344, %v1345
      %v1347 = vld [vmem:[%s2] sm:$0xff]
      %vm1348 = vcmask 1040384
      %v1349 = vsel %vm1348, %v1267, %v1319
      %v1350 = vsel %vm1348, %v1276, %v1328
      %v1351 = vsel %vm1348, %v1285, %v1337
      %v1352 = vsel %vm1348, %v1294, %v1346
      %v1357 = vrot.slane %v1350, 6
      %v1358 = vrot.slane %v1351, 4
      %v1359 = vrot.slane %v1352, 2
      %vm1360 = vcmask 1041408
      %v1361 = vsel %vm1360, %v1349, %v1357
      %vm1362 = vcmask 1045508
      %v1363 = vsel %vm1362, %v1358, %v1359
      %vm1364 = vcmask 1043456
      %v1365 = vsel %vm1364, %v1361, %v1363
      %v1367 = vadd.f32 %v1347, %v1365
      %1368 = vst [vmem:[%s2] sm:$0xff] %v1367
      %p1369 = scmp.eq.s32.totalorder %s13, 2
      // Predicated region
      $region33: #{pose_classifier_forward.2} parent=27 // pred_check
        %p1370 = pneg %p1369
      $region34: #{pose_classifier_forward.2} parent=27 // pred_check_branch
        %1372 = sbr.rel (%p1370) target = $region36
      $region35: #{pose_classifier_forward.2} parent=27 // pred_region
        %v1373 = vld [vmem:[%s2] ss:$2 sm:$0xf]
        %v1374 = vmul.f32 %v1373, 0.013888889
        %s1375 = scalar_lea.vmem %s2, 1
        %v1376 = vld [vmem:[%s1375] ss:$2 sm:$0xf]
        %v1377 = vmul.f32 %v1376, 0.013888889
        %v1378 = vmul.f32 %v1374, %v1374
        %v1379 = vsub.f32 %v1377, %v1378
        %v1380 = vmax.f32 %v1379, 0.0
        %v1381 = vadd.f32 %v1380, 1e-05
        %v1382 = vrsqrt.pop %v1381
        %v1383 = vmul.f32 %v1382, %v1381
        %v1384 = vmul.f32 %v1383, %v1382
        %v1385 = vmul.f32 0.5, %v1384
        %v1386 = vsub.f32 1.5, %v1385
        %v1387 = vmul.f32 %v1382, %v1386
        %vm1388 = vweird.f32 %v1381
        %vm1389 = vweird.f32 %v1382
        %vm1390 = vmor %vm1388, %vm1389
        %v1391 = vsel %vm1390, %v1382, %v1387
        %v1392 = vsub.f32 0.0, %v1374
        %v1393 = vmul.f32 %v1392, %v1391
        %v1395 = vperm.slane %v1391, 0
        %v1396 = vperm.slane %v1391, 1
        %v1397 = vperm.slane %v1391, 2
        %v1398 = vperm.slane %v1391, 3
        %v1404 = vperm.slane %v1393, 0
        %v1405 = vperm.slane %v1393, 1
        %v1406 = vperm.slane %v1393, 2
        %v1407 = vperm.slane %v1393, 3
        %v1412 = vsel %vm1348, %v1395, %v1404
        %v1413 = vsel %vm1348, %v1396, %v1405
        %v1414 = vsel %vm1348, %v1397, %v1406
        %v1415 = vsel %vm1348, %v1398, %v1407
        %v1420 = vrot.slane %v1413, 6
        %v1421 = vrot.slane %v1414, 4
        %v1422 = vrot.slane %v1415, 2
        %v1423 = vsel %vm1360, %v1412, %v1420
        %v1424 = vsel %vm1362, %v1421, %v1422
        %v1425 = vsel %vm1364, %v1423, %v1424
        %1427 = vst [vmem:[%s2] sm:$0xff] %v1425
      $region36: #{pose_classifier_forward.2} parent=27 // pred_fallthru
        _
      // Predicated region
      $region37: #{pose_classifier_forward.2} parent=27 // pred_check
        %p1428 = pneg %p73
      $region38: #{pose_classifier_forward.2} parent=27 // pred_check_branch
        %1430 = sbr.rel (%p1428) target = $region40
      $region39: #{pose_classifier_forward.2} parent=27 // pred_region
        _
      $region40: #{pose_classifier_forward.2} parent=27 // pred_fallthru
        _
      // Predicated region
      $region41: #{pose_classifier_forward.2} parent=27 // pred_check
        %p1431 = pneg %p73
      $region42: #{pose_classifier_forward.2} parent=27 // pred_check_branch
        %1433 = sbr.rel (%p1431) target = $region44
      $region43: #{pose_classifier_forward.2} parent=27 // pred_region
        _
      $region44: #{pose_classifier_forward.2} parent=27 // pred_fallthru
        _
    $region28: #{pose_classifier_forward.2} parent=5 // pred_fallthru
      _
    %p1434 = scmp.le.s32.totalorder 2, %s8
    // Predicated region
    $region45: #{pose_classifier_forward.2} parent=5 // pred_check
      %p1435 = pneg %p1434
    $region46: #{pose_classifier_forward.2} parent=5 // pred_check_branch
      %1437 = sbr.rel (%p1435) target = $region48
    $region47: #{pose_classifier_forward.2} parent=5 // pred_region
      %s1438 = ssub.s32 %s8, 2
    $region48: #{pose_classifier_forward.2} parent=5 // pred_fallthru
      _
  $region6: #{pose_classifier_forward.2} parent=0 // loop_footer
    %s12 = sadd.s32 1, %s8
  $region7: #{pose_classifier_forward.2} parent=0 // loop_footer_branch
    %7 = sbr.rel target = $region3
  $region8: #{pose_classifier_forward.2} parent=0 // loop_exit
    _

// kernel: pose_classifier_forward.3
$region0: #{pose_classifier_forward.3}
  #allocation0 [shape = 'u32[]', space=smem, size = 0x4, offset = 0x4, fixed_abs, tag = 'smem constant byte address 0x4 - core index']
  #allocation1 [shape = 'u32[72,128]{1,0:T(1,128)}', space=vmem, size = 0x9000, scoped, tag = 'internal scratch']
  %s0 = inlined_call_operand.vmem [shape: f32[2,512], index: 0, kind: input, shape index: {}]
  %s1 = inlined_call_operand.vmem [shape: bf16[96,512], index: 1, kind: input, shape index: {}]
  %s2 = inlined_call_operand.vmem [shape: bf16[512,512], index: 2, kind: input, shape index: {}]
  %s3 = inlined_call_operand.hbm [shape: bf16[512,384], index: 3, kind: input, shape index: {}]
  %s4 = inlined_call_operand.vmem [shape: f32[1,384], index: 4, kind: input, shape index: {}]
  %s5 = inlined_call_operand.vmem [shape: f32[96,384], index: 5, kind: output, shape index: {}]
  %s6 = sld [smem:[#allocation0]]
  $region57: #{pose_classifier_forward.3} parent=0
    _
  %s8 = ssub.s32 1, %s6
  %s9 = scalar_select 0, %s8, %s6
  $region1: #{pose_classifier_forward.3} parent=0
    #allocation2 [shape = 'u8[393216]{0}', space=vmem, size = 0x60000, scoped, tag = 'input window, operand 3, single buffered']
    #allocation3 [shape = 's32[2]{0}', space=sflag, size = 0x8, scoped, tag = 'scoped memory for pose_classifier_forward.3']
    %10 = vsyncpa [#allocation3], 0
    loop: start=0, step=1, limit=5
    $region2: #{pose_classifier_forward.3} parent=1 // loop_pre_header
      _
    $region3: #{pose_classifier_forward.3} parent=1 // loop_header
      %s12 = sphi 0, %s16
      %p13 = scmp.ge.s32.totalorder %s12, 5
      %s20 = sphi 0, %s20
      %s22 = sphi 0, %s20
      %s23 = sphi 0, %s22
      %s37 = sphi 0, %s23
      %s43 = sphi 0, %s45
      %s46 = sphi 0, %s43
      %s47 = sphi 0, %s46
      %s63 = sphi 0, %s47
      %s67 = sphi 0, %s67
      %s69 = sphi 0, %s67
      %s70 = sphi 0, %s69
      %s84 = sphi 0, %s70
      %s88 = sphi 0, %s88
      %s90 = sphi 0, %s88
      %s91 = sphi 0, %s90
      %s105 = sphi 0, %s91
      %s109 = sphi 0, %s109
      %s111 = sphi 0, %s109
      %s112 = sphi 0, %s111
      %s126 = sphi 0, %s112
      %s132 = sphi 0, %s134
      %s135 = sphi 0, %s132
      %s136 = sphi 0, %s135
      %s152 = sphi 0, %s136
    $region4: #{pose_classifier_forward.3} parent=1 // loop_header_branch
      %15 = sbr.rel (%p13) target = $region8
    $region5: #{pose_classifier_forward.3} parent=1 // loop_body
      %s17 = ssub.s32 %s12, 1
      %s18 = ssub.s32 %s12, 2
      %s19 = sadd.s32 %s12, 1
      %s21 = sadd.s32 %s20, 1
      %p24 = scmp.eq.s32.totalorder %s12, 2
      %p25 = scmp.ne.s32.totalorder %s20, %s22
      %p26 = scmp.eq.s32.totalorder %s12, 0
      %p27 = por %p25, %p26
      %p28 = scmp.ne.s32.totalorder %s20, %s22
      %p29 = scmp.eq.s32.totalorder %s17, 2
      %p30 = por %p28, %p29
      %p31 = scmp.ne.s32.totalorder %s22, %s23
      %p32 = scmp.eq.s32.totalorder %s17, 0
      %p33 = por %p31, %p32
      %p34 = scmp.ne.s32.totalorder %s22, %s23
      %p35 = scmp.eq.s32.totalorder %s18, 2
      %p36 = por %p34, %p35
      %p38 = scmp.ne.s32.totalorder %s23, %s37
      %p39 = scmp.eq.s32.totalorder %s18, 0
      %p40 = por %p38, %p39
      %s41 = ssub.s32 %s12, %s19
      %p42 = scmp.eq.s32.totalorder %s41, 0
      %s44 = sadd.s32 %s43, 1
      %s45 = scalar_select %p42, %s43, %s44
      %p48 = pneg %p42
      %p49 = scmp.eq.s32.totalorder %s12, 2
      %p50 = por %p48, %p49
      %p51 = scmp.ne.s32.totalorder %s43, %s46
      %p52 = scmp.eq.s32.totalorder %s12, 0
      %p53 = por %p51, %p52
      %p54 = scmp.ne.s32.totalorder %s43, %s46
      %p55 = scmp.eq.s32.totalorder %s17, 2
      %p56 = por %p54, %p55
      %p57 = scmp.ne.s32.totalorder %s46, %s47
      %p58 = scmp.eq.s32.totalorder %s17, 0
      %p59 = por %p57, %p58
      %p60 = scmp.ne.s32.totalorder %s46, %s47
      %p61 = scmp.eq.s32.totalorder %s18, 2
      %p62 = por %p60, %p61
      %p64 = scmp.ne.s32.totalorder %s47, %s63
      %p65 = scmp.eq.s32.totalorder %s18, 0
      %p66 = por %p64, %p65
      %s68 = sadd.s32 %s67, 1
      %p71 = scmp.eq.s32.totalorder %s12, 2
      %p72 = scmp.ne.s32.totalorder %s67, %s69
      %p73 = scmp.eq.s32.totalorder %s12, 0
      %p74 = por %p72, %p73
      %p75 = scmp.ne.s32.totalorder %s67, %s69
      %p76 = scmp.eq.s32.totalorder %s17, 2
      %p77 = por %p75, %p76
      %p78 = scmp.ne.s32.totalorder %s69, %s70
      %p79 = scmp.eq.s32.totalorder %s17, 0
      %p80 = por %p78, %p79
      %p81 = scmp.ne.s32.totalorder %s69, %s70
      %p82 = scmp.eq.s32.totalorder %s18, 2
      %p83 = por %p81, %p82
      %p85 = scmp.ne.s32.totalorder %s70, %s84
      %p86 = scmp.eq.s32.totalorder %s18, 0
      %p87 = por %p85, %p86
      %s89 = sadd.s32 %s88, 1
      %p92 = scmp.eq.s32.totalorder %s12, 2
      %p93 = scmp.ne.s32.totalorder %s88, %s90
      %p94 = scmp.eq.s32.totalorder %s12, 0
      %p95 = por %p93, %p94
      %p96 = scmp.ne.s32.totalorder %s88, %s90
      %p97 = scmp.eq.s32.totalorder %s17, 2
      %p98 = por %p96, %p97
      %p99 = scmp.ne.s32.totalorder %s90, %s91
      %p100 = scmp.eq.s32.totalorder %s17, 0
      %p101 = por %p99, %p100
      %p102 = scmp.ne.s32.totalorder %s90, %s91
      %p103 = scmp.eq.s32.totalorder %s18, 2
      %p104 = por %p102, %p103
      %p106 = scmp.ne.s32.totalorder %s91, %s105
      %p107 = scmp.eq.s32.totalorder %s18, 0
      %p108 = por %p106, %p107
      %s110 = sadd.s32 %s109, 1
      %p113 = scmp.eq.s32.totalorder %s12, 2
      %p114 = scmp.ne.s32.totalorder %s109, %s111
      %p115 = scmp.eq.s32.totalorder %s12, 0
      %p116 = por %p114, %p115
      %p117 = scmp.ne.s32.totalorder %s109, %s111
      %p118 = scmp.eq.s32.totalorder %s17, 2
      %p119 = por %p117, %p118
      %p120 = scmp.ne.s32.totalorder %s111, %s112
      %p121 = scmp.eq.s32.totalorder %s17, 0
      %p122 = por %p120, %p121
      %p123 = scmp.ne.s32.totalorder %s111, %s112
      %p124 = scmp.eq.s32.totalorder %s18, 2
      %p125 = por %p123, %p124
      %p127 = scmp.ne.s32.totalorder %s112, %s126
      %p128 = scmp.eq.s32.totalorder %s18, 0
      %p129 = por %p127, %p128
      %s130 = ssub.s32 %s12, %s19
      %p131 = scmp.eq.s32.totalorder %s130, 0
      %s133 = sadd.s32 %s132, 1
      %s134 = scalar_select %p131, %s132, %s133
      %p137 = pneg %p131
      %p138 = scmp.eq.s32.totalorder %s12, 2
      %p139 = por %p137, %p138
      %p140 = scmp.ne.s32.totalorder %s132, %s135
      %p141 = scmp.eq.s32.totalorder %s12, 0
      %p142 = por %p140, %p141
      %p143 = scmp.ne.s32.totalorder %s132, %s135
      %p144 = scmp.eq.s32.totalorder %s17, 2
      %p145 = por %p143, %p144
      %p146 = scmp.ne.s32.totalorder %s135, %s136
      %p147 = scmp.eq.s32.totalorder %s17, 0
      %p148 = por %p146, %p147
      %p149 = scmp.ne.s32.totalorder %s135, %s136
      %p150 = scmp.eq.s32.totalorder %s18, 2
      %p151 = por %p149, %p150
      %p153 = scmp.ne.s32.totalorder %s136, %s152
      %p154 = scmp.eq.s32.totalorder %s18, 0
      %p155 = por %p153, %p154
      %p156 = scmp.le.s32.totalorder 1, %s12
      %p157 = scmp.lt.s32.totalorder %s12, 4
      %p158 = pnand %p156, %p157
      %p159 = pneg %p158
      // Predicated region
      $region9: #{pose_classifier_forward.3} parent=5 // pred_check
        _
      $region10: #{pose_classifier_forward.3} parent=5 // pred_check_branch
        %161 = sbr.rel (%p158) target = $region12
      $region11: #{pose_classifier_forward.3} parent=5 // pred_region
        %s162 = ssub.s32 %s12, 1
        // Predicated region
        $region13: #{pose_classifier_forward.3} parent=11 // pred_check
          %p163 = pneg %p33
        $region14: #{pose_classifier_forward.3} parent=11 // pred_check_branch
          %165 = sbr.rel (%p163) target = $region16
        $region15: #{pose_classifier_forward.3} parent=11 // pred_region
          _
        $region16: #{pose_classifier_forward.3} parent=11 // pred_fallthru
          _
        // Predicated region
        $region17: #{pose_classifier_forward.3} parent=11 // pred_check
          %p166 = pneg %p80
        $region18: #{pose_classifier_forward.3} parent=11 // pred_check_branch
          %168 = sbr.rel (%p166) target = $region20
        $region19: #{pose_classifier_forward.3} parent=11 // pred_region
          _
        $region20: #{pose_classifier_forward.3} parent=11 // pred_fallthru
          _
        // Predicated region
        $region21: #{pose_classifier_forward.3} parent=11 // pred_check
          %p169 = pneg %p101
        $region22: #{pose_classifier_forward.3} parent=11 // pred_check_branch
          %171 = sbr.rel (%p169) target = $region24
        $region23: #{pose_classifier_forward.3} parent=11 // pred_region
          %173 = vsyncadd [#allocation3], 0
          %s174 = sshll.u32 %s3, 4
          %s175 = int_to_ptr.hbm [resolvable:$true] %s174
          %s176 = sshll.u32 [#allocation2], 4
          %s177 = int_to_ptr.vmem [resolvable:$true] %s176
          %182 = dma.hbm_to_vmem [thread:$0]  %s175, 12288, %s177, [#allocation3], 192, 192, 12
        $region24: #{pose_classifier_forward.3} parent=11 // pred_fallthru
          _
        // Predicated region
        $region25: #{pose_classifier_forward.3} parent=11 // pred_check
          %p183 = pneg %p122
        $region26: #{pose_classifier_forward.3} parent=11 // pred_check_branch
          %185 = sbr.rel (%p183) target = $region28
        $region27: #{pose_classifier_forward.3} parent=11 // pred_region
          _
        $region28: #{pose_classifier_forward.3} parent=11 // pred_fallthru
          _
      $region12: #{pose_classifier_forward.3} parent=5 // pred_fallthru
        _
      %p186 = scmp.lt.s32.totalorder %s12, 3
      // Predicated region
      $region29: #{pose_classifier_forward.3} parent=5 // pred_check
        %p187 = pneg %p186
      $region30: #{pose_classifier_forward.3} parent=5 // pred_check_branch
        %189 = sbr.rel (%p187) target = $region32
      $region31: #{pose_classifier_forward.3} parent=5 // pred_region
        // Predicated region
        $region33: #{pose_classifier_forward.3} parent=31 // pred_check
          %p190 = pneg %p53
        $region34: #{pose_classifier_forward.3} parent=31 // pred_check_branch
          %192 = sbr.rel (%p190) target = $region36
        $region35: #{pose_classifier_forward.3} parent=31 // pred_region
          %s193 = smul.u32 4, %s12
          %p194 = scmp.lt.s32.totalorder %s193, 11
          %s195 = scalar_select %p194, %s193, 11
          %s196 = smul.addr %s195, 4
          %s197 = smul.addr %s196, 4
          %s198 = scalar_lea.vmem %s1, %s197
          %s199 = smul.u32 4, %s12
        $region36: #{pose_classifier_forward.3} parent=31 // pred_fallthru
          _
      $region32: #{pose_classifier_forward.3} parent=5 // pred_fallthru
        _
      %p200 = scmp.le.s32.totalorder 1, %s12
      %p201 = scmp.lt.s32.totalorder %s12, 4
      %p202 = pnand %p200, %p201
      %p203 = pneg %p202
      // Predicated region
      $region37: #{pose_classifier_forward.3} parent=5 // pred_check
        _
      $region38: #{pose_classifier_forward.3} parent=5 // pred_check_branch
        %205 = sbr.rel (%p202) target = $region40
      $region39: #{pose_classifier_forward.3} parent=5 // pred_region
        %s206 = ssub.s32 %s12, 1
        // Predicated region
        $region41: #{pose_classifier_forward.3} parent=39 // pred_check
          %p207 = pneg %p101
        $region42: #{pose_classifier_forward.3} parent=39 // pred_check_branch
          %209 = sbr.rel (%p207) target = $region44
        $region43: #{pose_classifier_forward.3} parent=39 // pred_region
          %211 = dma.done [#allocation3], 12288
        $region44: #{pose_classifier_forward.3} parent=39 // pred_fallthru
          _
        %p212 = pneg %p33
        %p213 = pneg %p30
        %s214 = smul.u32 4, %s17
        %p215 = scmp.lt.s32.totalorder %s214, 11
        %s216 = scalar_select %p215, %s214, 11
        %s217 = smul.addr %s216, 4
        %s218 = smul.addr %s217, 4
        %s219 = scalar_lea.vmem %s1, %s218
        %p220 = pneg %p59
        %p221 = pneg %p56
        %p222 = pneg %p80
        %p223 = pneg %p77
        %p224 = pneg %p101
        %p225 = pneg %p98
        %p226 = pneg %p122
        %p227 = pneg %p119
        %p228 = pneg %p148
        %p229 = pneg %p145
        %s230 = smul.u32 4, %s17
        %p231 = scmp.lt.s32.totalorder %s230, 11
        %s232 = scalar_select %p231, %s230, 11
        %s233 = smul.addr %s232, 3
        %s234 = smul.addr %s233, 8
        %s235 = scalar_lea.vmem %s5, %s234
        %s236 = smul.u32 4, %s17
        %p237 = scmp.lt.s32.totalorder %s236, 11
        %s238 = scalar_select %p237, %s236, 11
        %s239 = smul.addr %s238, 4
        %s240 = smul.addr %s239, 4
        %s241 = scalar_lea.vmem %s1, %s240
        %s242 = smul.u32 4, %s17
        %s243 = smul.u32 4, %s17
        %p244 = scmp.lt.s32.totalorder %s243, 11
        %s245 = scalar_select %p244, %s243, 11
        %s246 = smul.addr %s245, 3
        %s247 = smul.addr %s246, 8
        %s248 = scalar_lea.vmem %s5, %s247
        %s249 = smul.u32 4, %s17
        %v250 = vld [vmem:[%s241] sm:$0xff]
        %v251 = vld [vmem:[%s241 + $0x8] sm:$0xff]
        %v252 = vld [vmem:[%s241 + $0x10] sm:$0xff]
        %v253 = vld [vmem:[%s241 + $0x18] sm:$0xff]
        %v254 = vld [vmem:[%s241 + $0x20] sm:$0xff]
        %v255 = vld [vmem:[%s241 + $0x28] sm:$0xff]
        %v256 = vld [vmem:[%s241 + $0x30] sm:$0xff]
        %v257 = vld [vmem:[%s241 + $0x38] sm:$0xff]
        %v258 = vld [vmem:[%s2] sm:$0xff]
        %v259 = vld [vmem:[%s2 + $0x8] sm:$0xff]
        %v260 = vld [vmem:[%s2 + $0x10] sm:$0xff]
        %v261 = vld [vmem:[%s2 + $0x18] sm:$0xff]
        %v262 = vld [vmem:[%s2 + $0x20] sm:$0xff]
        %v263 = vld [vmem:[%s2 + $0x28] sm:$0xff]
        %v264 = vld [vmem:[%s2 + $0x30] sm:$0xff]
        %v265 = vld [vmem:[%s2 + $0x38] sm:$0xff]
        %v266 = vld [vmem:[%s2 + $0x40] sm:$0xff]
        %v267 = vld [vmem:[%s2 + $0x48] sm:$0xff]
        %v268 = vld [vmem:[%s2 + $0x50] sm:$0xff]
        %v269 = vld [vmem:[%s2 + $0x58] sm:$0xff]
        %v270 = vld [vmem:[%s2 + $0x60] sm:$0xff]
        %v271 = vld [vmem:[%s2 + $0x68] sm:$0xff]
        %v272 = vld [vmem:[%s2 + $0x70] sm:$0xff]
        %v273 = vld [vmem:[%s2 + $0x78] sm:$0xff]
        %v274 = vld [vmem:[%s2 + $0x80] sm:$0xff]
        %v275 = vld [vmem:[%s2 + $0x88] sm:$0xff]
        %v276 = vld [vmem:[%s2 + $0x90] sm:$0xff]
        %v277 = vld [vmem:[%s2 + $0x98] sm:$0xff]
        %v278 = vld [vmem:[%s2 + $0xa0] sm:$0xff]
        %v279 = vld [vmem:[%s2 + $0xa8] sm:$0xff]
        %v280 = vld [vmem:[%s2 + $0xb0] sm:$0xff]
        %v281 = vld [vmem:[%s2 + $0xb8] sm:$0xff]
        %v282 = vld [vmem:[%s2 + $0xc0] sm:$0xff]
        %v283 = vld [vmem:[%s2 + $0xc8] sm:$0xff]
        %v284 = vld [vmem:[%s2 + $0xd0] sm:$0xff]
        %v285 = vld [vmem:[%s2 + $0xd8] sm:$0xff]
        %v286 = vld [vmem:[%s2 + $0xe0] sm:$0xff]
        %v287 = vld [vmem:[%s2 + $0xe8] sm:$0xff]
        %v288 = vld [vmem:[%s2 + $0xf0] sm:$0xff]
        %v289 = vld [vmem:[%s2 + $0xf8] sm:$0xff]
        %v290 = vld [vmem:[%s2 + $0x100] sm:$0xff]
        %v291 = vld [vmem:[%s2 + $0x108] sm:$0xff]
        %v292 = vld [vmem:[%s2 + $0x110] sm:$0xff]
        %v293 = vld [vmem:[%s2 + $0x118] sm:$0xff]
        %v294 = vld [vmem:[%s2 + $0x120] sm:$0xff]
        %v295 = vld [vmem:[%s2 + $0x128] sm:$0xff]
        %v296 = vld [vmem:[%s2 + $0x130] sm:$0xff]
        %v297 = vld [vmem:[%s2 + $0x138] sm:$0xff]
        %v298 = vld [vmem:[%s2 + $0x140] sm:$0xff]
        %v299 = vld [vmem:[%s2 + $0x148] sm:$0xff]
        %v300 = vld [vmem:[%s2 + $0x150] sm:$0xff]
        %v301 = vld [vmem:[%s2 + $0x158] sm:$0xff]
        %v302 = vld [vmem:[%s2 + $0x160] sm:$0xff]
        %v303 = vld [vmem:[%s2 + $0x168] sm:$0xff]
        %v304 = vld [vmem:[%s2 + $0x170] sm:$0xff]
        %v305 = vld [vmem:[%s2 + $0x178] sm:$0xff]
        %v306 = vld [vmem:[%s2 + $0x180] sm:$0xff]
        %v307 = vld [vmem:[%s2 + $0x188] sm:$0xff]
        %v308 = vld [vmem:[%s2 + $0x190] sm:$0xff]
        %v309 = vld [vmem:[%s2 + $0x198] sm:$0xff]
        %v310 = vld [vmem:[%s2 + $0x1a0] sm:$0xff]
        %v311 = vld [vmem:[%s2 + $0x1a8] sm:$0xff]
        %v312 = vld [vmem:[%s2 + $0x1b0] sm:$0xff]
        %v313 = vld [vmem:[%s2 + $0x1b8] sm:$0xff]
        %v314 = vld [vmem:[%s2 + $0x1c0] sm:$0xff]
        %v315 = vld [vmem:[%s2 + $0x1c8] sm:$0xff]
        %v316 = vld [vmem:[%s2 + $0x1d0] sm:$0xff]
        %v317 = vld [vmem:[%s2 + $0x1d8] sm:$0xff]
        %v318 = vld [vmem:[%s2 + $0x1e0] sm:$0xff]
        %v319 = vld [vmem:[%s2 + $0x1e8] sm:$0xff]
        %v320 = vld [vmem:[%s2 + $0x1f0] sm:$0xff]
        %v321 = vld [vmem:[%s2 + $0x1f8] sm:$0xff]
        %v322 = vld [vmem:[%s2 + $0x200] sm:$0xff]
        %v323 = vld [vmem:[%s2 + $0x208] sm:$0xff]
        %v324 = vld [vmem:[%s2 + $0x210] sm:$0xff]
        %v325 = vld [vmem:[%s2 + $0x218] sm:$0xff]
        %v326 = vld [vmem:[%s2 + $0x220] sm:$0xff]
        %v327 = vld [vmem:[%s2 + $0x228] sm:$0xff]
        %v328 = vld [vmem:[%s2 + $0x230] sm:$0xff]
        %v329 = vld [vmem:[%s2 + $0x238] sm:$0xff]
        %v330 = vld [vmem:[%s2 + $0x240] sm:$0xff]
        %v331 = vld [vmem:[%s2 + $0x248] sm:$0xff]
        %v332 = vld [vmem:[%s2 + $0x250] sm:$0xff]
        %v333 = vld [vmem:[%s2 + $0x258] sm:$0xff]
        %v334 = vld [vmem:[%s2 + $0x260] sm:$0xff]
        %v335 = vld [vmem:[%s2 + $0x268] sm:$0xff]
        %v336 = vld [vmem:[%s2 + $0x270] sm:$0xff]
        %v337 = vld [vmem:[%s2 + $0x278] sm:$0xff]
        %v338 = vld [vmem:[%s2 + $0x280] sm:$0xff]
        %v339 = vld [vmem:[%s2 + $0x288] sm:$0xff]
        %v340 = vld [vmem:[%s2 + $0x290] sm:$0xff]
        %v341 = vld [vmem:[%s2 + $0x298] sm:$0xff]
        %v342 = vld [vmem:[%s2 + $0x2a0] sm:$0xff]
        %v343 = vld [vmem:[%s2 + $0x2a8] sm:$0xff]
        %v344 = vld [vmem:[%s2 + $0x2b0] sm:$0xff]
        %v345 = vld [vmem:[%s2 + $0x2b8] sm:$0xff]
        %v346 = vld [vmem:[%s2 + $0x2c0] sm:$0xff]
        %v347 = vld [vmem:[%s2 + $0x2c8] sm:$0xff]
        %v348 = vld [vmem:[%s2 + $0x2d0] sm:$0xff]
        %v349 = vld [vmem:[%s2 + $0x2d8] sm:$0xff]
        %v350 = vld [vmem:[%s2 + $0x2e0] sm:$0xff]
        %v351 = vld [vmem:[%s2 + $0x2e8] sm:$0xff]
        %v352 = vld [vmem:[%s2 + $0x2f0] sm:$0xff]
        %v353 = vld [vmem:[%s2 + $0x2f8] sm:$0xff]
        %v354 = vld [vmem:[%s2 + $0x300] sm:$0xff]
        %v355 = vld [vmem:[%s2 + $0x308] sm:$0xff]
        %v356 = vld [vmem:[%s2 + $0x310] sm:$0xff]
        %v357 = vld [vmem:[%s2 + $0x318] sm:$0xff]
        %v358 = vld [vmem:[%s2 + $0x320] sm:$0xff]
        %v359 = vld [vmem:[%s2 + $0x328] sm:$0xff]
        %v360 = vld [vmem:[%s2 + $0x330] sm:$0xff]
        %v361 = vld [vmem:[%s2 + $0x338] sm:$0xff]
        %v362 = vld [vmem:[%s2 + $0x340] sm:$0xff]
        %v363 = vld [vmem:[%s2 + $0x348] sm:$0xff]
        %v364 = vld [vmem:[%s2 + $0x350] sm:$0xff]
        %v365 = vld [vmem:[%s2 + $0x358] sm:$0xff]
        %v366 = vld [vmem:[%s2 + $0x360] sm:$0xff]
        %v367 = vld [vmem:[%s2 + $0x368] sm:$0xff]
        %v368 = vld [vmem:[%s2 + $0x370] sm:$0xff]
        %v369 = vld [vmem:[%s2 + $0x378] sm:$0xff]
        %v370 = vld [vmem:[%s2 + $0x380] sm:$0xff]
        %v371 = vld [vmem:[%s2 + $0x388] sm:$0xff]
        %v372 = vld [vmem:[%s2 + $0x390] sm:$0xff]
        %v373 = vld [vmem:[%s2 + $0x398] sm:$0xff]
        %v374 = vld [vmem:[%s2 + $0x3a0] sm:$0xff]
        %v375 = vld [vmem:[%s2 + $0x3a8] sm:$0xff]
        %v376 = vld [vmem:[%s2 + $0x3b0] sm:$0xff]
        %v377 = vld [vmem:[%s2 + $0x3b8] sm:$0xff]
        %v378 = vld [vmem:[%s2 + $0x3c0] sm:$0xff]
        %v379 = vld [vmem:[%s2 + $0x3c8] sm:$0xff]
        %v380 = vld [vmem:[%s2 + $0x3d0] sm:$0xff]
        %v381 = vld [vmem:[%s2 + $0x3d8] sm:$0xff]
        %v382 = vld [vmem:[%s2 + $0x3e0] sm:$0xff]
        %v383 = vld [vmem:[%s2 + $0x3e8] sm:$0xff]
        %v384 = vld [vmem:[%s2 + $0x3f0] sm:$0xff]
        %v385 = vld [vmem:[%s2 + $0x3f8] sm:$0xff]
        %v394 = vunpack.c.l.b16 %v250
        %v395 = vunpack.c.h.b16 %v250
        %v396 = vunpack.c.l.b16 %v251
        %v397 = vunpack.c.h.b16 %v251
        %v398 = vunpack.c.l.b16 %v252
        %v399 = vunpack.c.h.b16 %v252
        %v400 = vunpack.c.l.b16 %v253
        %v401 = vunpack.c.h.b16 %v253
        %v402 = vunpack.c.l.b16 %v254
        %v403 = vunpack.c.h.b16 %v254
        %v404 = vunpack.c.l.b16 %v255
        %v405 = vunpack.c.h.b16 %v255
        %v406 = vunpack.c.l.b16 %v256
        %v407 = vunpack.c.h.b16 %v256
        %v408 = vunpack.c.l.b16 %v257
        %v409 = vunpack.c.h.b16 %v257
        %v410 = vpack.c.b16 %v398, %v394
        %v411 = vpack.c.b16 %v399, %v395
        %v412 = vpack.c.b16 %v400, %v396
        %v413 = vpack.c.b16 %v401, %v397
        %v414 = vpack.c.b16 %v406, %v402
        %v415 = vpack.c.b16 %v407, %v403
        %v416 = vpack.c.b16 %v408, %v404
        %v417 = vpack.c.b16 %v409, %v405
        %v554 = vunpack.c.l.b16 %v258
        %v555 = vunpack.c.h.b16 %v258
        %v556 = vunpack.c.l.b16 %v259
        %v557 = vunpack.c.h.b16 %v259
        %v558 = vunpack.c.l.b16 %v260
        %v559 = vunpack.c.h.b16 %v260
        %v560 = vunpack.c.l.b16 %v261
        %v561 = vunpack.c.h.b16 %v261
        %v562 = vunpack.c.l.b16 %v262
        %v563 = vunpack.c.h.b16 %v262
        %v564 = vunpack.c.l.b16 %v263
        %v565 = vunpack.c.h.b16 %v263
        %v566 = vunpack.c.l.b16 %v264
        %v567 = vunpack.c.h.b16 %v264
        %v568 = vunpack.c.l.b16 %v265
        %v569 = vunpack.c.h.b16 %v265
        %v570 = vunpack.c.l.b16 %v266
        %v571 = vunpack.c.h.b16 %v266
        %v572 = vunpack.c.l.b16 %v267
        %v573 = vunpack.c.h.b16 %v267
        %v574 = vunpack.c.l.b16 %v268
        %v575 = vunpack.c.h.b16 %v268
        %v576 = vunpack.c.l.b16 %v269
        %v577 = vunpack.c.h.b16 %v269
        %v578 = vunpack.c.l.b16 %v270
        %v579 = vunpack.c.h.b16 %v270
        %v580 = vunpack.c.l.b16 %v271
        %v581 = vunpack.c.h.b16 %v271
        %v582 = vunpack.c.l.b16 %v272
        %v583 = vunpack.c.h.b16 %v272
        %v584 = vunpack.c.l.b16 %v273
        %v585 = vunpack.c.h.b16 %v273
        %v586 = vunpack.c.l.b16 %v274
        %v587 = vunpack.c.h.b16 %v274
        %v588 = vunpack.c.l.b16 %v275
        %v589 = vunpack.c.h.b16 %v275
        %v590 = vunpack.c.l.b16 %v276
        %v591 = vunpack.c.h.b16 %v276
        %v592 = vunpack.c.l.b16 %v277
        %v593 = vunpack.c.h.b16 %v277
        %v594 = vunpack.c.l.b16 %v278
        %v595 = vunpack.c.h.b16 %v278
        %v596 = vunpack.c.l.b16 %v279
        %v597 = vunpack.c.h.b16 %v279
        %v598 = vunpack.c.l.b16 %v280
        %v599 = vunpack.c.h.b16 %v280
        %v600 = vunpack.c.l.b16 %v281
        %v601 = vunpack.c.h.b16 %v281
        %v602 = vunpack.c.l.b16 %v282
        %v603 = vunpack.c.h.b16 %v282
        %v604 = vunpack.c.l.b16 %v283
        %v605 = vunpack.c.h.b16 %v283
        %v606 = vunpack.c.l.b16 %v284
        %v607 = vunpack.c.h.b16 %v284
        %v608 = vunpack.c.l.b16 %v285
        %v609 = vunpack.c.h.b16 %v285
        %v610 = vunpack.c.l.b16 %v286
        %v611 = vunpack.c.h.b16 %v286
        %v612 = vunpack.c.l.b16 %v287
        %v613 = vunpack.c.h.b16 %v287
        %v614 = vunpack.c.l.b16 %v288
        %v615 = vunpack.c.h.b16 %v288
        %v616 = vunpack.c.l.b16 %v289
        %v617 = vunpack.c.h.b16 %v289
        %v618 = vunpack.c.l.b16 %v290
        %v619 = vunpack.c.h.b16 %v290
        %v620 = vunpack.c.l.b16 %v291
        %v621 = vunpack.c.h.b16 %v291
        %v622 = vunpack.c.l.b16 %v292
        %v623 = vunpack.c.h.b16 %v292
        %v624 = vunpack.c.l.b16 %v293
        %v625 = vunpack.c.h.b16 %v293
        %v626 = vunpack.c.l.b16 %v294
        %v627 = vunpack.c.h.b16 %v294
        %v628 = vunpack.c.l.b16 %v295
        %v629 = vunpack.c.h.b16 %v295
        %v630 = vunpack.c.l.b16 %v296
        %v631 = vunpack.c.h.b16 %v296
        %v632 = vunpack.c.l.b16 %v297
        %v633 = vunpack.c.h.b16 %v297
        %v634 = vunpack.c.l.b16 %v298
        %v635 = vunpack.c.h.b16 %v298
        %v636 = vunpack.c.l.b16 %v299
        %v637 = vunpack.c.h.b16 %v299
        %v638 = vunpack.c.l.b16 %v300
        %v639 = vunpack.c.h.b16 %v300
        %v640 = vunpack.c.l.b16 %v301
        %v641 = vunpack.c.h.b16 %v301
        %v642 = vunpack.c.l.b16 %v302
        %v643 = vunpack.c.h.b16 %v302
        %v644 = vunpack.c.l.b16 %v303
        %v645 = vunpack.c.h.b16 %v303
        %v646 = vunpack.c.l.b16 %v304
        %v647 = vunpack.c.h.b16 %v304
        %v648 = vunpack.c.l.b16 %v305
        %v649 = vunpack.c.h.b16 %v305
        %v650 = vunpack.c.l.b16 %v306
        %v651 = vunpack.c.h.b16 %v306
        %v652 = vunpack.c.l.b16 %v307
        %v653 = vunpack.c.h.b16 %v307
        %v654 = vunpack.c.l.b16 %v308
        %v655 = vunpack.c.h.b16 %v308
        %v656 = vunpack.c.l.b16 %v309
        %v657 = vunpack.c.h.b16 %v309
        %v658 = vunpack.c.l.b16 %v310
        %v659 = vunpack.c.h.b16 %v310
        %v660 = vunpack.c.l.b16 %v311
        %v661 = vunpack.c.h.b16 %v311
        %v662 = vunpack.c.l.b16 %v312
        %v663 = vunpack.c.h.b16 %v312
        %v664 = vunpack.c.l.b16 %v313
        %v665 = vunpack.c.h.b16 %v313
        %v666 = vunpack.c.l.b16 %v314
        %v667 = vunpack.c.h.b16 %v314
        %v668 = vunpack.c.l.b16 %v315
        %v669 = vunpack.c.h.b16 %v315
        %v670 = vunpack.c.l.b16 %v316
        %v671 = vunpack.c.h.b16 %v316
        %v672 = vunpack.c.l.b16 %v317
        %v673 = vunpack.c.h.b16 %v317
        %v674 = vunpack.c.l.b16 %v318
        %v675 = vunpack.c.h.b16 %v318
        %v676 = vunpack.c.l.b16 %v319
        %v677 = vunpack.c.h.b16 %v319
        %v678 = vunpack.c.l.b16 %v320
        %v679 = vunpack.c.h.b16 %v320
        %v680 = vunpack.c.l.b16 %v321
        %v681 = vunpack.c.h.b16 %v321
        %v682 = vunpack.c.l.b16 %v322
        %v683 = vunpack.c.h.b16 %v322
        %v684 = vunpack.c.l.b16 %v323
        %v685 = vunpack.c.h.b16 %v323
        %v686 = vunpack.c.l.b16 %v324
        %v687 = vunpack.c.h.b16 %v324
        %v688 = vunpack.c.l.b16 %v325
        %v689 = vunpack.c.h.b16 %v325
        %v690 = vunpack.c.l.b16 %v326
        %v691 = vunpack.c.h.b16 %v326
        %v692 = vunpack.c.l.b16 %v327
        %v693 = vunpack.c.h.b16 %v327
        %v694 = vunpack.c.l.b16 %v328
        %v695 = vunpack.c.h.b16 %v328
        %v696 = vunpack.c.l.b16 %v329
        %v697 = vunpack.c.h.b16 %v329
        %v698 = vunpack.c.l.b16 %v330
        %v699 = vunpack.c.h.b16 %v330
        %v700 = vunpack.c.l.b16 %v331
        %v701 = vunpack.c.h.b16 %v331
        %v702 = vunpack.c.l.b16 %v332
        %v703 = vunpack.c.h.b16 %v332
        %v704 = vunpack.c.l.b16 %v333
        %v705 = vunpack.c.h.b16 %v333
        %v706 = vunpack.c.l.b16 %v334
        %v707 = vunpack.c.h.b16 %v334
        %v708 = vunpack.c.l.b16 %v335
        %v709 = vunpack.c.h.b16 %v335
        %v710 = vunpack.c.l.b16 %v336
        %v711 = vunpack.c.h.b16 %v336
        %v712 = vunpack.c.l.b16 %v337
        %v713 = vunpack.c.h.b16 %v337
        %v714 = vunpack.c.l.b16 %v338
        %v715 = vunpack.c.h.b16 %v338
        %v716 = vunpack.c.l.b16 %v339
        %v717 = vunpack.c.h.b16 %v339
        %v718 = vunpack.c.l.b16 %v340
        %v719 = vunpack.c.h.b16 %v340
        %v720 = vunpack.c.l.b16 %v341
        %v721 = vunpack.c.h.b16 %v341
        %v722 = vunpack.c.l.b16 %v342
        %v723 = vunpack.c.h.b16 %v342
        %v724 = vunpack.c.l.b16 %v343
        %v725 = vunpack.c.h.b16 %v343
        %v726 = vunpack.c.l.b16 %v344
        %v727 = vunpack.c.h.b16 %v344
        %v728 = vunpack.c.l.b16 %v345
        %v729 = vunpack.c.h.b16 %v345
        %v730 = vunpack.c.l.b16 %v346
        %v731 = vunpack.c.h.b16 %v346
        %v732 = vunpack.c.l.b16 %v347
        %v733 = vunpack.c.h.b16 %v347
        %v734 = vunpack.c.l.b16 %v348
        %v735 = vunpack.c.h.b16 %v348
        %v736 = vunpack.c.l.b16 %v349
        %v737 = vunpack.c.h.b16 %v349
        %v738 = vunpack.c.l.b16 %v350
        %v739 = vunpack.c.h.b16 %v350
        %v740 = vunpack.c.l.b16 %v351
        %v741 = vunpack.c.h.b16 %v351
        %v742 = vunpack.c.l.b16 %v352
        %v743 = vunpack.c.h.b16 %v352
        %v744 = vunpack.c.l.b16 %v353
        %v745 = vunpack.c.h.b16 %v353
        %v746 = vunpack.c.l.b16 %v354
        %v747 = vunpack.c.h.b16 %v354
        %v748 = vunpack.c.l.b16 %v355
        %v749 = vunpack.c.h.b16 %v355
        %v750 = vunpack.c.l.b16 %v356
        %v751 = vunpack.c.h.b16 %v356
        %v752 = vunpack.c.l.b16 %v357
        %v753 = vunpack.c.h.b16 %v357
        %v754 = vunpack.c.l.b16 %v358
        %v755 = vunpack.c.h.b16 %v358
        %v756 = vunpack.c.l.b16 %v359
        %v757 = vunpack.c.h.b16 %v359
        %v758 = vunpack.c.l.b16 %v360
        %v759 = vunpack.c.h.b16 %v360
        %v760 = vunpack.c.l.b16 %v361
        %v761 = vunpack.c.h.b16 %v361
        %v762 = vunpack.c.l.b16 %v362
        %v763 = vunpack.c.h.b16 %v362
        %v764 = vunpack.c.l.b16 %v363
        %v765 = vunpack.c.h.b16 %v363
        %v766 = vunpack.c.l.b16 %v364
        %v767 = vunpack.c.h.b16 %v364
        %v768 = vunpack.c.l.b16 %v365
        %v769 = vunpack.c.h.b16 %v365
        %v770 = vunpack.c.l.b16 %v366
        %v771 = vunpack.c.h.b16 %v366
        %v772 = vunpack.c.l.b16 %v367
        %v773 = vunpack.c.h.b16 %v367
        %v774 = vunpack.c.l.b16 %v368
        %v775 = vunpack.c.h.b16 %v368
        %v776 = vunpack.c.l.b16 %v369
        %v777 = vunpack.c.h.b16 %v369
        %v778 = vunpack.c.l.b16 %v370
        %v779 = vunpack.c.h.b16 %v370
        %v780 = vunpack.c.l.b16 %v371
        %v781 = vunpack.c.h.b16 %v371
        %v782 = vunpack.c.l.b16 %v372
        %v783 = vunpack.c.h.b16 %v372
        %v784 = vunpack.c.l.b16 %v373
        %v785 = vunpack.c.h.b16 %v373
        %v786 = vunpack.c.l.b16 %v374
        %v787 = vunpack.c.h.b16 %v374
        %v788 = vunpack.c.l.b16 %v375
        %v789 = vunpack.c.h.b16 %v375
        %v790 = vunpack.c.l.b16 %v376
        %v791 = vunpack.c.h.b16 %v376
        %v792 = vunpack.c.l.b16 %v377
        %v793 = vunpack.c.h.b16 %v377
        %v794 = vunpack.c.l.b16 %v378
        %v795 = vunpack.c.h.b16 %v378
        %v796 = vunpack.c.l.b16 %v379
        %v797 = vunpack.c.h.b16 %v379
        %v798 = vunpack.c.l.b16 %v380
        %v799 = vunpack.c.h.b16 %v380
        %v800 = vunpack.c.l.b16 %v381
        %v801 = vunpack.c.h.b16 %v381
        %v802 = vunpack.c.l.b16 %v382
        %v803 = vunpack.c.h.b16 %v382
        %v804 = vunpack.c.l.b16 %v383
        %v805 = vunpack.c.h.b16 %v383
        %v806 = vunpack.c.l.b16 %v384
        %v807 = vunpack.c.h.b16 %v384
        %v808 = vunpack.c.l.b16 %v385
        %v809 = vunpack.c.h.b16 %v385
        %v810 = vpack.c.b16 %v558, %v554
        %v811 = vpack.c.b16 %v559, %v555
        %v812 = vpack.c.b16 %v560, %v556
        %v813 = vpack.c.b16 %v561, %v557
        %v814 = vpack.c.b16 %v566, %v562
        %v815 = vpack.c.b16 %v567, %v563
        %v816 = vpack.c.b16 %v568, %v564
        %v817 = vpack.c.b16 %v569, %v565
        %v818 = vpack.c.b16 %v574, %v570
        %v819 = vpack.c.b16 %v575, %v571
        %v820 = vpack.c.b16 %v576, %v572
        %v821 = vpack.c.b16 %v577, %v573
        %v822 = vpack.c.b16 %v582, %v578
        %v823 = vpack.c.b16 %v583, %v579
        %v824 = vpack.c.b16 %v584, %v580
        %v825 = vpack.c.b16 %v585, %v581
        %v826 = vpack.c.b16 %v590, %v586
        %v827 = vpack.c.b16 %v591, %v587
        %v828 = vpack.c.b16 %v592, %v588
        %v829 = vpack.c.b16 %v593, %v589
        %v830 = vpack.c.b16 %v598, %v594
        %v831 = vpack.c.b16 %v599, %v595
        %v832 = vpack.c.b16 %v600, %v596
        %v833 = vpack.c.b16 %v601, %v597
        %v834 = vpack.c.b16 %v606, %v602
        %v835 = vpack.c.b16 %v607, %v603
        %v836 = vpack.c.b16 %v608, %v604
        %v837 = vpack.c.b16 %v609, %v605
        %v838 = vpack.c.b16 %v614, %v610
        %v839 = vpack.c.b16 %v615, %v611
        %v840 = vpack.c.b16 %v616, %v612
        %v841 = vpack.c.b16 %v617, %v613
        %v842 = vpack.c.b16 %v622, %v618
        %v843 = vpack.c.b16 %v623, %v619
        %v844 = vpack.c.b16 %v624, %v620
        %v845 = vpack.c.b16 %v625, %v621
        %v846 = vpack.c.b16 %v630, %v626
        %v847 = vpack.c.b16 %v631, %v627
        %v848 = vpack.c.b16 %v632, %v628
        %v849 = vpack.c.b16 %v633, %v629
        %v850 = vpack.c.b16 %v638, %v634
        %v851 = vpack.c.b16 %v639, %v635
        %v852 = vpack.c.b16 %v640, %v636
        %v853 = vpack.c.b16 %v641, %v637
        %v854 = vpack.c.b16 %v646, %v642
        %v855 = vpack.c.b16 %v647, %v643
        %v856 = vpack.c.b16 %v648, %v644
        %v857 = vpack.c.b16 %v649, %v645
        %v858 = vpack.c.b16 %v654, %v650
        %v859 = vpack.c.b16 %v655, %v651
        %v860 = vpack.c.b16 %v656, %v652
        %v861 = vpack.c.b16 %v657, %v653
        %v862 = vpack.c.b16 %v662, %v658
        %v863 = vpack.c.b16 %v663, %v659
        %v864 = vpack.c.b16 %v664, %v660
        %v865 = vpack.c.b16 %v665, %v661
        %v866 = vpack.c.b16 %v670, %v666
        %v867 = vpack.c.b16 %v671, %v667
        %v868 = vpack.c.b16 %v672, %v668
        %v869 = vpack.c.b16 %v673, %v669
        %v870 = vpack.c.b16 %v678, %v674
        %v871 = vpack.c.b16 %v679, %v675
        %v872 = vpack.c.b16 %v680, %v676
        %v873 = vpack.c.b16 %v681, %v677
        %v874 = vpack.c.b16 %v686, %v682
        %v875 = vpack.c.b16 %v687, %v683
        %v876 = vpack.c.b16 %v688, %v684
        %v877 = vpack.c.b16 %v689, %v685
        %v878 = vpack.c.b16 %v694, %v690
        %v879 = vpack.c.b16 %v695, %v691
        %v880 = vpack.c.b16 %v696, %v692
        %v881 = vpack.c.b16 %v697, %v693
        %v882 = vpack.c.b16 %v702, %v698
        %v883 = vpack.c.b16 %v703, %v699
        %v884 = vpack.c.b16 %v704, %v700
        %v885 = vpack.c.b16 %v705, %v701
        %v886 = vpack.c.b16 %v710, %v706
        %v887 = vpack.c.b16 %v711, %v707
        %v888 = vpack.c.b16 %v712, %v708
        %v889 = vpack.c.b16 %v713, %v709
        %v890 = vpack.c.b16 %v718, %v714
        %v891 = vpack.c.b16 %v719, %v715
        %v892 = vpack.c.b16 %v720, %v716
        %v893 = vpack.c.b16 %v721, %v717
        %v894 = vpack.c.b16 %v726, %v722
        %v895 = vpack.c.b16 %v727, %v723
        %v896 = vpack.c.b16 %v728, %v724
        %v897 = vpack.c.b16 %v729, %v725
        %v898 = vpack.c.b16 %v734, %v730
        %v899 = vpack.c.b16 %v735, %v731
        %v900 = vpack.c.b16 %v736, %v732
        %v901 = vpack.c.b16 %v737, %v733
        %v902 = vpack.c.b16 %v742, %v738
        %v903 = vpack.c.b16 %v743, %v739
        %v904 = vpack.c.b16 %v744, %v740
        %v905 = vpack.c.b16 %v745, %v741
        %v906 = vpack.c.b16 %v750, %v746
        %v907 = vpack.c.b16 %v751, %v747
        %v908 = vpack.c.b16 %v752, %v748
        %v909 = vpack.c.b16 %v753, %v749
        %v910 = vpack.c.b16 %v758, %v754
        %v911 = vpack.c.b16 %v759, %v755
        %v912 = vpack.c.b16 %v760, %v756
        %v913 = vpack.c.b16 %v761, %v757
        %v914 = vpack.c.b16 %v766, %v762
        %v915 = vpack.c.b16 %v767, %v763
        %v916 = vpack.c.b16 %v768, %v764
        %v917 = vpack.c.b16 %v769, %v765
        %v918 = vpack.c.b16 %v774, %v770
        %v919 = vpack.c.b16 %v775, %v771
        %v920 = vpack.c.b16 %v776, %v772
        %v921 = vpack.c.b16 %v777, %v773
        %v922 = vpack.c.b16 %v782, %v778
        %v923 = vpack.c.b16 %v783, %v779
        %v924 = vpack.c.b16 %v784, %v780
        %v925 = vpack.c.b16 %v785, %v781
        %v926 = vpack.c.b16 %v790, %v786
        %v927 = vpack.c.b16 %v791, %v787
        %v928 = vpack.c.b16 %v792, %v788
        %v929 = vpack.c.b16 %v793, %v789
        %v930 = vpack.c.b16 %v798, %v794
        %v931 = vpack.c.b16 %v799, %v795
        %v932 = vpack.c.b16 %v800, %v796
        %v933 = vpack.c.b16 %v801, %v797
        %v934 = vpack.c.b16 %v806, %v802
        %v935 = vpack.c.b16 %v807, %v803
        %v936 = vpack.c.b16 %v808, %v804
        %v937 = vpack.c.b16 %v809, %v805
        %1066 = vmatpush.bf16.msra.mxu0 %v838
        %1067 = vmatpush.bf16.msra.mxu0 %v834
        %1068 = vmatpush.bf16.msra.mxu0 %v830
        %1069 = vmatpush.bf16.msra.mxu0 %v826
        %1070 = vmatpush.bf16.msra.mxu0 %v822
        %1071 = vmatpush.bf16.msra.mxu0 %v818
        %1072 = vmatpush.bf16.msra.mxu0 %v814
        %1073 = vmatpush.bf16.msra.mxu0 %v810
        %1074 = vmatmul.bf16.gmra.mxu0 %v410
        %v1075 = vpop.f32.mrf.mxu0
        %v1076 = vadd.f32 0.0, %v1075
        %v1077 = vpop.f32.mrf.mxu0
        %v1078 = vadd.f32 0.0, %v1077
        %1079 = vmatmul.bf16.gmra.mxu0 %v414
        %v1080 = vpop.f32.mrf.mxu0
        %v1081 = vadd.f32 0.0, %v1080
        %v1082 = vpop.f32.mrf.mxu0
        %v1083 = vadd.f32 0.0, %v1082
        %1084 = vdwg.mxu0
        %1085 = vmatpush.bf16.msra.mxu0 %v870
        %1086 = vmatpush.bf16.msra.mxu0 %v866
        %1087 = vmatpush.bf16.msra.mxu0 %v862
        %1088 = vmatpush.bf16.msra.mxu0 %v858
        %1089 = vmatpush.bf16.msra.mxu0 %v854
        %1090 = vmatpush.bf16.msra.mxu0 %v850
        %1091 = vmatpush.bf16.msra.mxu0 %v846
        %1092 = vmatpush.bf16.msra.mxu0 %v842
        %1093 = vmatmul.bf16.gmra.mxu0 %v411
        %v1094 = vpop.f32.mrf.mxu0
        %v1095 = vadd.f32 %v1076, %v1094
        %v1096 = vpop.f32.mrf.mxu0
        %v1097 = vadd.f32 %v1078, %v1096
        %1098 = vmatmul.bf16.gmra.mxu0 %v415
        %v1099 = vpop.f32.mrf.mxu0
        %v1100 = vadd.f32 %v1081, %v1099
        %v1101 = vpop.f32.mrf.mxu0
        %v1102 = vadd.f32 %v1083, %v1101
        %1103 = vdwg.mxu0
        %1104 = vmatpush.bf16.msra.mxu0 %v902
        %1105 = vmatpush.bf16.msra.mxu0 %v898
        %1106 = vmatpush.bf16.msra.mxu0 %v894
        %1107 = vmatpush.bf16.msra.mxu0 %v890
        %1108 = vmatpush.bf16.msra.mxu0 %v886
        %1109 = vmatpush.bf16.msra.mxu0 %v882
        %1110 = vmatpush.bf16.msra.mxu0 %v878
        %1111 = vmatpush.bf16.msra.mxu0 %v874
        %1112 = vmatmul.bf16.gmra.mxu0 %v412
        %v1113 = vpop.f32.mrf.mxu0
        %v1114 = vadd.f32 %v1095, %v1113
        %v1115 = vpop.f32.mrf.mxu0
        %v1116 = vadd.f32 %v1097, %v1115
        %1117 = vmatmul.bf16.gmra.mxu0 %v416
        %v1118 = vpop.f32.mrf.mxu0
        %v1119 = vadd.f32 %v1100, %v1118
        %v1120 = vpop.f32.mrf.mxu0
        %v1121 = vadd.f32 %v1102, %v1120
        %1122 = vdwg.mxu0
        %1123 = vmatpush.bf16.msra.mxu0 %v934
        %1124 = vmatpush.bf16.msra.mxu0 %v930
        %1125 = vmatpush.bf16.msra.mxu0 %v926
        %1126 = vmatpush.bf16.msra.mxu0 %v922
        %1127 = vmatpush.bf16.msra.mxu0 %v918
        %1128 = vmatpush.bf16.msra.mxu0 %v914
        %1129 = vmatpush.bf16.msra.mxu0 %v910
        %1130 = vmatpush.bf16.msra.mxu0 %v906
        %1131 = vmatmul.bf16.gmra.mxu0 %v413
        %v1132 = vpop.f32.mrf.mxu0
        %v1133 = vadd.f32 %v1114, %v1132
        %v1134 = vpop.f32.mrf.mxu0
        %v1135 = vadd.f32 %v1116, %v1134
        %1136 = vmatmul.bf16.gmra.mxu0 %v417
        %v1137 = vpop.f32.mrf.mxu0
        %v1138 = vadd.f32 %v1119, %v1137
        %v1139 = vpop.f32.mrf.mxu0
        %v1140 = vadd.f32 %v1121, %v1139
        %1141 = vdwg.mxu0
        %1142 = vmatpush.bf16.msra.mxu0 %v839
        %1143 = vmatpush.bf16.msra.mxu0 %v835
        %1144 = vmatpush.bf16.msra.mxu0 %v831
        %1145 = vmatpush.bf16.msra.mxu0 %v827
        %1146 = vmatpush.bf16.msra.mxu0 %v823
        %1147 = vmatpush.bf16.msra.mxu0 %v819
        %1148 = vmatpush.bf16.msra.mxu0 %v815
        %1149 = vmatpush.bf16.msra.mxu0 %v811
        %1150 = vmatmul.bf16.gmra.mxu0 %v410
        %v1151 = vpop.f32.mrf.mxu0
        %v1152 = vadd.f32 0.0, %v1151
        %v1153 = vpop.f32.mrf.mxu0
        %v1154 = vadd.f32 0.0, %v1153
        %1155 = vmatmul.bf16.gmra.mxu0 %v414
        %v1156 = vpop.f32.mrf.mxu0
        %v1157 = vadd.f32 0.0, %v1156
        %v1158 = vpop.f32.mrf.mxu0
        %v1159 = vadd.f32 0.0, %v1158
        %1160 = vdwg.mxu0
        %1161 = vmatpush.bf16.msra.mxu0 %v871
        %1162 = vmatpush.bf16.msra.mxu0 %v867
        %1163 = vmatpush.bf16.msra.mxu0 %v863
        %1164 = vmatpush.bf16.msra.mxu0 %v859
        %1165 = vmatpush.bf16.msra.mxu0 %v855
        %1166 = vmatpush.bf16.msra.mxu0 %v851
        %1167 = vmatpush.bf16.msra.mxu0 %v847
        %1168 = vmatpush.bf16.msra.mxu0 %v843
        %1169 = vmatmul.bf16.gmra.mxu0 %v411
        %v1170 = vpop.f32.mrf.mxu0
        %v1171 = vadd.f32 %v1152, %v1170
        %v1172 = vpop.f32.mrf.mxu0
        %v1173 = vadd.f32 %v1154, %v1172
        %1174 = vmatmul.bf16.gmra.mxu0 %v415
        %v1175 = vpop.f32.mrf.mxu0
        %v1176 = vadd.f32 %v1157, %v1175
        %v1177 = vpop.f32.mrf.mxu0
        %v1178 = vadd.f32 %v1159, %v1177
        %1179 = vdwg.mxu0
        %1180 = vmatpush.bf16.msra.mxu0 %v903
        %1181 = vmatpush.bf16.msra.mxu0 %v899
        %1182 = vmatpush.bf16.msra.mxu0 %v895
        %1183 = vmatpush.bf16.msra.mxu0 %v891
        %1184 = vmatpush.bf16.msra.mxu0 %v887
        %1185 = vmatpush.bf16.msra.mxu0 %v883
        %1186 = vmatpush.bf16.msra.mxu0 %v879
        %1187 = vmatpush.bf16.msra.mxu0 %v875
        %1188 = vmatmul.bf16.gmra.mxu0 %v412
        %v1189 = vpop.f32.mrf.mxu0
        %v1190 = vadd.f32 %v1171, %v1189
        %v1191 = vpop.f32.mrf.mxu0
        %v1192 = vadd.f32 %v1173, %v1191
        %1193 = vmatmul.bf16.gmra.mxu0 %v416
        %v1194 = vpop.f32.mrf.mxu0
        %v1195 = vadd.f32 %v1176, %v1194
        %v1196 = vpop.f32.mrf.mxu0
        %v1197 = vadd.f32 %v1178, %v1196
        %1198 = vdwg.mxu0
        %1199 = vmatpush.bf16.msra.mxu0 %v935
        %1200 = vmatpush.bf16.msra.mxu0 %v931
        %1201 = vmatpush.bf16.msra.mxu0 %v927
        %1202 = vmatpush.bf16.msra.mxu0 %v923
        %1203 = vmatpush.bf16.msra.mxu0 %v919
        %1204 = vmatpush.bf16.msra.mxu0 %v915
        %1205 = vmatpush.bf16.msra.mxu0 %v911
        %1206 = vmatpush.bf16.msra.mxu0 %v907
        %1207 = vmatmul.bf16.gmra.mxu0 %v413
        %v1208 = vpop.f32.mrf.mxu0
        %v1209 = vadd.f32 %v1190, %v1208
        %v1210 = vpop.f32.mrf.mxu0
        %v1211 = vadd.f32 %v1192, %v1210
        %1212 = vmatmul.bf16.gmra.mxu0 %v417
        %v1213 = vpop.f32.mrf.mxu0
        %v1214 = vadd.f32 %v1195, %v1213
        %v1215 = vpop.f32.mrf.mxu0
        %v1216 = vadd.f32 %v1197, %v1215
        %1217 = vdwg.mxu0
        %1218 = vmatpush.bf16.msra.mxu0 %v840
        %1219 = vmatpush.bf16.msra.mxu0 %v836
        %1220 = vmatpush.bf16.msra.mxu0 %v832
        %1221 = vmatpush.bf16.msra.mxu0 %v828
        %1222 = vmatpush.bf16.msra.mxu0 %v824
        %1223 = vmatpush.bf16.msra.mxu0 %v820
        %1224 = vmatpush.bf16.msra.mxu0 %v816
        %1225 = vmatpush.bf16.msra.mxu0 %v812
        %1226 = vmatmul.bf16.gmra.mxu0 %v410
        %v1227 = vpop.f32.mrf.mxu0
        %v1228 = vadd.f32 0.0, %v1227
        %v1229 = vpop.f32.mrf.mxu0
        %v1230 = vadd.f32 0.0, %v1229
        %1231 = vmatmul.bf16.gmra.mxu0 %v414
        %v1232 = vpop.f32.mrf.mxu0
        %v1233 = vadd.f32 0.0, %v1232
        %v1234 = vpop.f32.mrf.mxu0
        %v1235 = vadd.f32 0.0, %v1234
        %1236 = vdwg.mxu0
        %1237 = vmatpush.bf16.msra.mxu0 %v872
        %1238 = vmatpush.bf16.msra.mxu0 %v868
        %1239 = vmatpush.bf16.msra.mxu0 %v864
        %1240 = vmatpush.bf16.msra.mxu0 %v860
        %1241 = vmatpush.bf16.msra.mxu0 %v856
        %1242 = vmatpush.bf16.msra.mxu0 %v852
        %1243 = vmatpush.bf16.msra.mxu0 %v848
        %1244 = vmatpush.bf16.msra.mxu0 %v844
        %1245 = vmatmul.bf16.gmra.mxu0 %v411
        %v1246 = vpop.f32.mrf.mxu0
        %v1247 = vadd.f32 %v1228, %v1246
        %v1248 = vpop.f32.mrf.mxu0
        %v1249 = vadd.f32 %v1230, %v1248
        %1250 = vmatmul.bf16.gmra.mxu0 %v415
        %v1251 = vpop.f32.mrf.mxu0
        %v1252 = vadd.f32 %v1233, %v1251
        %v1253 = vpop.f32.mrf.mxu0
        %v1254 = vadd.f32 %v1235, %v1253
        %1255 = vdwg.mxu0
        %1256 = vmatpush.bf16.msra.mxu0 %v904
        %1257 = vmatpush.bf16.msra.mxu0 %v900
        %1258 = vmatpush.bf16.msra.mxu0 %v896
        %1259 = vmatpush.bf16.msra.mxu0 %v892
        %1260 = vmatpush.bf16.msra.mxu0 %v888
        %1261 = vmatpush.bf16.msra.mxu0 %v884
        %1262 = vmatpush.bf16.msra.mxu0 %v880
        %1263 = vmatpush.bf16.msra.mxu0 %v876
        %1264 = vmatmul.bf16.gmra.mxu0 %v412
        %v1265 = vpop.f32.mrf.mxu0
        %v1266 = vadd.f32 %v1247, %v1265
        %v1267 = vpop.f32.mrf.mxu0
        %v1268 = vadd.f32 %v1249, %v1267
        %1269 = vmatmul.bf16.gmra.mxu0 %v416
        %v1270 = vpop.f32.mrf.mxu0
        %v1271 = vadd.f32 %v1252, %v1270
        %v1272 = vpop.f32.mrf.mxu0
        %v1273 = vadd.f32 %v1254, %v1272
        %1274 = vdwg.mxu0
        %1275 = vmatpush.bf16.msra.mxu0 %v936
        %1276 = vmatpush.bf16.msra.mxu0 %v932
        %1277 = vmatpush.bf16.msra.mxu0 %v928
        %1278 = vmatpush.bf16.msra.mxu0 %v924
        %1279 = vmatpush.bf16.msra.mxu0 %v920
        %1280 = vmatpush.bf16.msra.mxu0 %v916
        %1281 = vmatpush.bf16.msra.mxu0 %v912
        %1282 = vmatpush.bf16.msra.mxu0 %v908
        %1283 = vmatmul.bf16.gmra.mxu0 %v413
        %v1284 = vpop.f32.mrf.mxu0
        %v1285 = vadd.f32 %v1266, %v1284
        %v1286 = vpop.f32.mrf.mxu0
        %v1287 = vadd.f32 %v1268, %v1286
        %1288 = vmatmul.bf16.gmra.mxu0 %v417
        %v1289 = vpop.f32.mrf.mxu0
        %v1290 = vadd.f32 %v1271, %v1289
        %v1291 = vpop.f32.mrf.mxu0
        %v1292 = vadd.f32 %v1273, %v1291
        %1293 = vdwg.mxu0
        %1294 = vmatpush.bf16.msra.mxu0 %v841
        %1295 = vmatpush.bf16.msra.mxu0 %v837
        %1296 = vmatpush.bf16.msra.mxu0 %v833
        %1297 = vmatpush.bf16.msra.mxu0 %v829
        %1298 = vmatpush.bf16.msra.mxu0 %v825
        %1299 = vmatpush.bf16.msra.mxu0 %v821
        %1300 = vmatpush.bf16.msra.mxu0 %v817
        %1301 = vmatpush.bf16.msra.mxu0 %v813
        %1302 = vmatmul.bf16.gmra.mxu0 %v410
        %v1303 = vpop.f32.mrf.mxu0
        %v1304 = vadd.f32 0.0, %v1303
        %v1305 = vpop.f32.mrf.mxu0
        %v1306 = vadd.f32 0.0, %v1305
        %1307 = vmatmul.bf16.gmra.mxu0 %v414
        %v1308 = vpop.f32.mrf.mxu0
        %v1309 = vadd.f32 0.0, %v1308
        %v1310 = vpop.f32.mrf.mxu0
        %v1311 = vadd.f32 0.0, %v1310
        %1312 = vdwg.mxu0
        %1313 = vmatpush.bf16.msra.mxu0 %v873
        %1314 = vmatpush.bf16.msra.mxu0 %v869
        %1315 = vmatpush.bf16.msra.mxu0 %v865
        %1316 = vmatpush.bf16.msra.mxu0 %v861
        %1317 = vmatpush.bf16.msra.mxu0 %v857
        %1318 = vmatpush.bf16.msra.mxu0 %v853
        %1319 = vmatpush.bf16.msra.mxu0 %v849
        %1320 = vmatpush.bf16.msra.mxu0 %v845
        %1321 = vmatmul.bf16.gmra.mxu0 %v411
        %v1322 = vpop.f32.mrf.mxu0
        %v1323 = vadd.f32 %v1304, %v1322
        %v1324 = vpop.f32.mrf.mxu0
        %v1325 = vadd.f32 %v1306, %v1324
        %1326 = vmatmul.bf16.gmra.mxu0 %v415
        %v1327 = vpop.f32.mrf.mxu0
        %v1328 = vadd.f32 %v1309, %v1327
        %v1329 = vpop.f32.mrf.mxu0
        %v1330 = vadd.f32 %v1311, %v1329
        %1331 = vdwg.mxu0
        %1332 = vmatpush.bf16.msra.mxu0 %v905
        %1333 = vmatpush.bf16.msra.mxu0 %v901
        %1334 = vmatpush.bf16.msra.mxu0 %v897
        %1335 = vmatpush.bf16.msra.mxu0 %v893
        %1336 = vmatpush.bf16.msra.mxu0 %v889
        %1337 = vmatpush.bf16.msra.mxu0 %v885
        %1338 = vmatpush.bf16.msra.mxu0 %v881
        %1339 = vmatpush.bf16.msra.mxu0 %v877
        %1340 = vmatmul.bf16.gmra.mxu0 %v412
        %v1341 = vpop.f32.mrf.mxu0
        %v1342 = vadd.f32 %v1323, %v1341
        %v1343 = vpop.f32.mrf.mxu0
        %v1344 = vadd.f32 %v1325, %v1343
        %1345 = vmatmul.bf16.gmra.mxu0 %v416
        %v1346 = vpop.f32.mrf.mxu0
        %v1347 = vadd.f32 %v1328, %v1346
        %v1348 = vpop.f32.mrf.mxu0
        %v1349 = vadd.f32 %v1330, %v1348
        %1350 = vdwg.mxu0
        %1351 = vmatpush.bf16.msra.mxu0 %v937
        %1352 = vmatpush.bf16.msra.mxu0 %v933
        %1353 = vmatpush.bf16.msra.mxu0 %v929
        %1354 = vmatpush.bf16.msra.mxu0 %v925
        %1355 = vmatpush.bf16.msra.mxu0 %v921
        %1356 = vmatpush.bf16.msra.mxu0 %v917
        %1357 = vmatpush.bf16.msra.mxu0 %v913
        %1358 = vmatpush.bf16.msra.mxu0 %v909
        %1359 = vmatmul.bf16.gmra.mxu0 %v413
        %v1360 = vpop.f32.mrf.mxu0
        %v1361 = vadd.f32 %v1342, %v1360
        %v1362 = vpop.f32.mrf.mxu0
        %v1363 = vadd.f32 %v1344, %v1362
        %1364 = vmatmul.bf16.gmra.mxu0 %v417
        %v1365 = vpop.f32.mrf.mxu0
        %v1366 = vadd.f32 %v1347, %v1365
        %v1367 = vpop.f32.mrf.mxu0
        %v1368 = vadd.f32 %v1349, %v1367
        %1369 = vdwg.mxu0
        %v1370 = vld [vmem:[%s0] ss:$2 sm:$0xf]
        %s1371 = scalar_lea.vmem %s0, 1
        %v1372 = vld [vmem:[%s1371] ss:$2 sm:$0xf]
        %v1374 = vperm.slane %v1370, 0
        %v1375 = vperm.slane %v1370, 1
        %v1376 = vperm.slane %v1370, 2
        %v1377 = vperm.slane %v1370, 3
        %v1382 = vmul.f32 %v1133, %v1374
        %v1383 = vmul.f32 %v1209, %v1375
        %v1384 = vmul.f32 %v1285, %v1376
        %v1385 = vmul.f32 %v1361, %v1377
        %v1386 = vmul.f32 %v1135, %v1374
        %v1387 = vmul.f32 %v1211, %v1375
        %v1388 = vmul.f32 %v1287, %v1376
        %v1389 = vmul.f32 %v1363, %v1377
        %v1390 = vmul.f32 %v1138, %v1374
        %v1391 = vmul.f32 %v1214, %v1375
        %v1392 = vmul.f32 %v1290, %v1376
        %v1393 = vmul.f32 %v1366, %v1377
        %v1394 = vmul.f32 %v1140, %v1374
        %v1395 = vmul.f32 %v1216, %v1375
        %v1396 = vmul.f32 %v1292, %v1376
        %v1397 = vmul.f32 %v1368, %v1377
        %v1399 = vperm.slane %v1372, 0
        %v1400 = vperm.slane %v1372, 1
        %v1401 = vperm.slane %v1372, 2
        %v1402 = vperm.slane %v1372, 3
        %v1407 = vadd.f32 %v1382, %v1399
        %v1408 = vadd.f32 %v1383, %v1400
        %v1409 = vadd.f32 %v1384, %v1401
        %v1410 = vadd.f32 %v1385, %v1402
        %v1411 = vadd.f32 %v1386, %v1399
        %v1412 = vadd.f32 %v1387, %v1400
        %v1413 = vadd.f32 %v1388, %v1401
        %v1414 = vadd.f32 %v1389, %v1402
        %v1415 = vadd.f32 %v1390, %v1399
        %v1416 = vadd.f32 %v1391, %v1400
        %v1417 = vadd.f32 %v1392, %v1401
        %v1418 = vadd.f32 %v1393, %v1402
        %v1419 = vadd.f32 %v1394, %v1399
        %v1420 = vadd.f32 %v1395, %v1400
        %v1421 = vadd.f32 %v1396, %v1401
        %v1422 = vadd.f32 %v1397, %v1402
        %v1423 = vmax.f32 %v1407, 0.0
        %v1424 = vmax.f32 %v1408, 0.0
        %v1425 = vmax.f32 %v1409, 0.0
        %v1426 = vmax.f32 %v1410, 0.0
        %v1427 = vmax.f32 %v1411, 0.0
        %v1428 = vmax.f32 %v1412, 0.0
        %v1429 = vmax.f32 %v1413, 0.0
        %v1430 = vmax.f32 %v1414, 0.0
        %v1431 = vmax.f32 %v1415, 0.0
        %v1432 = vmax.f32 %v1416, 0.0
        %v1433 = vmax.f32 %v1417, 0.0
        %v1434 = vmax.f32 %v1418, 0.0
        %v1435 = vmax.f32 %v1419, 0.0
        %v1436 = vmax.f32 %v1420, 0.0
        %v1437 = vmax.f32 %v1421, 0.0
        %v1438 = vmax.f32 %v1422, 0.0
        %v1439 = vpack.c.bf16 %v1427, %v1423
        %v1440 = vpack.c.bf16 %v1428, %v1424
        %v1441 = vpack.c.bf16 %v1429, %v1425
        %v1442 = vpack.c.bf16 %v1430, %v1426
        %v1443 = vpack.c.bf16 %v1435, %v1431
        %v1444 = vpack.c.bf16 %v1436, %v1432
        %v1445 = vpack.c.bf16 %v1437, %v1433
        %v1446 = vpack.c.bf16 %v1438, %v1434
        %v1447 = vld [vmem:[#allocation2] sm:$0xff]
        %v1448 = vld [vmem:[#allocation2 + $0x8] sm:$0xf]
        %v1449 = vld [vmem:[#allocation2 + $0xc] sm:$0xff]
        %v1450 = vld [vmem:[#allocation2 + $0x14] sm:$0xf]
        %v1451 = vld [vmem:[#allocation2 + $0x18] sm:$0xff]
        %v1452 = vld [vmem:[#allocation2 + $0x20] sm:$0xf]
        %v1453 = vld [vmem:[#allocation2 + $0x24] sm:$0xff]
        %v1454 = vld [vmem:[#allocation2 + $0x2c] sm:$0xf]
        %v1455 = vld [vmem:[#allocation2 + $0x30] sm:$0xff]
        %v1456 = vld [vmem:[#allocation2 + $0x38] sm:$0xf]
        %v1457 = vld [vmem:[#allocation2 + $0x3c] sm:$0xff]
        %v1458 = vld [vmem:[#allocation2 + $0x44] sm:$0xf]
        %v1459 = vld [vmem:[#allocation2 + $0x48] sm:$0xff]
        %v1460 = vld [vmem:[#allocation2 + $0x50] sm:$0xf]
        %v1461 = vld [vmem:[#allocation2 + $0x54] sm:$0xff]
        %v1462 = vld [vmem:[#allocation2 + $0x5c] sm:$0xf]
        %v1463 = vld [vmem:[#allocation2 + $0x60] sm:$0xff]
        %v1464 = vld [vmem:[#allocation2 + $0x68] sm:$0xf]
        %v1465 = vld [vmem:[#allocation2 + $0x6c] sm:$0xff]
        %v1466 = vld [vmem:[#allocation2 + $0x74] sm:$0xf]
        %v1467 = vld [vmem:[#allocation2 + $0x78] sm:$0xff]
        %v1468 = vld [vmem:[#allocation2 + $0x80] sm:$0xf]
        %v1469 = vld [vmem:[#allocation2 + $0x84] sm:$0xff]
        %v1470 = vld [vmem:[#allocation2 + $0x8c] sm:$0xf]
        %v1471 = vld [vmem:[#allocation2 + $0x90] sm:$0xff]
        %v1472 = vld [vmem:[#allocation2 + $0x98] sm:$0xf]
        %v1473 = vld [vmem:[#allocation2 + $0x9c] sm:$0xff]
        %v1474 = vld [vmem:[#allocation2 + $0xa4] sm:$0xf]
        %v1475 = vld [vmem:[#allocation2 + $0xa8] sm:$0xff]
        %v1476 = vld [vmem:[#allocation2 + $0xb0] sm:$0xf]
        %v1477 = vld [vmem:[#allocation2 + $0xb4] sm:$0xff]
        %v1478 = vld [vmem:[#allocation2 + $0xbc] sm:$0xf]
        %v1479 = vld [vmem:[#allocation2 + $0xc0] sm:$0xff]
        %v1480 = vld [vmem:[#allocation2 + $0xc8] sm:$0xf]
        %v1481 = vld [vmem:[#allocation2 + $0xcc] sm:$0xff]
        %v1482 = vld [vmem:[#allocation2 + $0xd4] sm:$0xf]
        %v1483 = vld [vmem:[#allocation2 + $0xd8] sm:$0xff]
        %v1484 = vld [vmem:[#allocation2 + $0xe0] sm:$0xf]
        %v1485 = vld [vmem:[#allocation2 + $0xe4] sm:$0xff]
        %v1486 = vld [vmem:[#allocation2 + $0xec] sm:$0xf]
        %v1487 = vld [vmem:[#allocation2 + $0xf0] sm:$0xff]
        %v1488 = vld [vmem:[#allocation2 + $0xf8] sm:$0xf]
        %v1489 = vld [vmem:[#allocation2 + $0xfc] sm:$0xff]
        %v1490 = vld [vmem:[#allocation2 + $0x104] sm:$0xf]
        %v1491 = vld [vmem:[#allocation2 + $0x108] sm:$0xff]
        %v1492 = vld [vmem:[#allocation2 + $0x110] sm:$0xf]
        %v1493 = vld [vmem:[#allocation2 + $0x114] sm:$0xff]
        %v1494 = vld [vmem:[#allocation2 + $0x11c] sm:$0xf]
        %v1495 = vld [vmem:[#allocation2 + $0x120] sm:$0xff]
        %v1496 = vld [vmem:[#allocation2 + $0x128] sm:$0xf]
        %v1497 = vld [vmem:[#allocation2 + $0x12c] sm:$0xff]
        %v1498 = vld [vmem:[#allocation2 + $0x134] sm:$0xf]
        %v1499 = vld [vmem:[#allocation2 + $0x138] sm:$0xff]
        %v1500 = vld [vmem:[#allocation2 + $0x140] sm:$0xf]
        %v1501 = vld [vmem:[#allocation2 + $0x144] sm:$0xff]
        %v1502 = vld [vmem:[#allocation2 + $0x14c] sm:$0xf]
        %v1503 = vld [vmem:[#allocation2 + $0x150] sm:$0xff]
        %v1504 = vld [vmem:[#allocation2 + $0x158] sm:$0xf]
        %v1505 = vld [vmem:[#allocation2 + $0x15c] sm:$0xff]
        %v1506 = vld [vmem:[#allocation2 + $0x164] sm:$0xf]
        %v1507 = vld [vmem:[#allocation2 + $0x168] sm:$0xff]
        %v1508 = vld [vmem:[#allocation2 + $0x170] sm:$0xf]
        %v1509 = vld [vmem:[#allocation2 + $0x174] sm:$0xff]
        %v1510 = vld [vmem:[#allocation2 + $0x17c] sm:$0xf]
        %v1511 = vld [vmem:[#allocation2 + $0x180] sm:$0xff]
        %v1512 = vld [vmem:[#allocation2 + $0x188] sm:$0xf]
        %v1513 = vld [vmem:[#allocation2 + $0x18c] sm:$0xff]
        %v1514 = vld [vmem:[#allocation2 + $0x194] sm:$0xf]
        %v1515 = vld [vmem:[#allocation2 + $0x198] sm:$0xff]
        %v1516 = vld [vmem:[#allocation2 + $0x1a0] sm:$0xf]
        %v1517 = vld [vmem:[#allocation2 + $0x1a4] sm:$0xff]
        %v1518 = vld [vmem:[#allocation2 + $0x1ac] sm:$0xf]
        %v1519 = vld [vmem:[#allocation2 + $0x1b0] sm:$0xff]
        %v1520 = vld [vmem:[#allocation2 + $0x1b8] sm:$0xf]
        %v1521 = vld [vmem:[#allocation2 + $0x1bc] sm:$0xff]
        %v1522 = vld [vmem:[#allocation2 + $0x1c4] sm:$0xf]
        %v1523 = vld [vmem:[#allocation2 + $0x1c8] sm:$0xff]
        %v1524 = vld [vmem:[#allocation2 + $0x1d0] sm:$0xf]
        %v1525 = vld [vmem:[#allocation2 + $0x1d4] sm:$0xff]
        %v1526 = vld [vmem:[#allocation2 + $0x1dc] sm:$0xf]
        %v1527 = vld [vmem:[#allocation2 + $0x1e0] sm:$0xff]
        %v1528 = vld [vmem:[#allocation2 + $0x1e8] sm:$0xf]
        %v1529 = vld [vmem:[#allocation2 + $0x1ec] sm:$0xff]
        %v1530 = vld [vmem:[#allocation2 + $0x1f4] sm:$0xf]
        %v1531 = vld [vmem:[#allocation2 + $0x1f8] sm:$0xff]
        %v1532 = vld [vmem:[#allocation2 + $0x200] sm:$0xf]
        %v1533 = vld [vmem:[#allocation2 + $0x204] sm:$0xff]
        %v1534 = vld [vmem:[#allocation2 + $0x20c] sm:$0xf]
        %v1535 = vld [vmem:[#allocation2 + $0x210] sm:$0xff]
        %v1536 = vld [vmem:[#allocation2 + $0x218] sm:$0xf]
        %v1537 = vld [vmem:[#allocation2 + $0x21c] sm:$0xff]
        %v1538 = vld [vmem:[#allocation2 + $0x224] sm:$0xf]
        %v1539 = vld [vmem:[#allocation2 + $0x228] sm:$0xff]
        %v1540 = vld [vmem:[#allocation2 + $0x230] sm:$0xf]
        %v1541 = vld [vmem:[#allocation2 + $0x234] sm:$0xff]
        %v1542 = vld [vmem:[#allocation2 + $0x23c] sm:$0xf]
        %v1543 = vld [vmem:[#allocation2 + $0x240] sm:$0xff]
        %v1544 = vld [vmem:[#allocation2 + $0x248] sm:$0xf]
        %v1545 = vld [vmem:[#allocation2 + $0x24c] sm:$0xff]
        %v1546 = vld [vmem:[#allocation2 + $0x254] sm:$0xf]
        %v1547 = vld [vmem:[#allocation2 + $0x258] sm:$0xff]
        %v1548 = vld [vmem:[#allocation2 + $0x260] sm:$0xf]
        %v1549 = vld [vmem:[#allocation2 + $0x264] sm:$0xff]
        %v1550 = vld [vmem:[#allocation2 + $0x26c] sm:$0xf]
        %v1551 = vld [vmem:[#allocation2 + $0x270] sm:$0xff]
        %v1552 = vld [vmem:[#allocation2 + $0x278] sm:$0xf]
        %v1553 = vld [vmem:[#allocation2 + $0x27c] sm:$0xff]
        %v1554 = vld [vmem:[#allocation2 + $0x284] sm:$0xf]
        %v1555 = vld [vmem:[#allocation2 + $0x288] sm:$0xff]
        %v1556 = vld [vmem:[#allocation2 + $0x290] sm:$0xf]
        %v1557 = vld [vmem:[#allocation2 + $0x294] sm:$0xff]
        %v1558 = vld [vmem:[#allocation2 + $0x29c] sm:$0xf]
        %v1559 = vld [vmem:[#allocation2 + $0x2a0] sm:$0xff]
        %v1560 = vld [vmem:[#allocation2 + $0x2a8] sm:$0xf]
        %v1561 = vld [vmem:[#allocation2 + $0x2ac] sm:$0xff]
        %v1562 = vld [vmem:[#allocation2 + $0x2b4] sm:$0xf]
        %v1563 = vld [vmem:[#allocation2 + $0x2b8] sm:$0xff]
        %v1564 = vld [vmem:[#allocation2 + $0x2c0] sm:$0xf]
        %v1565 = vld [vmem:[#allocation2 + $0x2c4] sm:$0xff]
        %v1566 = vld [vmem:[#allocation2 + $0x2cc] sm:$0xf]
        %v1567 = vld [vmem:[#allocation2 + $0x2d0] sm:$0xff]
        %v1568 = vld [vmem:[#allocation2 + $0x2d8] sm:$0xf]
        %v1569 = vld [vmem:[#allocation2 + $0x2dc] sm:$0xff]
        %v1570 = vld [vmem:[#allocation2 + $0x2e4] sm:$0xf]
        %v1571 = vld [vmem:[#allocation2 + $0x2e8] sm:$0xff]
        %v1572 = vld [vmem:[#allocation2 + $0x2f0] sm:$0xf]
        %v1573 = vld [vmem:[#allocation2 + $0x2f4] sm:$0xff]
        %v1574 = vld [vmem:[#allocation2 + $0x2fc] sm:$0xf]
        %v1575 = vld [vmem:[%s4] sm:$0x7]
        %v1577 = vperm.slane %v1575, 0
        %v1578 = vperm.slane %v1575, 1
        %v1579 = vperm.slane %v1575, 2
        %v1711 = vunpack.c.l.b16 %v1447
        %v1712 = vunpack.c.h.b16 %v1447
        %v1713 = vunpack.c.l.b16 %v1448
        %v1714 = vunpack.c.l.b16 %v1449
        %v1715 = vunpack.c.h.b16 %v1449
        %v1716 = vunpack.c.l.b16 %v1450
        %v1717 = vunpack.c.l.b16 %v1451
        %v1718 = vunpack.c.h.b16 %v1451
        %v1719 = vunpack.c.l.b16 %v1452
        %v1720 = vunpack.c.l.b16 %v1453
        %v1721 = vunpack.c.h.b16 %v1453
        %v1722 = vunpack.c.l.b16 %v1454
        %v1723 = vunpack.c.l.b16 %v1455
        %v1724 = vunpack.c.h.b16 %v1455
        %v1725 = vunpack.c.l.b16 %v1456
        %v1726 = vunpack.c.l.b16 %v1457
        %v1727 = vunpack.c.h.b16 %v1457
        %v1728 = vunpack.c.l.b16 %v1458
        %v1729 = vunpack.c.l.b16 %v1459
        %v1730 = vunpack.c.h.b16 %v1459
        %v1731 = vunpack.c.l.b16 %v1460
        %v1732 = vunpack.c.l.b16 %v1461
        %v1733 = vunpack.c.h.b16 %v1461
        %v1734 = vunpack.c.l.b16 %v1462
        %v1735 = vunpack.c.l.b16 %v1463
        %v1736 = vunpack.c.h.b16 %v1463
        %v1737 = vunpack.c.l.b16 %v1464
        %v1738 = vunpack.c.l.b16 %v1465
        %v1739 = vunpack.c.h.b16 %v1465
        %v1740 = vunpack.c.l.b16 %v1466
        %v1741 = vunpack.c.l.b16 %v1467
        %v1742 = vunpack.c.h.b16 %v1467
        %v1743 = vunpack.c.l.b16 %v1468
        %v1744 = vunpack.c.l.b16 %v1469
        %v1745 = vunpack.c.h.b16 %v1469
        %v1746 = vunpack.c.l.b16 %v1470
        %v1747 = vunpack.c.l.b16 %v1471
        %v1748 = vunpack.c.h.b16 %v1471
        %v1749 = vunpack.c.l.b16 %v1472
        %v1750 = vunpack.c.l.b16 %v1473
        %v1751 = vunpack.c.h.b16 %v1473
        %v1752 = vunpack.c.l.b16 %v1474
        %v1753 = vunpack.c.l.b16 %v1475
        %v1754 = vunpack.c.h.b16 %v1475
        %v1755 = vunpack.c.l.b16 %v1476
        %v1756 = vunpack.c.l.b16 %v1477
        %v1757 = vunpack.c.h.b16 %v1477
        %v1758 = vunpack.c.l.b16 %v1478
        %v1759 = vunpack.c.l.b16 %v1479
        %v1760 = vunpack.c.h.b16 %v1479
        %v1761 = vunpack.c.l.b16 %v1480
        %v1762 = vunpack.c.l.b16 %v1481
        %v1763 = vunpack.c.h.b16 %v1481
        %v1764 = vunpack.c.l.b16 %v1482
        %v1765 = vunpack.c.l.b16 %v1483
        %v1766 = vunpack.c.h.b16 %v1483
        %v1767 = vunpack.c.l.b16 %v1484
        %v1768 = vunpack.c.l.b16 %v1485
        %v1769 = vunpack.c.h.b16 %v1485
        %v1770 = vunpack.c.l.b16 %v1486
        %v1771 = vunpack.c.l.b16 %v1487
        %v1772 = vunpack.c.h.b16 %v1487
        %v1773 = vunpack.c.l.b16 %v1488
        %v1774 = vunpack.c.l.b16 %v1489
        %v1775 = vunpack.c.h.b16 %v1489
        %v1776 = vunpack.c.l.b16 %v1490
        %v1777 = vunpack.c.l.b16 %v1491
        %v1778 = vunpack.c.h.b16 %v1491
        %v1779 = vunpack.c.l.b16 %v1492
        %v1780 = vunpack.c.l.b16 %v1493
        %v1781 = vunpack.c.h.b16 %v1493
        %v1782 = vunpack.c.l.b16 %v1494
        %v1783 = vunpack.c.l.b16 %v1495
        %v1784 = vunpack.c.h.b16 %v1495
        %v1785 = vunpack.c.l.b16 %v1496
        %v1786 = vunpack.c.l.b16 %v1497
        %v1787 = vunpack.c.h.b16 %v1497
        %v1788 = vunpack.c.l.b16 %v1498
        %v1789 = vunpack.c.l.b16 %v1499
        %v1790 = vunpack.c.h.b16 %v1499
        %v1791 = vunpack.c.l.b16 %v1500
        %v1792 = vunpack.c.l.b16 %v1501
        %v1793 = vunpack.c.h.b16 %v1501
        %v1794 = vunpack.c.l.b16 %v1502
        %v1795 = vunpack.c.l.b16 %v1503
        %v1796 = vunpack.c.h.b16 %v1503
        %v1797 = vunpack.c.l.b16 %v1504
        %v1798 = vunpack.c.l.b16 %v1505
        %v1799 = vunpack.c.h.b16 %v1505
        %v1800 = vunpack.c.l.b16 %v1506
        %v1801 = vunpack.c.l.b16 %v1507
        %v1802 = vunpack.c.h.b16 %v1507
        %v1803 = vunpack.c.l.b16 %v1508
        %v1804 = vunpack.c.l.b16 %v1509
        %v1805 = vunpack.c.h.b16 %v1509
        %v1806 = vunpack.c.l.b16 %v1510
        %v1807 = vunpack.c.l.b16 %v1511
        %v1808 = vunpack.c.h.b16 %v1511
        %v1809 = vunpack.c.l.b16 %v1512
        %v1810 = vunpack.c.l.b16 %v1513
        %v1811 = vunpack.c.h.b16 %v1513
        %v1812 = vunpack.c.l.b16 %v1514
        %v1813 = vunpack.c.l.b16 %v1515
        %v1814 = vunpack.c.h.b16 %v1515
        %v1815 = vunpack.c.l.b16 %v1516
        %v1816 = vunpack.c.l.b16 %v1517
        %v1817 = vunpack.c.h.b16 %v1517
        %v1818 = vunpack.c.l.b16 %v1518
        %v1819 = vunpack.c.l.b16 %v1519
        %v1820 = vunpack.c.h.b16 %v1519
        %v1821 = vunpack.c.l.b16 %v1520
        %v1822 = vunpack.c.l.b16 %v1521
        %v1823 = vunpack.c.h.b16 %v1521
        %v1824 = vunpack.c.l.b16 %v1522
        %v1825 = vunpack.c.l.b16 %v1523
        %v1826 = vunpack.c.h.b16 %v1523
        %v1827 = vunpack.c.l.b16 %v1524
        %v1828 = vunpack.c.l.b16 %v1525
        %v1829 = vunpack.c.h.b16 %v1525
        %v1830 = vunpack.c.l.b16 %v1526
        %v1831 = vunpack.c.l.b16 %v1527
        %v1832 = vunpack.c.h.b16 %v1527
        %v1833 = vunpack.c.l.b16 %v1528
        %v1834 = vunpack.c.l.b16 %v1529
        %v1835 = vunpack.c.h.b16 %v1529
        %v1836 = vunpack.c.l.b16 %v1530
        %v1837 = vunpack.c.l.b16 %v1531
        %v1838 = vunpack.c.h.b16 %v1531
        %v1839 = vunpack.c.l.b16 %v1532
        %v1840 = vunpack.c.l.b16 %v1533
        %v1841 = vunpack.c.h.b16 %v1533
        %v1842 = vunpack.c.l.b16 %v1534
        %v1843 = vunpack.c.l.b16 %v1535
        %v1844 = vunpack.c.h.b16 %v1535
        %v1845 = vunpack.c.l.b16 %v1536
        %v1846 = vunpack.c.l.b16 %v1537
        %v1847 = vunpack.c.h.b16 %v1537
        %v1848 = vunpack.c.l.b16 %v1538
        %v1849 = vunpack.c.l.b16 %v1539
        %v1850 = vunpack.c.h.b16 %v1539
        %v1851 = vunpack.c.l.b16 %v1540
        %v1852 = vunpack.c.l.b16 %v1541
        %v1853 = vunpack.c.h.b16 %v1541
        %v1854 = vunpack.c.l.b16 %v1542
        %v1855 = vunpack.c.l.b16 %v1543
        %v1856 = vunpack.c.h.b16 %v1543
        %v1857 = vunpack.c.l.b16 %v1544
        %v1858 = vunpack.c.l.b16 %v1545
        %v1859 = vunpack.c.h.b16 %v1545
        %v1860 = vunpack.c.l.b16 %v1546
        %v1861 = vunpack.c.l.b16 %v1547
        %v1862 = vunpack.c.h.b16 %v1547
        %v1863 = vunpack.c.l.b16 %v1548
        %v1864 = vunpack.c.l.b16 %v1549
        %v1865 = vunpack.c.h.b16 %v1549
        %v1866 = vunpack.c.l.b16 %v1550
        %v1867 = vunpack.c.l.b16 %v1551
        %v1868 = vunpack.c.h.b16 %v1551
        %v1869 = vunpack.c.l.b16 %v1552
        %v1870 = vunpack.c.l.b16 %v1553
        %v1871 = vunpack.c.h.b16 %v1553
        %v1872 = vunpack.c.l.b16 %v1554
        %v1873 = vunpack.c.l.b16 %v1555
        %v1874 = vunpack.c.h.b16 %v1555
        %v1875 = vunpack.c.l.b16 %v1556
        %v1876 = vunpack.c.l.b16 %v1557
        %v1877 = vunpack.c.h.b16 %v1557
        %v1878 = vunpack.c.l.b16 %v1558
        %v1879 = vunpack.c.l.b16 %v1559
        %v1880 = vunpack.c.h.b16 %v1559
        %v1881 = vunpack.c.l.b16 %v1560
        %v1882 = vunpack.c.l.b16 %v1561
        %v1883 = vunpack.c.h.b16 %v1561
        %v1884 = vunpack.c.l.b16 %v1562
        %v1885 = vunpack.c.l.b16 %v1563
        %v1886 = vunpack.c.h.b16 %v1563
        %v1887 = vunpack.c.l.b16 %v1564
        %v1888 = vunpack.c.l.b16 %v1565
        %v1889 = vunpack.c.h.b16 %v1565
        %v1890 = vunpack.c.l.b16 %v1566
        %v1891 = vunpack.c.l.b16 %v1567
        %v1892 = vunpack.c.h.b16 %v1567
        %v1893 = vunpack.c.l.b16 %v1568
        %v1894 = vunpack.c.l.b16 %v1569
        %v1895 = vunpack.c.h.b16 %v1569
        %v1896 = vunpack.c.l.b16 %v1570
        %v1897 = vunpack.c.l.b16 %v1571
        %v1898 = vunpack.c.h.b16 %v1571
        %v1899 = vunpack.c.l.b16 %v1572
        %v1900 = vunpack.c.l.b16 %v1573
        %v1901 = vunpack.c.h.b16 %v1573
        %v1902 = vunpack.c.l.b16 %v1574
        %v1903 = vpack.c.b16 %v1714, %v1711
        %v1904 = vpack.c.b16 %v1715, %v1712
        %v1905 = vpack.c.b16 %v1716, %v1713
        %v1906 = vpack.c.b16 %v1720, %v1717
        %v1907 = vpack.c.b16 %v1721, %v1718
        %v1908 = vpack.c.b16 %v1722, %v1719
        %v1909 = vpack.c.b16 %v1726, %v1723
        %v1910 = vpack.c.b16 %v1727, %v1724
        %v1911 = vpack.c.b16 %v1728, %v1725
        %v1912 = vpack.c.b16 %v1732, %v1729
        %v1913 = vpack.c.b16 %v1733, %v1730
        %v1914 = vpack.c.b16 %v1734, %v1731
        %v1915 = vpack.c.b16 %v1738, %v1735
        %v1916 = vpack.c.b16 %v1739, %v1736
        %v1917 = vpack.c.b16 %v1740, %v1737
        %v1918 = vpack.c.b16 %v1744, %v1741
        %v1919 = vpack.c.b16 %v1745, %v1742
        %v1920 = vpack.c.b16 %v1746, %v1743
        %v1921 = vpack.c.b16 %v1750, %v1747
        %v1922 = vpack.c.b16 %v1751, %v1748
        %v1923 = vpack.c.b16 %v1752, %v1749
        %v1924 = vpack.c.b16 %v1756, %v1753
        %v1925 = vpack.c.b16 %v1757, %v1754
        %v1926 = vpack.c.b16 %v1758, %v1755
        %v1927 = vpack.c.b16 %v1762, %v1759
        %v1928 = vpack.c.b16 %v1763, %v1760
        %v1929 = vpack.c.b16 %v1764, %v1761
        %v1930 = vpack.c.b16 %v1768, %v1765
        %v1931 = vpack.c.b16 %v1769, %v1766
        %v1932 = vpack.c.b16 %v1770, %v1767
        %v1933 = vpack.c.b16 %v1774, %v1771
        %v1934 = vpack.c.b16 %v1775, %v1772
        %v1935 = vpack.c.b16 %v1776, %v1773
        %v1936 = vpack.c.b16 %v1780, %v1777
        %v1937 = vpack.c.b16 %v1781, %v1778
        %v1938 = vpack.c.b16 %v1782, %v1779
        %v1939 = vpack.c.b16 %v1786, %v1783
        %v1940 = vpack.c.b16 %v1787, %v1784
        %v1941 = vpack.c.b16 %v1788, %v1785
        %v1942 = vpack.c.b16 %v1792, %v1789
        %v1943 = vpack.c.b16 %v1793, %v1790
        %v1944 = vpack.c.b16 %v1794, %v1791
        %v1945 = vpack.c.b16 %v1798, %v1795
        %v1946 = vpack.c.b16 %v1799, %v1796
        %v1947 = vpack.c.b16 %v1800, %v1797
        %v1948 = vpack.c.b16 %v1804, %v1801
        %v1949 = vpack.c.b16 %v1805, %v1802
        %v1950 = vpack.c.b16 %v1806, %v1803
        %v1951 = vpack.c.b16 %v1810, %v1807
        %v1952 = vpack.c.b16 %v1811, %v1808
        %v1953 = vpack.c.b16 %v1812, %v1809
        %v1954 = vpack.c.b16 %v1816, %v1813
        %v1955 = vpack.c.b16 %v1817, %v1814
        %v1956 = vpack.c.b16 %v1818, %v1815
        %v1957 = vpack.c.b16 %v1822, %v1819
        %v1958 = vpack.c.b16 %v1823, %v1820
        %v1959 = vpack.c.b16 %v1824, %v1821
        %v1960 = vpack.c.b16 %v1828, %v1825
        %v1961 = vpack.c.b16 %v1829, %v1826
        %v1962 = vpack.c.b16 %v1830, %v1827
        %v1963 = vpack.c.b16 %v1834, %v1831
        %v1964 = vpack.c.b16 %v1835, %v1832
        %v1965 = vpack.c.b16 %v1836, %v1833
        %v1966 = vpack.c.b16 %v1840, %v1837
        %v1967 = vpack.c.b16 %v1841, %v1838
        %v1968 = vpack.c.b16 %v1842, %v1839
        %v1969 = vpack.c.b16 %v1846, %v1843
        %v1970 = vpack.c.b16 %v1847, %v1844
        %v1971 = vpack.c.b16 %v1848, %v1845
        %v1972 = vpack.c.b16 %v1852, %v1849
        %v1973 = vpack.c.b16 %v1853, %v1850
        %v1974 = vpack.c.b16 %v1854, %v1851
        %v1975 = vpack.c.b16 %v1858, %v1855
        %v1976 = vpack.c.b16 %v1859, %v1856
        %v1977 = vpack.c.b16 %v1860, %v1857
        %v1978 = vpack.c.b16 %v1864, %v1861
        %v1979 = vpack.c.b16 %v1865, %v1862
        %v1980 = vpack.c.b16 %v1866, %v1863
        %v1981 = vpack.c.b16 %v1870, %v1867
        %v1982 = vpack.c.b16 %v1871, %v1868
        %v1983 = vpack.c.b16 %v1872, %v1869
        %v1984 = vpack.c.b16 %v1876, %v1873
        %v1985 = vpack.c.b16 %v1877, %v1874
        %v1986 = vpack.c.b16 %v1878, %v1875
        %v1987 = vpack.c.b16 %v1882, %v1879
        %v1988 = vpack.c.b16 %v1883, %v1880
        %v1989 = vpack.c.b16 %v1884, %v1881
        %v1990 = vpack.c.b16 %v1888, %v1885
        %v1991 = vpack.c.b16 %v1889, %v1886
        %v1992 = vpack.c.b16 %v1890, %v1887
        %v1993 = vpack.c.b16 %v1894, %v1891
        %v1994 = vpack.c.b16 %v1895, %v1892
        %v1995 = vpack.c.b16 %v1896, %v1893
        %v1996 = vpack.c.b16 %v1900, %v1897
        %v1997 = vpack.c.b16 %v1901, %v1898
        %v1998 = vpack.c.b16 %v1902, %v1899
        %2095 = vmatpush.bf16.msra.mxu0 %v1924
        %2096 = vmatpush.bf16.msra.mxu0 %v1921
        %2097 = vmatpush.bf16.msra.mxu0 %v1918
        %2098 = vmatpush.bf16.msra.mxu0 %v1915
        %2099 = vmatpush.bf16.msra.mxu0 %v1912
        %2100 = vmatpush.bf16.msra.mxu0 %v1909
        %2101 = vmatpush.bf16.msra.mxu0 %v1906
        %2102 = vmatpush.bf16.msra.mxu0 %v1903
        %2103 = vmatmul.bf16.gmra.mxu0 %v1439
        %v2104 = vpop.f32.mrf.mxu0
        %v2105 = vadd.f32 %v1577, %v2104
        %v2106 = vpop.f32.mrf.mxu0
        %v2107 = vadd.f32 %v1577, %v2106
        %2108 = vmatmul.bf16.gmra.mxu0 %v1443
        %v2109 = vpop.f32.mrf.mxu0
        %v2110 = vadd.f32 %v1577, %v2109
        %v2111 = vpop.f32.mrf.mxu0
        %v2112 = vadd.f32 %v1577, %v2111
        %2113 = vdwg.mxu0
        %2114 = vmatpush.bf16.msra.mxu0 %v1948
        %2115 = vmatpush.bf16.msra.mxu0 %v1945
        %2116 = vmatpush.bf16.msra.mxu0 %v1942
        %2117 = vmatpush.bf16.msra.mxu0 %v1939
        %2118 = vmatpush.bf16.msra.mxu0 %v1936
        %2119 = vmatpush.bf16.msra.mxu0 %v1933
        %2120 = vmatpush.bf16.msra.mxu0 %v1930
        %2121 = vmatpush.bf16.msra.mxu0 %v1927
        %2122 = vmatmul.bf16.gmra.mxu0 %v1440
        %v2123 = vpop.f32.mrf.mxu0
        %v2124 = vadd.f32 %v2105, %v2123
        %v2125 = vpop.f32.mrf.mxu0
        %v2126 = vadd.f32 %v2107, %v2125
        %2127 = vmatmul.bf16.gmra.mxu0 %v1444
        %v2128 = vpop.f32.mrf.mxu0
        %v2129 = vadd.f32 %v2110, %v2128
        %v2130 = vpop.f32.mrf.mxu0
        %v2131 = vadd.f32 %v2112, %v2130
        %2132 = vdwg.mxu0
        %2133 = vmatpush.bf16.msra.mxu0 %v1972
        %2134 = vmatpush.bf16.msra.mxu0 %v1969
        %2135 = vmatpush.bf16.msra.mxu0 %v1966
        %2136 = vmatpush.bf16.msra.mxu0 %v1963
        %2137 = vmatpush.bf16.msra.mxu0 %v1960
        %2138 = vmatpush.bf16.msra.mxu0 %v1957
        %2139 = vmatpush.bf16.msra.mxu0 %v1954
        %2140 = vmatpush.bf16.msra.mxu0 %v1951
        %2141 = vmatmul.bf16.gmra.mxu0 %v1441
        %v2142 = vpop.f32.mrf.mxu0
        %v2143 = vadd.f32 %v2124, %v2142
        %v2144 = vpop.f32.mrf.mxu0
        %v2145 = vadd.f32 %v2126, %v2144
        %2146 = vmatmul.bf16.gmra.mxu0 %v1445
        %v2147 = vpop.f32.mrf.mxu0
        %v2148 = vadd.f32 %v2129, %v2147
        %v2149 = vpop.f32.mrf.mxu0
        %v2150 = vadd.f32 %v2131, %v2149
        %2151 = vdwg.mxu0
        %2152 = vmatpush.bf16.msra.mxu0 %v1996
        %2153 = vmatpush.bf16.msra.mxu0 %v1993
        %2154 = vmatpush.bf16.msra.mxu0 %v1990
        %2155 = vmatpush.bf16.msra.mxu0 %v1987
        %2156 = vmatpush.bf16.msra.mxu0 %v1984
        %2157 = vmatpush.bf16.msra.mxu0 %v1981
        %2158 = vmatpush.bf16.msra.mxu0 %v1978
        %2159 = vmatpush.bf16.msra.mxu0 %v1975
        %2160 = vmatmul.bf16.gmra.mxu0 %v1442
        %v2161 = vpop.f32.mrf.mxu0
        %v2162 = vadd.f32 %v2143, %v2161
        %v2163 = vpop.f32.mrf.mxu0
        %v2164 = vadd.f32 %v2145, %v2163
        %2165 = vmatmul.bf16.gmra.mxu0 %v1446
        %v2166 = vpop.f32.mrf.mxu0
        %v2167 = vadd.f32 %v2148, %v2166
        %v2168 = vpop.f32.mrf.mxu0
        %v2169 = vadd.f32 %v2150, %v2168
        %2170 = vdwg.mxu0
        %2171 = vmatpush.bf16.msra.mxu0 %v1925
        %2172 = vmatpush.bf16.msra.mxu0 %v1922
        %2173 = vmatpush.bf16.msra.mxu0 %v1919
        %2174 = vmatpush.bf16.msra.mxu0 %v1916
        %2175 = vmatpush.bf16.msra.mxu0 %v1913
        %2176 = vmatpush.bf16.msra.mxu0 %v1910
        %2177 = vmatpush.bf16.msra.mxu0 %v1907
        %2178 = vmatpush.bf16.msra.mxu0 %v1904
        %2179 = vmatmul.bf16.gmra.mxu0 %v1439
        %v2180 = vpop.f32.mrf.mxu0
        %v2181 = vadd.f32 %v1578, %v2180
        %v2182 = vpop.f32.mrf.mxu0
        %v2183 = vadd.f32 %v1578, %v2182
        %2184 = vmatmul.bf16.gmra.mxu0 %v1443
        %v2185 = vpop.f32.mrf.mxu0
        %v2186 = vadd.f32 %v1578, %v2185
        %v2187 = vpop.f32.mrf.mxu0
        %v2188 = vadd.f32 %v1578, %v2187
        %2189 = vdwg.mxu0
        %2190 = vmatpush.bf16.msra.mxu0 %v1949
        %2191 = vmatpush.bf16.msra.mxu0 %v1946
        %2192 = vmatpush.bf16.msra.mxu0 %v1943
        %2193 = vmatpush.bf16.msra.mxu0 %v1940
        %2194 = vmatpush.bf16.msra.mxu0 %v1937
        %2195 = vmatpush.bf16.msra.mxu0 %v1934
        %2196 = vmatpush.bf16.msra.mxu0 %v1931
        %2197 = vmatpush.bf16.msra.mxu0 %v1928
        %2198 = vmatmul.bf16.gmra.mxu0 %v1440
        %v2199 = vpop.f32.mrf.mxu0
        %v2200 = vadd.f32 %v2181, %v2199
        %v2201 = vpop.f32.mrf.mxu0
        %v2202 = vadd.f32 %v2183, %v2201
        %2203 = vmatmul.bf16.gmra.mxu0 %v1444
        %v2204 = vpop.f32.mrf.mxu0
        %v2205 = vadd.f32 %v2186, %v2204
        %v2206 = vpop.f32.mrf.mxu0
        %v2207 = vadd.f32 %v2188, %v2206
        %2208 = vdwg.mxu0
        %2209 = vmatpush.bf16.msra.mxu0 %v1973
        %2210 = vmatpush.bf16.msra.mxu0 %v1970
        %2211 = vmatpush.bf16.msra.mxu0 %v1967
        %2212 = vmatpush.bf16.msra.mxu0 %v1964
        %2213 = vmatpush.bf16.msra.mxu0 %v1961
        %2214 = vmatpush.bf16.msra.mxu0 %v1958
        %2215 = vmatpush.bf16.msra.mxu0 %v1955
        %2216 = vmatpush.bf16.msra.mxu0 %v1952
        %2217 = vmatmul.bf16.gmra.mxu0 %v1441
        %v2218 = vpop.f32.mrf.mxu0
        %v2219 = vadd.f32 %v2200, %v2218
        %v2220 = vpop.f32.mrf.mxu0
        %v2221 = vadd.f32 %v2202, %v2220
        %2222 = vmatmul.bf16.gmra.mxu0 %v1445
        %v2223 = vpop.f32.mrf.mxu0
        %v2224 = vadd.f32 %v2205, %v2223
        %v2225 = vpop.f32.mrf.mxu0
        %v2226 = vadd.f32 %v2207, %v2225
        %2227 = vdwg.mxu0
        %2228 = vmatpush.bf16.msra.mxu0 %v1997
        %2229 = vmatpush.bf16.msra.mxu0 %v1994
        %2230 = vmatpush.bf16.msra.mxu0 %v1991
        %2231 = vmatpush.bf16.msra.mxu0 %v1988
        %2232 = vmatpush.bf16.msra.mxu0 %v1985
        %2233 = vmatpush.bf16.msra.mxu0 %v1982
        %2234 = vmatpush.bf16.msra.mxu0 %v1979
        %2235 = vmatpush.bf16.msra.mxu0 %v1976
        %2236 = vmatmul.bf16.gmra.mxu0 %v1442
        %v2237 = vpop.f32.mrf.mxu0
        %v2238 = vadd.f32 %v2219, %v2237
        %v2239 = vpop.f32.mrf.mxu0
        %v2240 = vadd.f32 %v2221, %v2239
        %2241 = vmatmul.bf16.gmra.mxu0 %v1446
        %v2242 = vpop.f32.mrf.mxu0
        %v2243 = vadd.f32 %v2224, %v2242
        %v2244 = vpop.f32.mrf.mxu0
        %v2245 = vadd.f32 %v2226, %v2244
        %2246 = vdwg.mxu0
        %2247 = vmatpush.bf16.msra.mxu0 %v1926
        %2248 = vmatpush.bf16.msra.mxu0 %v1923
        %2249 = vmatpush.bf16.msra.mxu0 %v1920
        %2250 = vmatpush.bf16.msra.mxu0 %v1917
        %2251 = vmatpush.bf16.msra.mxu0 %v1914
        %2252 = vmatpush.bf16.msra.mxu0 %v1911
        %2253 = vmatpush.bf16.msra.mxu0 %v1908
        %2254 = vmatpush.bf16.msra.mxu0 %v1905
        %2255 = vmatmul.bf16.gmra.mxu0 %v1439
        %v2256 = vpop.f32.mrf.mxu0
        %v2257 = vadd.f32 %v1579, %v2256
        %v2258 = vpop.f32.mrf.mxu0
        %v2259 = vadd.f32 %v1579, %v2258
        %2260 = vmatmul.bf16.gmra.mxu0 %v1443
        %v2261 = vpop.f32.mrf.mxu0
        %v2262 = vadd.f32 %v1579, %v2261
        %v2263 = vpop.f32.mrf.mxu0
        %v2264 = vadd.f32 %v1579, %v2263
        %2265 = vdwg.mxu0
        %2266 = vmatpush.bf16.msra.mxu0 %v1950
        %2267 = vmatpush.bf16.msra.mxu0 %v1947
        %2268 = vmatpush.bf16.msra.mxu0 %v1944
        %2269 = vmatpush.bf16.msra.mxu0 %v1941
        %2270 = vmatpush.bf16.msra.mxu0 %v1938
        %2271 = vmatpush.bf16.msra.mxu0 %v1935
        %2272 = vmatpush.bf16.msra.mxu0 %v1932
        %2273 = vmatpush.bf16.msra.mxu0 %v1929
        %2274 = vmatmul.bf16.gmra.mxu0 %v1440
        %v2275 = vpop.f32.mrf.mxu0
        %v2276 = vadd.f32 %v2257, %v2275
        %v2277 = vpop.f32.mrf.mxu0
        %v2278 = vadd.f32 %v2259, %v2277
        %2279 = vmatmul.bf16.gmra.mxu0 %v1444
        %v2280 = vpop.f32.mrf.mxu0
        %v2281 = vadd.f32 %v2262, %v2280
        %v2282 = vpop.f32.mrf.mxu0
        %v2283 = vadd.f32 %v2264, %v2282
        %2284 = vdwg.mxu0
        %2285 = vmatpush.bf16.msra.mxu0 %v1974
        %2286 = vmatpush.bf16.msra.mxu0 %v1971
        %2287 = vmatpush.bf16.msra.mxu0 %v1968
        %2288 = vmatpush.bf16.msra.mxu0 %v1965
        %2289 = vmatpush.bf16.msra.mxu0 %v1962
        %2290 = vmatpush.bf16.msra.mxu0 %v1959
        %2291 = vmatpush.bf16.msra.mxu0 %v1956
        %2292 = vmatpush.bf16.msra.mxu0 %v1953
        %2293 = vmatmul.bf16.gmra.mxu0 %v1441
        %v2294 = vpop.f32.mrf.mxu0
        %v2295 = vadd.f32 %v2276, %v2294
        %v2296 = vpop.f32.mrf.mxu0
        %v2297 = vadd.f32 %v2278, %v2296
        %2298 = vmatmul.bf16.gmra.mxu0 %v1445
        %v2299 = vpop.f32.mrf.mxu0
        %v2300 = vadd.f32 %v2281, %v2299
        %v2301 = vpop.f32.mrf.mxu0
        %v2302 = vadd.f32 %v2283, %v2301
        %2303 = vdwg.mxu0
        %2304 = vmatpush.bf16.msra.mxu0 %v1998
        %2305 = vmatpush.bf16.msra.mxu0 %v1995
        %2306 = vmatpush.bf16.msra.mxu0 %v1992
        %2307 = vmatpush.bf16.msra.mxu0 %v1989
        %2308 = vmatpush.bf16.msra.mxu0 %v1986
        %2309 = vmatpush.bf16.msra.mxu0 %v1983
        %2310 = vmatpush.bf16.msra.mxu0 %v1980
        %2311 = vmatpush.bf16.msra.mxu0 %v1977
        %2312 = vmatmul.bf16.gmra.mxu0 %v1442
        %v2313 = vpop.f32.mrf.mxu0
        %v2314 = vadd.f32 %v2295, %v2313
        %v2315 = vpop.f32.mrf.mxu0
        %v2316 = vadd.f32 %v2297, %v2315
        %2317 = vmatmul.bf16.gmra.mxu0 %v1446
        %v2318 = vpop.f32.mrf.mxu0
        %v2319 = vadd.f32 %v2300, %v2318
        %v2320 = vpop.f32.mrf.mxu0
        %v2321 = vadd.f32 %v2302, %v2320
        %2322 = vdwg.mxu0
        %2323 = vst [vmem:[%s248] sm:$0xff] %v2162
        %2324 = vst [vmem:[%s248 + $0x8] sm:$0xff] %v2238
        %2325 = vst [vmem:[%s248 + $0x10] sm:$0xff] %v2314
        %2326 = vst [vmem:[%s248 + $0x18] sm:$0xff] %v2164
        %2327 = vst [vmem:[%s248 + $0x20] sm:$0xff] %v2240
        %2328 = vst [vmem:[%s248 + $0x28] sm:$0xff] %v2316
        %2329 = vst [vmem:[%s248 + $0x30] sm:$0xff] %v2167
        %2330 = vst [vmem:[%s248 + $0x38] sm:$0xff] %v2243
        %2331 = vst [vmem:[%s248 + $0x40] sm:$0xff] %v2319
        %2332 = vst [vmem:[%s248 + $0x48] sm:$0xff] %v2169
        %2333 = vst [vmem:[%s248 + $0x50] sm:$0xff] %v2245
        %2334 = vst [vmem:[%s248 + $0x58] sm:$0xff] %v2321
        %s2335 = smul.u32 4, %s17
        %p2336 = scmp.lt.s32.totalorder %s2335, 11
        %s2337 = scalar_select %p2336, %s2335, 11
        %s2338 = smul.addr %s2337, 3
        %s2339 = smul.addr %s2338, 8
        %s2340 = scalar_lea.vmem %s5, %s2339
        // Predicated region
        $region45: #{pose_classifier_forward.3} parent=39 // pred_check
          %p2341 = pneg %p145
        $region46: #{pose_classifier_forward.3} parent=39 // pred_check_branch
          %2343 = sbr.rel (%p2341) target = $region48
        $region47: #{pose_classifier_forward.3} parent=39 // pred_region
          %s2344 = smul.u32 4, %s17
        $region48: #{pose_classifier_forward.3} parent=39 // pred_fallthru
          _
      $region40: #{pose_classifier_forward.3} parent=5 // pred_fallthru
        _
      %p2345 = scmp.le.s32.totalorder 2, %s12
      // Predicated region
      $region49: #{pose_classifier_forward.3} parent=5 // pred_check
        %p2346 = pneg %p2345
      $region50: #{pose_classifier_forward.3} parent=5 // pred_check_branch
        %2348 = sbr.rel (%p2346) target = $region52
      $region51: #{pose_classifier_forward.3} parent=5 // pred_region
        %s2349 = ssub.s32 %s12, 2
        // Predicated region
        $region53: #{pose_classifier_forward.3} parent=51 // pred_check
          %p2350 = pneg %p151
        $region54: #{pose_classifier_forward.3} parent=51 // pred_check_branch
          %2352 = sbr.rel (%p2350) target = $region56
        $region55: #{pose_classifier_forward.3} parent=51 // pred_region
          %s2353 = smul.u32 4, %s18
          %p2354 = scmp.lt.s32.totalorder %s2353, 11
          %s2355 = scalar_select %p2354, %s2353, 11
          %s2356 = smul.addr %s2355, 3
          %s2357 = smul.addr %s2356, 8
          %s2358 = scalar_lea.vmem %s5, %s2357
        $region56: #{pose_classifier_forward.3} parent=51 // pred_fallthru
          _
      $region52: #{pose_classifier_forward.3} parent=5 // pred_fallthru
        _
    $region6: #{pose_classifier_forward.3} parent=1 // loop_footer
      %s16 = sadd.s32 1, %s12
    $region7: #{pose_classifier_forward.3} parent=1 // loop_footer_branch
      %11 = sbr.rel target = $region3
    $region8: #{pose_classifier_forward.3} parent=1 // loop_exit
      _
    %2359 = vsyncpa [#allocation3], 1
    %s2360 = scalar_lea.sflag [#allocation3], 1
    %2361 = vsyncpa %s2360, 1

</llo_original>
